<compile_context>
chip_gen: v7x
topology: tpu7x:2x2x1
jax: 0.10.0
libtpu: 0.0.40
codegen_flags: <defaults>
</compile_context>

<pallas_src>
import jax
import jax.numpy as jnp
import numpy as np
from jax import lax
from jax.experimental import pallas as pl
from jax.experimental.pallas import tpu as pltpu


def _make_kernel(S, ring_slots, prefetch_depth):
    """Build the gather kernel for static sequence length S and DMA-ring parameters."""

    def kernel(ids_ref, len_ref, bias_ref, w_ref, table_hbm, o_ref,
               rows_buf, sem, acc_ref):
        # ids_ref  : SMEM (B_pad*S,) int32   flattened batch-major token ids (scalar prefetch)
        # len_ref  : SMEM (1,)       f32     lengths[0]
        # bias_ref : SMEM (1,)       f32     fc1 bias
        # w_ref    : VMEM (1, E)     f32     fc1 weight row (lane-dense)
        # table_hbm: ANY  (V, E)     f32     embedding table, stays in HBM (gathered row by row)
        # o_ref    : VMEM (BT, 1)    f32     sigmoid output block for this batch tile
        # rows_buf : VMEM (ring_slots, 1, E) f32   DMA landing slots
        # sem      : DMA semaphores (ring_slots,)
        # acc_ref  : VMEM (BT, E)    f32     per-batch-row embedding sums
        BT, E = acc_ref.shape
        n_rows = BT * S                       # rows gathered by this grid step (static)
        base = pl.program_id(0) * n_rows      # offset of this batch tile in the flat id list

        def start_fetch(n):                   # n: local row index (static python int here or below)
            slot = n % ring_slots
            tok = ids_ref[base + n]           # SMEM scalar read (dynamic address)
            pltpu.make_async_copy(
                table_hbm.at[pl.ds(tok, 1), :],   # data-dependent (1, E) row gather from HBM
                rows_buf.at[slot],
                sem.at[slot]).start()

        def wait_fetch(n):
            slot = n % ring_slots
            pltpu.make_async_copy(
                table_hbm.at[pl.ds(0, 1), :],     # dummy src; wait only needs dst/sem shape
                rows_buf.at[slot],
                sem.at[slot]).wait()
            return slot

        # Prime the DMA ring with the first `prefetch_depth` rows.
        for k in range(min(prefetch_depth, n_rows)):
            start_fetch(k)

        # Gather + accumulate.  Fully static loops (BT, S small): every VMEM index is static,
        # only the HBM row offset and the SMEM id address are dynamic.
        for b in range(BT):
            row_sum = jnp.zeros((1, E), jnp.float32)
            for s in range(S):
                n = b * S + s
                slot = wait_fetch(n)
                nxt = n + prefetch_depth
                if nxt < n_rows:
                    # prefetch_depth < ring_slots => never writes the slot being consumed
                    start_fetch(nxt)
                row_sum = row_sum + rows_buf[slot]         # (1, E) f32 add
            acc_ref[pl.ds(b, 1), :] = row_sum              # static sublane store

        # fc1 (E -> 1) as VPU multiply + lane reduction (avoids an N=1 MXU pass), then
        # scale-after-dot by 1/lengths[0] (BT muls instead of BT*E), bias, sigmoid.
        dot = jnp.sum(acc_ref[...] * w_ref[...], axis=-1, keepdims=True)   # (BT, 1)
        logits = dot * (1.0 / len_ref[0]) + bias_ref[0]
        o_ref[...] = jax.nn.sigmoid(logits)

    return kernel


def baseline_forward(x_ids, lengths, emb_table, fc1_w, fc1_b, *,
                     batch_tile=8, ring_slots=4, prefetch_depth=3):
    """x_ids: (S, B) int token ids (sequence-major, torchtext convention); lengths: (B,) int;
    emb_table: (V, E); fc1_w: (1, E) (PyTorch Linear layout); fc1_b: (1,).
    Returns (B, 1) float32 = sigmoid(fc1(sum_s embed(x[s]) / lengths[0]))."""
    S, B = x_ids.shape
    V, E = emb_table.shape

    BT = batch_tile                                           # 8 = sublane multiple
    B_pad = -(-max(B, BT) // BT) * BT
    n_btiles = B_pad // BT

    # Token ids, batch-major, flattened: row n corresponds to (b = n // S, s = n % S).
    ids_bm = jnp.transpose(x_ids.astype(jnp.int32))           # (B, S)
    if B_pad != B:
        ids_bm = jnp.pad(ids_bm, ((0, B_pad - B), (0, 0)))    # padded rows sliced off below
    ids_flat = ids_bm.reshape(B_pad * S)

    table = emb_table.astype(jnp.float32)
    len0 = lengths[:1].astype(jnp.float32)                    # (1,) scalar -> SMEM
    bias = fc1_b.reshape(1).astype(jnp.float32)               # (1,) scalar -> SMEM
    w_row = fc1_w.reshape(1, E).astype(jnp.float32)           # (1, E) lane-dense weight row

    cost = pl.CostEstimate(
        flops=2 * B_pad * S * E + 3 * B_pad * E,
        transcendentals=B_pad,
        bytes_accessed=B_pad * S * E * 4 + B_pad * S * 4 + E * 4 + B_pad * 4,
    )

    kernel = _make_kernel(S, ring_slots, prefetch_depth)

    out = pl.pallas_call(
        kernel,
        out_shape=jax.ShapeDtypeStruct((B_pad, 1), jnp.float32),
        grid_spec=pltpu.PrefetchScalarGridSpec(
            num_scalar_prefetch=1,                             # ids_flat -> SMEM, first kernel arg
            grid=(n_btiles,),                                  # batch tiles (parallel)
            in_specs=[
                pl.BlockSpec(memory_space=pltpu.MemorySpace.SMEM),   # lengths[0] scalar
                pl.BlockSpec(memory_space=pltpu.MemorySpace.SMEM),   # fc1 bias scalar
                pl.BlockSpec((1, E), lambda i, ids: (0, 0)),         # fc1 weight row (resident)
                pl.BlockSpec(memory_space=pl.ANY),                   # embedding table stays in HBM
            ],
            out_specs=pl.BlockSpec((BT, 1), lambda i, ids: (i, 0)),
            scratch_shapes=[
                pltpu.VMEM((ring_slots, 1, E), jnp.float32),         # DMA ring slots
                pltpu.SemaphoreType.DMA((ring_slots,)),              # one sem per slot
                pltpu.VMEM((BT, E), jnp.float32),                    # per-batch embedding sums
            ],
        ),
        compiler_params=pltpu.CompilerParams(
            dimension_semantics=("parallel",),   # batch tiles shard across v7x's 2 TensorCores
        ),
        cost_estimate=cost,
    )(ids_flat, len0, bias, w_row, table)

    return out[:B]


if __name__ == "__main__":
    key = jax.random.PRNGKey(0)
    k1, k2, k3, k4 = jax.random.split(key, 4)

    # Small shapes consistent with the module: seq=8, batch=4, vocab=512, emb_dim=128
    S, B, V, E = 8, 4, 512, 128

    x_ids = jax.random.randint(k1, (S, B), 0, V, dtype=jnp.int32)
    lengths = jnp.full((B,), S, dtype=jnp.int32)
    emb_table = jax.random.normal(k2, (V, E), dtype=jnp.float32)      # pretrained vectors
    fc1_w = jax.random.normal(k3, (1, E), dtype=jnp.float32) * 0.1    # nn.Linear(E, 1).weight
    fc1_b = jax.random.normal(k4, (1,), dtype=jnp.float32) * 0.1      # nn.Linear(E, 1).bias

    out = baseline_forward(x_ids, lengths, emb_table, fc1_w, fc1_b)
    out = jax.block_until_ready(out)

    # Pure-JAX reference (mirrors the PyTorch forward exactly)
    emb = jnp.take(emb_table, x_ids, axis=0)                          # (S, B, E)
    mean = jnp.sum(emb, axis=0) / lengths[0].astype(jnp.float32)
    ref = jax.nn.sigmoid(
        jnp.dot(mean, fc1_w.T, precision=jax.lax.Precision.HIGHEST) + fc1_b)  # (B, 1)

    assert out.shape == (B, 1)
    assert np.allclose(np.asarray(out), np.asarray(ref), atol=1e-5, rtol=1e-5)
    print("KERNEL_OK")
</pallas_src>

<mosaic_0001>
module attributes {stable_mosaic.version = 11 : i64} {
  func.func @kernel(%arg0: i32, %arg1: memref<64xi32, #tpu.memory_space<smem>>, %arg2: memref<1xf32, #tpu.memory_space<smem>>, %arg3: memref<1xf32, #tpu.memory_space<smem>>, %arg4: memref<1x128xf32, #tpu.memory_space<vmem>>, %arg5: memref<512x128xf32, #tpu.memory_space<any>>, %arg6: memref<8x1xf32, #tpu.memory_space<vmem>>, %arg7: memref<4x1x128xf32, #tpu.memory_space<vmem>>, %arg8: memref<4x!tpu.dma_semaphore, #tpu.memory_space<semaphore_mem>>, %arg9: memref<8x128xf32, #tpu.memory_space<vmem>>) attributes {dimension_semantics = [#tpu.dimension_semantics<parallel>], iteration_bounds = array<i64: 1>, scalar_prefetch = 1 : i64, scratch_operands = 3 : i64, tpu.core_type = #tpu.core_type<tc>, window_params = [{transform_indices = @transform_0, window_bounds = array<i64: 1>}, {transform_indices = @transform_1, window_bounds = array<i64: 1>}, {pipeline_mode = #tpu.pipeline_mode<synchronous>, transform_indices = @transform_2, window_bounds = array<i64: 1, 128>}, {}, {transform_indices = @transform_4, window_bounds = array<i64: 8, 1>}]} {
    %c64_i32 = arith.constant 64 : i32
    %0 = arith.muli %arg0, %c64_i32 : i32
    %c0_i32 = arith.constant 0 : i32
    %1 = arith.addi %0, %c0_i32 : i32
    %2 = arith.index_cast %1 : i32 to index
    %3 = memref.load %arg1[%2] : memref<64xi32, #tpu.memory_space<smem>>
    %c0_i32_0 = arith.constant 0 : i32
    %c0_i32_1 = arith.constant 0 : i32
    %c0_i32_2 = arith.constant 0 : i32
    %4 = tpu.memref_slice %arg5[%3, %c0_i32_2] : memref<512x128xf32, #tpu.memory_space<any>> -> memref<1x128xf32, #tpu.memory_space<any>>
    %c0_i32_3 = arith.constant 0 : i32
    %c0_i32_4 = arith.constant 0 : i32
    %5 = tpu.memref_slice %arg7[%c0_i32_0, %c0_i32_3, %c0_i32_4] : memref<4x1x128xf32, #tpu.memory_space<vmem>> -> memref<1x1x128xf32, #tpu.memory_space<vmem>>
    %6 = tpu.memref_squeeze %5 : memref<1x1x128xf32, #tpu.memory_space<vmem>> -> memref<1x128xf32, #tpu.memory_space<vmem>>
    %7 = tpu.memref_slice %arg8[%c0_i32_1] : memref<4x!tpu.dma_semaphore, #tpu.memory_space<semaphore_mem>> -> memref<1x!tpu.dma_semaphore, #tpu.memory_space<semaphore_mem>>
    %8 = tpu.memref_squeeze %7 : memref<1x!tpu.dma_semaphore, #tpu.memory_space<semaphore_mem>> -> memref<!tpu.dma_semaphore, #tpu.memory_space<semaphore_mem>>
    tpu.enqueue_dma source(%4 : memref<1x128xf32, #tpu.memory_space<any>>) target(%6 : memref<1x128xf32, #tpu.memory_space<vmem>>) target_semaphore(%8 : memref<!tpu.dma_semaphore, #tpu.memory_space<semaphore_mem>>)
    %c1_i32 = arith.constant 1 : i32
    %9 = arith.addi %0, %c1_i32 : i32
    %10 = arith.index_cast %9 : i32 to index
    %11 = memref.load %arg1[%10] : memref<64xi32, #tpu.memory_space<smem>>
    %c1_i32_5 = arith.constant 1 : i32
    %c1_i32_6 = arith.constant 1 : i32
    %c0_i32_7 = arith.constant 0 : i32
    %12 = tpu.memref_slice %arg5[%11, %c0_i32_7] : memref<512x128xf32, #tpu.memory_space<any>> -> memref<1x128xf32, #tpu.memory_space<any>>
    %c0_i32_8 = arith.constant 0 : i32
    %c0_i32_9 = arith.constant 0 : i32
    %13 = tpu.memref_slice %arg7[%c1_i32_5, %c0_i32_8, %c0_i32_9] : memref<4x1x128xf32, #tpu.memory_space<vmem>> -> memref<1x1x128xf32, #tpu.memory_space<vmem>>
    %14 = tpu.memref_squeeze %13 : memref<1x1x128xf32, #tpu.memory_space<vmem>> -> memref<1x128xf32, #tpu.memory_space<vmem>>
    %15 = tpu.memref_slice %arg8[%c1_i32_6] : memref<4x!tpu.dma_semaphore, #tpu.memory_space<semaphore_mem>> -> memref<1x!tpu.dma_semaphore, #tpu.memory_space<semaphore_mem>>
    %16 = tpu.memref_squeeze %15 : memref<1x!tpu.dma_semaphore, #tpu.memory_space<semaphore_mem>> -> memref<!tpu.dma_semaphore, #tpu.memory_space<semaphore_mem>>
    tpu.enqueue_dma source(%12 : memref<1x128xf32, #tpu.memory_space<any>>) target(%14 : memref<1x128xf32, #tpu.memory_space<vmem>>) target_semaphore(%16 : memref<!tpu.dma_semaphore, #tpu.memory_space<semaphore_mem>>)
    %c2_i32 = arith.constant 2 : i32
    %17 = arith.addi %0, %c2_i32 : i32
    %18 = arith.index_cast %17 : i32 to index
    %19 = memref.load %arg1[%18] : memref<64xi32, #tpu.memory_space<smem>>
    %c2_i32_10 = arith.constant 2 : i32
    %c2_i32_11 = arith.constant 2 : i32
    %c0_i32_12 = arith.constant 0 : i32
    %20 = tpu.memref_slice %arg5[%19, %c0_i32_12] : memref<512x128xf32, #tpu.memory_space<any>> -> memref<1x128xf32, #tpu.memory_space<any>>
    %c0_i32_13 = arith.constant 0 : i32
    %c0_i32_14 = arith.constant 0 : i32
    %21 = tpu.memref_slice %arg7[%c2_i32_10, %c0_i32_13, %c0_i32_14] : memref<4x1x128xf32, #tpu.memory_space<vmem>> -> memref<1x1x128xf32, #tpu.memory_space<vmem>>
    %22 = tpu.memref_squeeze %21 : memref<1x1x128xf32, #tpu.memory_space<vmem>> -> memref<1x128xf32, #tpu.memory_space<vmem>>
    %23 = tpu.memref_slice %arg8[%c2_i32_11] : memref<4x!tpu.dma_semaphore, #tpu.memory_space<semaphore_mem>> -> memref<1x!tpu.dma_semaphore, #tpu.memory_space<semaphore_mem>>
    %24 = tpu.memref_squeeze %23 : memref<1x!tpu.dma_semaphore, #tpu.memory_space<semaphore_mem>> -> memref<!tpu.dma_semaphore, #tpu.memory_space<semaphore_mem>>
    tpu.enqueue_dma source(%20 : memref<1x128xf32, #tpu.memory_space<any>>) target(%22 : memref<1x128xf32, #tpu.memory_space<vmem>>) target_semaphore(%24 : memref<!tpu.dma_semaphore, #tpu.memory_space<semaphore_mem>>)
    %cst = arith.constant 0.000000e+00 : f32
    %25 = vector.broadcast %cst : f32 to vector<1x128xf32>
    %c0_i32_15 = arith.constant 0 : i32
    %c0_i32_16 = arith.constant 0 : i32
    %c0_i32_17 = arith.constant 0 : i32
    %c0_i32_18 = arith.constant 0 : i32
    %26 = tpu.memref_slice %arg5[%c0_i32_17, %c0_i32_18] : memref<512x128xf32, #tpu.memory_space<any>> -> memref<1x128xf32, #tpu.memory_space<any>>
    %c0_i32_19 = arith.constant 0 : i32
    %c0_i32_20 = arith.constant 0 : i32
    %27 = tpu.memref_slice %arg7[%c0_i32_15, %c0_i32_19, %c0_i32_20] : memref<4x1x128xf32, #tpu.memory_space<vmem>> -> memref<1x1x128xf32, #tpu.memory_space<vmem>>
    %28 = tpu.memref_squeeze %27 : memref<1x1x128xf32, #tpu.memory_space<vmem>> -> memref<1x128xf32, #tpu.memory_space<vmem>>
    %29 = tpu.memref_slice %arg8[%c0_i32_16] : memref<4x!tpu.dma_semaphore, #tpu.memory_space<semaphore_mem>> -> memref<1x!tpu.dma_semaphore, #tpu.memory_space<semaphore_mem>>
    %30 = tpu.memref_squeeze %29 : memref<1x!tpu.dma_semaphore, #tpu.memory_space<semaphore_mem>> -> memref<!tpu.dma_semaphore, #tpu.memory_space<semaphore_mem>>
    tpu.wait_dma2 semaphore(%30 : memref<!tpu.dma_semaphore, #tpu.memory_space<semaphore_mem>>) src(%26 : memref<1x128xf32, #tpu.memory_space<any>>) dst(%28 : memref<1x128xf32, #tpu.memory_space<vmem>>)
    %c3_i32 = arith.constant 3 : i32
    %31 = arith.addi %0, %c3_i32 : i32
    %32 = arith.index_cast %31 : i32 to index
    %33 = memref.load %arg1[%32] : memref<64xi32, #tpu.memory_space<smem>>
    %c3_i32_21 = arith.constant 3 : i32
    %c3_i32_22 = arith.constant 3 : i32
    %c0_i32_23 = arith.constant 0 : i32
    %34 = tpu.memref_slice %arg5[%33, %c0_i32_23] : memref<512x128xf32, #tpu.memory_space<any>> -> memref<1x128xf32, #tpu.memory_space<any>>
    %c0_i32_24 = arith.constant 0 : i32
    %c0_i32_25 = arith.constant 0 : i32
    %35 = tpu.memref_slice %arg7[%c3_i32_21, %c0_i32_24, %c0_i32_25] : memref<4x1x128xf32, #tpu.memory_space<vmem>> -> memref<1x1x128xf32, #tpu.memory_space<vmem>>
    %36 = tpu.memref_squeeze %35 : memref<1x1x128xf32, #tpu.memory_space<vmem>> -> memref<1x128xf32, #tpu.memory_space<vmem>>
    %37 = tpu.memref_slice %arg8[%c3_i32_22] : memref<4x!tpu.dma_semaphore, #tpu.memory_space<semaphore_mem>> -> memref<1x!tpu.dma_semaphore, #tpu.memory_space<semaphore_mem>>
    %38 = tpu.memref_squeeze %37 : memref<1x!tpu.dma_semaphore, #tpu.memory_space<semaphore_mem>> -> memref<!tpu.dma_semaphore, #tpu.memory_space<semaphore_mem>>
    tpu.enqueue_dma source(%34 : memref<1x128xf32, #tpu.memory_space<any>>) target(%36 : memref<1x128xf32, #tpu.memory_space<vmem>>) target_semaphore(%38 : memref<!tpu.dma_semaphore, #tpu.memory_space<semaphore_mem>>)
    %c0 = arith.constant 0 : index
    %c0_26 = arith.constant 0 : index
    %c0_27 = arith.constant 0 : index
    %39 = vector.load %arg7[%c0, %c0_26, %c0_27] : memref<4x1x128xf32, #tpu.memory_space<vmem>>, vector<1x1x128xf32>
    %40 = vector.shape_cast %39 : vector<1x1x128xf32> to vector<1x128xf32>
    %41 = arith.addf %25, %40 : vector<1x128xf32>
    %c1_i32_28 = arith.constant 1 : i32
    %c1_i32_29 = arith.constant 1 : i32
    %c0_i32_30 = arith.constant 0 : i32
    %c0_i32_31 = arith.constant 0 : i32
    %42 = tpu.memref_slice %arg5[%c0_i32_30, %c0_i32_31] : memref<512x128xf32, #tpu.memory_space<any>> -> memref<1x128xf32, #tpu.memory_space<any>>
    %c0_i32_32 = arith.constant 0 : i32
    %c0_i32_33 = arith.constant 0 : i32
    %43 = tpu.memref_slice %arg7[%c1_i32_28, %c0_i32_32, %c0_i32_33] : memref<4x1x128xf32, #tpu.memory_space<vmem>> -> memref<1x1x128xf32, #tpu.memory_space<vmem>>
    %44 = tpu.memref_squeeze %43 : memref<1x1x128xf32, #tpu.memory_space<vmem>> -> memref<1x128xf32, #tpu.memory_space<vmem>>
    %45 = tpu.memref_slice %arg8[%c1_i32_29] : memref<4x!tpu.dma_semaphore, #tpu.memory_space<semaphore_mem>> -> memref<1x!tpu.dma_semaphore, #tpu.memory_space<semaphore_mem>>
    %46 = tpu.memref_squeeze %45 : memref<1x!tpu.dma_semaphore, #tpu.memory_space<semaphore_mem>> -> memref<!tpu.dma_semaphore, #tpu.memory_space<semaphore_mem>>
    tpu.wait_dma2 semaphore(%46 : memref<!tpu.dma_semaphore, #tpu.memory_space<semaphore_mem>>) src(%42 : memref<1x128xf32, #tpu.memory_space<any>>) dst(%44 : memref<1x128xf32, #tpu.memory_space<vmem>>)
    %c4_i32 = arith.constant 4 : i32
    %47 = arith.addi %0, %c4_i32 : i32
    %48 = arith.index_cast %47 : i32 to index
    %49 = memref.load %arg1[%48] : memref<64xi32, #tpu.memory_space<smem>>
    %c0_i32_34 = arith.constant 0 : i32
    %c0_i32_35 = arith.constant 0 : i32
    %c0_i32_36 = arith.constant 0 : i32
    %50 = tpu.memref_slice %arg5[%49, %c0_i32_36] : memref<512x128xf32, #tpu.memory_space<any>> -> memref<1x128xf32, #tpu.memory_space<any>>
    %c0_i32_37 = arith.constant 0 : i32
    %c0_i32_38 = arith.constant 0 : i32
    %51 = tpu.memref_slice %arg7[%c0_i32_34, %c0_i32_37, %c0_i32_38] : memref<4x1x128xf32, #tpu.memory_space<vmem>> -> memref<1x1x128xf32, #tpu.memory_space<vmem>>
    %52 = tpu.memref_squeeze %51 : memref<1x1x128xf32, #tpu.memory_space<vmem>> -> memref<1x128xf32, #tpu.memory_space<vmem>>
    %53 = tpu.memref_slice %arg8[%c0_i32_35] : memref<4x!tpu.dma_semaphore, #tpu.memory_space<semaphore_mem>> -> memref<1x!tpu.dma_semaphore, #tpu.memory_space<semaphore_mem>>
    %54 = tpu.memref_squeeze %53 : memref<1x!tpu.dma_semaphore, #tpu.memory_space<semaphore_mem>> -> memref<!tpu.dma_semaphore, #tpu.memory_space<semaphore_mem>>
    tpu.enqueue_dma source(%50 : memref<1x128xf32, #tpu.memory_space<any>>) target(%52 : memref<1x128xf32, #tpu.memory_space<vmem>>) target_semaphore(%54 : memref<!tpu.dma_semaphore, #tpu.memory_space<semaphore_mem>>)
    %c1 = arith.constant 1 : index
    %c0_39 = arith.constant 0 : index
    %c0_40 = arith.constant 0 : index
    %55 = vector.load %arg7[%c1, %c0_39, %c0_40] : memref<4x1x128xf32, #tpu.memory_space<vmem>>, vector<1x1x128xf32>
    %56 = vector.shape_cast %55 : vector<1x1x128xf32> to vector<1x128xf32>
    %57 = arith.addf %41, %56 : vector<1x128xf32>
    %c2_i32_41 = arith.constant 2 : i32
    %c2_i32_42 = arith.constant 2 : i32
    %c0_i32_43 = arith.constant 0 : i32
    %c0_i32_44 = arith.constant 0 : i32
    %58 = tpu.memref_slice %arg5[%c0_i32_43, %c0_i32_44] : memref<512x128xf32, #tpu.memory_space<any>> -> memref<1x128xf32, #tpu.memory_space<any>>
    %c0_i32_45 = arith.constant 0 : i32
    %c0_i32_46 = arith.constant 0 : i32
    %59 = tpu.memref_slice %arg7[%c2_i32_41, %c0_i32_45, %c0_i32_46] : memref<4x1x128xf32, #tpu.memory_space<vmem>> -> memref<1x1x128xf32, #tpu.memory_space<vmem>>
    %60 = tpu.memref_squeeze %59 : memref<1x1x128xf32, #tpu.memory_space<vmem>> -> memref<1x128xf32, #tpu.memory_space<vmem>>
    %61 = tpu.memref_slice %arg8[%c2_i32_42] : memref<4x!tpu.dma_semaphore, #tpu.memory_space<semaphore_mem>> -> memref<1x!tpu.dma_semaphore, #tpu.memory_space<semaphore_mem>>
    %62 = tpu.memref_squeeze %61 : memref<1x!tpu.dma_semaphore, #tpu.memory_space<semaphore_mem>> -> memref<!tpu.dma_semaphore, #tpu.memory_space<semaphore_mem>>
    tpu.wait_dma2 semaphore(%62 : memref<!tpu.dma_semaphore, #tpu.memory_space<semaphore_mem>>) src(%58 : memref<1x128xf32, #tpu.memory_space<any>>) dst(%60 : memref<1x128xf32, #tpu.memory_space<vmem>>)
    %c5_i32 = arith.constant 5 : i32
    %63 = arith.addi %0, %c5_i32 : i32
    %64 = arith.index_cast %63 : i32 to index
    %65 = memref.load %arg1[%64] : memref<64xi32, #tpu.memory_space<smem>>
    %c1_i32_47 = arith.constant 1 : i32
    %c1_i32_48 = arith.constant 1 : i32
    %c0_i32_49 = arith.constant 0 : i32
    %66 = tpu.memref_slice %arg5[%65, %c0_i32_49] : memref<512x128xf32, #tpu.memory_space<any>> -> memref<1x128xf32, #tpu.memory_space<any>>
    %c0_i32_50 = arith.constant 0 : i32
    %c0_i32_51 = arith.constant 0 : i32
    %67 = tpu.memref_slice %arg7[%c1_i32_47, %c0_i32_50, %c0_i32_51] : memref<4x1x128xf32, #tpu.memory_space<vmem>> -> memref<1x1x128xf32, #tpu.memory_space<vmem>>
    %68 = tpu.memref_squeeze %67 : memref<1x1x128xf32, #tpu.memory_space<vmem>> -> memref<1x128xf32, #tpu.memory_space<vmem>>
    %69 = tpu.memref_slice %arg8[%c1_i32_48] : memref<4x!tpu.dma_semaphore, #tpu.memory_space<semaphore_mem>> -> memref<1x!tpu.dma_semaphore, #tpu.memory_space<semaphore_mem>>
    %70 = tpu.memref_squeeze %69 : memref<1x!tpu.dma_semaphore, #tpu.memory_space<semaphore_mem>> -> memref<!tpu.dma_semaphore, #tpu.memory_space<semaphore_mem>>
    tpu.enqueue_dma source(%66 : memref<1x128xf32, #tpu.memory_space<any>>) target(%68 : memref<1x128xf32, #tpu.memory_space<vmem>>) target_semaphore(%70 : memref<!tpu.dma_semaphore, #tpu.memory_space<semaphore_mem>>)
    %c2 = arith.constant 2 : index
    %c0_52 = arith.constant 0 : index
    %c0_53 = arith.constant 0 : index
    %71 = vector.load %arg7[%c2, %c0_52, %c0_53] : memref<4x1x128xf32, #tpu.memory_space<vmem>>, vector<1x1x128xf32>
    %72 = vector.shape_cast %71 : vector<1x1x128xf32> to vector<1x128xf32>
    %73 = arith.addf %57, %72 : vector<1x128xf32>
    %c3_i32_54 = arith.constant 3 : i32
    %c3_i32_55 = arith.constant 3 : i32
    %c0_i32_56 = arith.constant 0 : i32
    %c0_i32_57 = arith.constant 0 : i32
    %74 = tpu.memref_slice %arg5[%c0_i32_56, %c0_i32_57] : memref<512x128xf32, #tpu.memory_space<any>> -> memref<1x128xf32, #tpu.memory_space<any>>
    %c0_i32_58 = arith.constant 0 : i32
    %c0_i32_59 = arith.constant 0 : i32
    %75 = tpu.memref_slice %arg7[%c3_i32_54, %c0_i32_58, %c0_i32_59] : memref<4x1x128xf32, #tpu.memory_space<vmem>> -> memref<1x1x128xf32, #tpu.memory_space<vmem>>
    %76 = tpu.memref_squeeze %75 : memref<1x1x128xf32, #tpu.memory_space<vmem>> -> memref<1x128xf32, #tpu.memory_space<vmem>>
    %77 = tpu.memref_slice %arg8[%c3_i32_55] : memref<4x!tpu.dma_semaphore, #tpu.memory_space<semaphore_mem>> -> memref<1x!tpu.dma_semaphore, #tpu.memory_space<semaphore_mem>>
    %78 = tpu.memref_squeeze %77 : memref<1x!tpu.dma_semaphore, #tpu.memory_space<semaphore_mem>> -> memref<!tpu.dma_semaphore, #tpu.memory_space<semaphore_mem>>
    tpu.wait_dma2 semaphore(%78 : memref<!tpu.dma_semaphore, #tpu.memory_space<semaphore_mem>>) src(%74 : memref<1x128xf32, #tpu.memory_space<any>>) dst(%76 : memref<1x128xf32, #tpu.memory_space<vmem>>)
    %c6_i32 = arith.constant 6 : i32
    %79 = arith.addi %0, %c6_i32 : i32
    %80 = arith.index_cast %79 : i32 to index
    %81 = memref.load %arg1[%80] : memref<64xi32, #tpu.memory_space<smem>>
    %c2_i32_60 = arith.constant 2 : i32
    %c2_i32_61 = arith.constant 2 : i32
    %c0_i32_62 = arith.constant 0 : i32
    %82 = tpu.memref_slice %arg5[%81, %c0_i32_62] : memref<512x128xf32, #tpu.memory_space<any>> -> memref<1x128xf32, #tpu.memory_space<any>>
    %c0_i32_63 = arith.constant 0 : i32
    %c0_i32_64 = arith.constant 0 : i32
    %83 = tpu.memref_slice %arg7[%c2_i32_60, %c0_i32_63, %c0_i32_64] : memref<4x1x128xf32, #tpu.memory_space<vmem>> -> memref<1x1x128xf32, #tpu.memory_space<vmem>>
    %84 = tpu.memref_squeeze %83 : memref<1x1x128xf32, #tpu.memory_space<vmem>> -> memref<1x128xf32, #tpu.memory_space<vmem>>
    %85 = tpu.memref_slice %arg8[%c2_i32_61] : memref<4x!tpu.dma_semaphore, #tpu.memory_space<semaphore_mem>> -> memref<1x!tpu.dma_semaphore, #tpu.memory_space<semaphore_mem>>
    %86 = tpu.memref_squeeze %85 : memref<1x!tpu.dma_semaphore, #tpu.memory_space<semaphore_mem>> -> memref<!tpu.dma_semaphore, #tpu.memory_space<semaphore_mem>>
    tpu.enqueue_dma source(%82 : memref<1x128xf32, #tpu.memory_space<any>>) target(%84 : memref<1x128xf32, #tpu.memory_space<vmem>>) target_semaphore(%86 : memref<!tpu.dma_semaphore, #tpu.memory_space<semaphore_mem>>)
    %c3 = arith.constant 3 : index
    %c0_65 = arith.constant 0 : index
    %c0_66 = arith.constant 0 : index
    %87 = vector.load %arg7[%c3, %c0_65, %c0_66] : memref<4x1x128xf32, #tpu.memory_space<vmem>>, vector<1x1x128xf32>
    %88 = vector.shape_cast %87 : vector<1x1x128xf32> to vector<1x128xf32>
    %89 = arith.addf %73, %88 : vector<1x128xf32>
    %c0_i32_67 = arith.constant 0 : i32
    %c0_i32_68 = arith.constant 0 : i32
    %c0_i32_69 = arith.constant 0 : i32
    %c0_i32_70 = arith.constant 0 : i32
    %90 = tpu.memref_slice %arg5[%c0_i32_69, %c0_i32_70] : memref<512x128xf32, #tpu.memory_space<any>> -> memref<1x128xf32, #tpu.memory_space<any>>
    %c0_i32_71 = arith.constant 0 : i32
    %c0_i32_72 = arith.constant 0 : i32
    %91 = tpu.memref_slice %arg7[%c0_i32_67, %c0_i32_71, %c0_i32_72] : memref<4x1x128xf32, #tpu.memory_space<vmem>> -> memref<1x1x128xf32, #tpu.memory_space<vmem>>
    %92 = tpu.memref_squeeze %91 : memref<1x1x128xf32, #tpu.memory_space<vmem>> -> memref<1x128xf32, #tpu.memory_space<vmem>>
    %93 = tpu.memref_slice %arg8[%c0_i32_68] : memref<4x!tpu.dma_semaphore, #tpu.memory_space<semaphore_mem>> -> memref<1x!tpu.dma_semaphore, #tpu.memory_space<semaphore_mem>>
    %94 = tpu.memref_squeeze %93 : memref<1x!tpu.dma_semaphore, #tpu.memory_space<semaphore_mem>> -> memref<!tpu.dma_semaphore, #tpu.memory_space<semaphore_mem>>
    tpu.wait_dma2 semaphore(%94 : memref<!tpu.dma_semaphore, #tpu.memory_space<semaphore_mem>>) src(%90 : memref<1x128xf32, #tpu.memory_space<any>>) dst(%92 : memref<1x128xf32, #tpu.memory_space<vmem>>)
    %c7_i32 = arith.constant 7 : i32
    %95 = arith.addi %0, %c7_i32 : i32
    %96 = arith.index_cast %95 : i32 to index
    %97 = memref.load %arg1[%96] : memref<64xi32, #tpu.memory_space<smem>>
    %c3_i32_73 = arith.constant 3 : i32
    %c3_i32_74 = arith.constant 3 : i32
    %c0_i32_75 = arith.constant 0 : i32
    %98 = tpu.memref_slice %arg5[%97, %c0_i32_75] : memref<512x128xf32, #tpu.memory_space<any>> -> memref<1x128xf32, #tpu.memory_space<any>>
    %c0_i32_76 = arith.constant 0 : i32
    %c0_i32_77 = arith.constant 0 : i32
    %99 = tpu.memref_slice %arg7[%c3_i32_73, %c0_i32_76, %c0_i32_77] : memref<4x1x128xf32, #tpu.memory_space<vmem>> -> memref<1x1x128xf32, #tpu.memory_space<vmem>>
    %100 = tpu.memref_squeeze %99 : memref<1x1x128xf32, #tpu.memory_space<vmem>> -> memref<1x128xf32, #tpu.memory_space<vmem>>
    %101 = tpu.memref_slice %arg8[%c3_i32_74] : memref<4x!tpu.dma_semaphore, #tpu.memory_space<semaphore_mem>> -> memref<1x!tpu.dma_semaphore, #tpu.memory_space<semaphore_mem>>
    %102 = tpu.memref_squeeze %101 : memref<1x!tpu.dma_semaphore, #tpu.memory_space<semaphore_mem>> -> memref<!tpu.dma_semaphore, #tpu.memory_space<semaphore_mem>>
    tpu.enqueue_dma source(%98 : memref<1x128xf32, #tpu.memory_space<any>>) target(%100 : memref<1x128xf32, #tpu.memory_space<vmem>>) target_semaphore(%102 : memref<!tpu.dma_semaphore, #tpu.memory_space<semaphore_mem>>)
    %c0_78 = arith.constant 0 : index
    %c0_79 = arith.constant 0 : index
    %c0_80 = arith.constant 0 : index
    %103 = vector.load %arg7[%c0_78, %c0_79, %c0_80] : memref<4x1x128xf32, #tpu.memory_space<vmem>>, vector<1x1x128xf32>
    %104 = vector.shape_cast %103 : vector<1x1x128xf32> to vector<1x128xf32>
    %105 = arith.addf %89, %104 : vector<1x128xf32>
    %c1_i32_81 = arith.constant 1 : i32
    %c1_i32_82 = arith.constant 1 : i32
    %c0_i32_83 = arith.constant 0 : i32
    %c0_i32_84 = arith.constant 0 : i32
    %106 = tpu.memref_slice %arg5[%c0_i32_83, %c0_i32_84] : memref<512x128xf32, #tpu.memory_space<any>> -> memref<1x128xf32, #tpu.memory_space<any>>
    %c0_i32_85 = arith.constant 0 : i32
    %c0_i32_86 = arith.constant 0 : i32
    %107 = tpu.memref_slice %arg7[%c1_i32_81, %c0_i32_85, %c0_i32_86] : memref<4x1x128xf32, #tpu.memory_space<vmem>> -> memref<1x1x128xf32, #tpu.memory_space<vmem>>
    %108 = tpu.memref_squeeze %107 : memref<1x1x128xf32, #tpu.memory_space<vmem>> -> memref<1x128xf32, #tpu.memory_space<vmem>>
    %109 = tpu.memref_slice %arg8[%c1_i32_82] : memref<4x!tpu.dma_semaphore, #tpu.memory_space<semaphore_mem>> -> memref<1x!tpu.dma_semaphore, #tpu.memory_space<semaphore_mem>>
    %110 = tpu.memref_squeeze %109 : memref<1x!tpu.dma_semaphore, #tpu.memory_space<semaphore_mem>> -> memref<!tpu.dma_semaphore, #tpu.memory_space<semaphore_mem>>
    tpu.wait_dma2 semaphore(%110 : memref<!tpu.dma_semaphore, #tpu.memory_space<semaphore_mem>>) src(%106 : memref<1x128xf32, #tpu.memory_space<any>>) dst(%108 : memref<1x128xf32, #tpu.memory_space<vmem>>)
    %c8_i32 = arith.constant 8 : i32
    %111 = arith.addi %0, %c8_i32 : i32
    %112 = arith.index_cast %111 : i32 to index
    %113 = memref.load %arg1[%112] : memref<64xi32, #tpu.memory_space<smem>>
    %c0_i32_87 = arith.constant 0 : i32
    %c0_i32_88 = arith.constant 0 : i32
    %c0_i32_89 = arith.constant 0 : i32
    %114 = tpu.memref_slice %arg5[%113, %c0_i32_89] : memref<512x128xf32, #tpu.memory_space<any>> -> memref<1x128xf32, #tpu.memory_space<any>>
    %c0_i32_90 = arith.constant 0 : i32
    %c0_i32_91 = arith.constant 0 : i32
    %115 = tpu.memref_slice %arg7[%c0_i32_87, %c0_i32_90, %c0_i32_91] : memref<4x1x128xf32, #tpu.memory_space<vmem>> -> memref<1x1x128xf32, #tpu.memory_space<vmem>>
    %116 = tpu.memref_squeeze %115 : memref<1x1x128xf32, #tpu.memory_space<vmem>> -> memref<1x128xf32, #tpu.memory_space<vmem>>
    %117 = tpu.memref_slice %arg8[%c0_i32_88] : memref<4x!tpu.dma_semaphore, #tpu.memory_space<semaphore_mem>> -> memref<1x!tpu.dma_semaphore, #tpu.memory_space<semaphore_mem>>
    %118 = tpu.memref_squeeze %117 : memref<1x!tpu.dma_semaphore, #tpu.memory_space<semaphore_mem>> -> memref<!tpu.dma_semaphore, #tpu.memory_space<semaphore_mem>>
    tpu.enqueue_dma source(%114 : memref<1x128xf32, #tpu.memory_space<any>>) target(%116 : memref<1x128xf32, #tpu.memory_space<vmem>>) target_semaphore(%118 : memref<!tpu.dma_semaphore, #tpu.memory_space<semaphore_mem>>)
    %c1_92 = arith.constant 1 : index
    %c0_93 = arith.constant 0 : index
    %c0_94 = arith.constant 0 : index
    %119 = vector.load %arg7[%c1_92, %c0_93, %c0_94] : memref<4x1x128xf32, #tpu.memory_space<vmem>>, vector<1x1x128xf32>
    %120 = vector.shape_cast %119 : vector<1x1x128xf32> to vector<1x128xf32>
    %121 = arith.addf %105, %120 : vector<1x128xf32>
    %c2_i32_95 = arith.constant 2 : i32
    %c2_i32_96 = arith.constant 2 : i32
    %c0_i32_97 = arith.constant 0 : i32
    %c0_i32_98 = arith.constant 0 : i32
    %122 = tpu.memref_slice %arg5[%c0_i32_97, %c0_i32_98] : memref<512x128xf32, #tpu.memory_space<any>> -> memref<1x128xf32, #tpu.memory_space<any>>
    %c0_i32_99 = arith.constant 0 : i32
    %c0_i32_100 = arith.constant 0 : i32
    %123 = tpu.memref_slice %arg7[%c2_i32_95, %c0_i32_99, %c0_i32_100] : memref<4x1x128xf32, #tpu.memory_space<vmem>> -> memref<1x1x128xf32, #tpu.memory_space<vmem>>
    %124 = tpu.memref_squeeze %123 : memref<1x1x128xf32, #tpu.memory_space<vmem>> -> memref<1x128xf32, #tpu.memory_space<vmem>>
    %125 = tpu.memref_slice %arg8[%c2_i32_96] : memref<4x!tpu.dma_semaphore, #tpu.memory_space<semaphore_mem>> -> memref<1x!tpu.dma_semaphore, #tpu.memory_space<semaphore_mem>>
    %126 = tpu.memref_squeeze %125 : memref<1x!tpu.dma_semaphore, #tpu.memory_space<semaphore_mem>> -> memref<!tpu.dma_semaphore, #tpu.memory_space<semaphore_mem>>
    tpu.wait_dma2 semaphore(%126 : memref<!tpu.dma_semaphore, #tpu.memory_space<semaphore_mem>>) src(%122 : memref<1x128xf32, #tpu.memory_space<any>>) dst(%124 : memref<1x128xf32, #tpu.memory_space<vmem>>)
    %c9_i32 = arith.constant 9 : i32
    %127 = arith.addi %0, %c9_i32 : i32
    %128 = arith.index_cast %127 : i32 to index
    %129 = memref.load %arg1[%128] : memref<64xi32, #tpu.memory_space<smem>>
    %c1_i32_101 = arith.constant 1 : i32
    %c1_i32_102 = arith.constant 1 : i32
    %c0_i32_103 = arith.constant 0 : i32
    %130 = tpu.memref_slice %arg5[%129, %c0_i32_103] : memref<512x128xf32, #tpu.memory_space<any>> -> memref<1x128xf32, #tpu.memory_space<any>>
    %c0_i32_104 = arith.constant 0 : i32
    %c0_i32_105 = arith.constant 0 : i32
    %131 = tpu.memref_slice %arg7[%c1_i32_101, %c0_i32_104, %c0_i32_105] : memref<4x1x128xf32, #tpu.memory_space<vmem>> -> memref<1x1x128xf32, #tpu.memory_space<vmem>>
    %132 = tpu.memref_squeeze %131 : memref<1x1x128xf32, #tpu.memory_space<vmem>> -> memref<1x128xf32, #tpu.memory_space<vmem>>
    %133 = tpu.memref_slice %arg8[%c1_i32_102] : memref<4x!tpu.dma_semaphore, #tpu.memory_space<semaphore_mem>> -> memref<1x!tpu.dma_semaphore, #tpu.memory_space<semaphore_mem>>
    %134 = tpu.memref_squeeze %133 : memref<1x!tpu.dma_semaphore, #tpu.memory_space<semaphore_mem>> -> memref<!tpu.dma_semaphore, #tpu.memory_space<semaphore_mem>>
    tpu.enqueue_dma source(%130 : memref<1x128xf32, #tpu.memory_space<any>>) target(%132 : memref<1x128xf32, #tpu.memory_space<vmem>>) target_semaphore(%134 : memref<!tpu.dma_semaphore, #tpu.memory_space<semaphore_mem>>)
    %c2_106 = arith.constant 2 : index
    %c0_107 = arith.constant 0 : index
    %c0_108 = arith.constant 0 : index
    %135 = vector.load %arg7[%c2_106, %c0_107, %c0_108] : memref<4x1x128xf32, #tpu.memory_space<vmem>>, vector<1x1x128xf32>
    %136 = vector.shape_cast %135 : vector<1x1x128xf32> to vector<1x128xf32>
    %137 = arith.addf %121, %136 : vector<1x128xf32>
    %c3_i32_109 = arith.constant 3 : i32
    %c3_i32_110 = arith.constant 3 : i32
    %c0_i32_111 = arith.constant 0 : i32
    %c0_i32_112 = arith.constant 0 : i32
    %138 = tpu.memref_slice %arg5[%c0_i32_111, %c0_i32_112] : memref<512x128xf32, #tpu.memory_space<any>> -> memref<1x128xf32, #tpu.memory_space<any>>
    %c0_i32_113 = arith.constant 0 : i32
    %c0_i32_114 = arith.constant 0 : i32
    %139 = tpu.memref_slice %arg7[%c3_i32_109, %c0_i32_113, %c0_i32_114] : memref<4x1x128xf32, #tpu.memory_space<vmem>> -> memref<1x1x128xf32, #tpu.memory_space<vmem>>
    %140 = tpu.memref_squeeze %139 : memref<1x1x128xf32, #tpu.memory_space<vmem>> -> memref<1x128xf32, #tpu.memory_space<vmem>>
    %141 = tpu.memref_slice %arg8[%c3_i32_110] : memref<4x!tpu.dma_semaphore, #tpu.memory_space<semaphore_mem>> -> memref<1x!tpu.dma_semaphore, #tpu.memory_space<semaphore_mem>>
    %142 = tpu.memref_squeeze %141 : memref<1x!tpu.dma_semaphore, #tpu.memory_space<semaphore_mem>> -> memref<!tpu.dma_semaphore, #tpu.memory_space<semaphore_mem>>
    tpu.wait_dma2 semaphore(%142 : memref<!tpu.dma_semaphore, #tpu.memory_space<semaphore_mem>>) src(%138 : memref<1x128xf32, #tpu.memory_space<any>>) dst(%140 : memref<1x128xf32, #tpu.memory_space<vmem>>)
    %c10_i32 = arith.constant 10 : i32
    %143 = arith.addi %0, %c10_i32 : i32
    %144 = arith.index_cast %143 : i32 to index
    %145 = memref.load %arg1[%144] : memref<64xi32, #tpu.memory_space<smem>>
    %c2_i32_115 = arith.constant 2 : i32
    %c2_i32_116 = arith.constant 2 : i32
    %c0_i32_117 = arith.constant 0 : i32
    %146 = tpu.memref_slice %arg5[%145, %c0_i32_117] : memref<512x128xf32, #tpu.memory_space<any>> -> memref<1x128xf32, #tpu.memory_space<any>>
    %c0_i32_118 = arith.constant 0 : i32
    %c0_i32_119 = arith.constant 0 : i32
    %147 = tpu.memref_slice %arg7[%c2_i32_115, %c0_i32_118, %c0_i32_119] : memref<4x1x128xf32, #tpu.memory_space<vmem>> -> memref<1x1x128xf32, #tpu.memory_space<vmem>>
    %148 = tpu.memref_squeeze %147 : memref<1x1x128xf32, #tpu.memory_space<vmem>> -> memref<1x128xf32, #tpu.memory_space<vmem>>
    %149 = tpu.memref_slice %arg8[%c2_i32_116] : memref<4x!tpu.dma_semaphore, #tpu.memory_space<semaphore_mem>> -> memref<1x!tpu.dma_semaphore, #tpu.memory_space<semaphore_mem>>
    %150 = tpu.memref_squeeze %149 : memref<1x!tpu.dma_semaphore, #tpu.memory_space<semaphore_mem>> -> memref<!tpu.dma_semaphore, #tpu.memory_space<semaphore_mem>>
    tpu.enqueue_dma source(%146 : memref<1x128xf32, #tpu.memory_space<any>>) target(%148 : memref<1x128xf32, #tpu.memory_space<vmem>>) target_semaphore(%150 : memref<!tpu.dma_semaphore, #tpu.memory_space<semaphore_mem>>)
    %c3_120 = arith.constant 3 : index
    %c0_121 = arith.constant 0 : index
    %c0_122 = arith.constant 0 : index
    %151 = vector.load %arg7[%c3_120, %c0_121, %c0_122] : memref<4x1x128xf32, #tpu.memory_space<vmem>>, vector<1x1x128xf32>
    %152 = vector.shape_cast %151 : vector<1x1x128xf32> to vector<1x128xf32>
    %153 = arith.addf %137, %152 : vector<1x128xf32>
    %c0_123 = arith.constant 0 : index
    %c0_124 = arith.constant 0 : index
    %154 = vector.load %arg9[%c0_123, %c0_124] : memref<8x128xf32, #tpu.memory_space<vmem>>, vector<1x128xf32>
    tpu.vector_store %arg9[%c0_123, %c0_124], %153 {strides = array<i32>} : memref<8x128xf32, #tpu.memory_space<vmem>>, vector<1x128xf32>,
    %cst_125 = arith.constant 0.000000e+00 : f32
    %155 = vector.broadcast %cst_125 : f32 to vector<1x128xf32>
    %c0_i32_126 = arith.constant 0 : i32
    %c0_i32_127 = arith.constant 0 : i32
    %c0_i32_128 = arith.constant 0 : i32
    %c0_i32_129 = arith.constant 0 : i32
    %156 = tpu.memref_slice %arg5[%c0_i32_128, %c0_i32_129] : memref<512x128xf32, #tpu.memory_space<any>> -> memref<1x128xf32, #tpu.memory_space<any>>
    %c0_i32_130 = arith.constant 0 : i32
    %c0_i32_131 = arith.constant 0 : i32
    %157 = tpu.memref_slice %arg7[%c0_i32_126, %c0_i32_130, %c0_i32_131] : memref<4x1x128xf32, #tpu.memory_space<vmem>> -> memref<1x1x128xf32, #tpu.memory_space<vmem>>
    %158 = tpu.memref_squeeze %157 : memref<1x1x128xf32, #tpu.memory_space<vmem>> -> memref<1x128xf32, #tpu.memory_space<vmem>>
    %159 = tpu.memref_slice %arg8[%c0_i32_127] : memref<4x!tpu.dma_semaphore, #tpu.memory_space<semaphore_mem>> -> memref<1x!tpu.dma_semaphore, #tpu.memory_space<semaphore_mem>>
    %160 = tpu.memref_squeeze %159 : memref<1x!tpu.dma_semaphore, #tpu.memory_space<semaphore_mem>> -> memref<!tpu.dma_semaphore, #tpu.memory_space<semaphore_mem>>
    tpu.wait_dma2 semaphore(%160 : memref<!tpu.dma_semaphore, #tpu.memory_space<semaphore_mem>>) src(%156 : memref<1x128xf32, #tpu.memory_space<any>>) dst(%158 : memref<1x128xf32, #tpu.memory_space<vmem>>)
    %c11_i32 = arith.constant 11 : i32
    %161 = arith.addi %0, %c11_i32 : i32
    %162 = arith.index_cast %161 : i32 to index
    %163 = memref.load %arg1[%162] : memref<64xi32, #tpu.memory_space<smem>>
    %c3_i32_132 = arith.constant 3 : i32
    %c3_i32_133 = arith.constant 3 : i32
    %c0_i32_134 = arith.constant 0 : i32
    %164 = tpu.memref_slice %arg5[%163, %c0_i32_134] : memref<512x128xf32, #tpu.memory_space<any>> -> memref<1x128xf32, #tpu.memory_space<any>>
    %c0_i32_135 = arith.constant 0 : i32
    %c0_i32_136 = arith.constant 0 : i32
    %165 = tpu.memref_slice %arg7[%c3_i32_132, %c0_i32_135, %c0_i32_136] : memref<4x1x128xf32, #tpu.memory_space<vmem>> -> memref<1x1x128xf32, #tpu.memory_space<vmem>>
    %166 = tpu.memref_squeeze %165 : memref<1x1x128xf32, #tpu.memory_space<vmem>> -> memref<1x128xf32, #tpu.memory_space<vmem>>
    %167 = tpu.memref_slice %arg8[%c3_i32_133] : memref<4x!tpu.dma_semaphore, #tpu.memory_space<semaphore_mem>> -> memref<1x!tpu.dma_semaphore, #tpu.memory_space<semaphore_mem>>
    %168 = tpu.memref_squeeze %167 : memref<1x!tpu.dma_semaphore, #tpu.memory_space<semaphore_mem>> -> memref<!tpu.dma_semaphore, #tpu.memory_space<semaphore_mem>>
    tpu.enqueue_dma source(%164 : memref<1x128xf32, #tpu.memory_space<any>>) target(%166 : memref<1x128xf32, #tpu.memory_space<vmem>>) target_semaphore(%168 : memref<!tpu.dma_semaphore, #tpu.memory_space<semaphore_mem>>)
    %c0_137 = arith.constant 0 : index
    %c0_138 = arith.constant 0 : index
    %c0_139 = arith.constant 0 : index
    %169 = vector.load %arg7[%c0_137, %c0_138, %c0_139] : memref<4x1x128xf32, #tpu.memory_space<vmem>>, vector<1x1x128xf32>
    %170 = vector.shape_cast %169 : vector<1x1x128xf32> to vector<1x128xf32>
    %171 = arith.addf %155, %170 : vector<1x128xf32>
    %c1_i32_140 = arith.constant 1 : i32
    %c1_i32_141 = arith.constant 1 : i32
    %c0_i32_142 = arith.constant 0 : i32
    %c0_i32_143 = arith.constant 0 : i32
    %172 = tpu.memref_slice %arg5[%c0_i32_142, %c0_i32_143] : memref<512x128xf32, #tpu.memory_space<any>> -> memref<1x128xf32, #tpu.memory_space<any>>
    %c0_i32_144 = arith.constant 0 : i32
    %c0_i32_145 = arith.constant 0 : i32
    %173 = tpu.memref_slice %arg7[%c1_i32_140, %c0_i32_144, %c0_i32_145] : memref<4x1x128xf32, #tpu.memory_space<vmem>> -> memref<1x1x128xf32, #tpu.memory_space<vmem>>
    %174 = tpu.memref_squeeze %173 : memref<1x1x128xf32, #tpu.memory_space<vmem>> -> memref<1x128xf32, #tpu.memory_space<vmem>>
    %175 = tpu.memref_slice %arg8[%c1_i32_141] : memref<4x!tpu.dma_semaphore, #tpu.memory_space<semaphore_mem>> -> memref<1x!tpu.dma_semaphore, #tpu.memory_space<semaphore_mem>>
    %176 = tpu.memref_squeeze %175 : memref<1x!tpu.dma_semaphore, #tpu.memory_space<semaphore_mem>> -> memref<!tpu.dma_semaphore, #tpu.memory_space<semaphore_mem>>
    tpu.wait_dma2 semaphore(%176 : memref<!tpu.dma_semaphore, #tpu.memory_space<semaphore_mem>>) src(%172 : memref<1x128xf32, #tpu.memory_space<any>>) dst(%174 : memref<1x128xf32, #tpu.memory_space<vmem>>)
    %c12_i32 = arith.constant 12 : i32
    %177 = arith.addi %0, %c12_i32 : i32
    %178 = arith.index_cast %177 : i32 to index
    %179 = memref.load %arg1[%178] : memref<64xi32, #tpu.memory_space<smem>>
    %c0_i32_146 = arith.constant 0 : i32
    %c0_i32_147 = arith.constant 0 : i32
    %c0_i32_148 = arith.constant 0 : i32
    %180 = tpu.memref_slice %arg5[%179, %c0_i32_148] : memref<512x128xf32, #tpu.memory_space<any>> -> memref<1x128xf32, #tpu.memory_space<any>>
    %c0_i32_149 = arith.constant 0 : i32
    %c0_i32_150 = arith.constant 0 : i32
    %181 = tpu.memref_slice %arg7[%c0_i32_146, %c0_i32_149, %c0_i32_150] : memref<4x1x128xf32, #tpu.memory_space<vmem>> -> memref<1x1x128xf32, #tpu.memory_space<vmem>>
    %182 = tpu.memref_squeeze %181 : memref<1x1x128xf32, #tpu.memory_space<vmem>> -> memref<1x128xf32, #tpu.memory_space<vmem>>
    %183 = tpu.memref_slice %arg8[%c0_i32_147] : memref<4x!tpu.dma_semaphore, #tpu.memory_space<semaphore_mem>> -> memref<1x!tpu.dma_semaphore, #tpu.memory_space<semaphore_mem>>
    %184 = tpu.memref_squeeze %183 : memref<1x!tpu.dma_semaphore, #tpu.memory_space<semaphore_mem>> -> memref<!tpu.dma_semaphore, #tpu.memory_space<semaphore_mem>>
    tpu.enqueue_dma source(%180 : memref<1x128xf32, #tpu.memory_space<any>>) target(%182 : memref<1x128xf32, #tpu.memory_space<vmem>>) target_semaphore(%184 : memref<!tpu.dma_semaphore, #tpu.memory_space<semaphore_mem>>)
    %c1_151 = arith.constant 1 : index
    %c0_152 = arith.constant 0 : index
    %c0_153 = arith.constant 0 : index
    %185 = vector.load %arg7[%c1_151, %c0_152, %c0_153] : memref<4x1x128xf32, #tpu.memory_space<vmem>>, vector<1x1x128xf32>
    %186 = vector.shape_cast %185 : vector<1x1x128xf32> to vector<1x128xf32>
    %187 = arith.addf %171, %186 : vector<1x128xf32>
    %c2_i32_154 = arith.constant 2 : i32
    %c2_i32_155 = arith.constant 2 : i32
    %c0_i32_156 = arith.constant 0 : i32
    %c0_i32_157 = arith.constant 0 : i32
    %188 = tpu.memref_slice %arg5[%c0_i32_156, %c0_i32_157] : memref<512x128xf32, #tpu.memory_space<any>> -> memref<1x128xf32, #tpu.memory_space<any>>
    %c0_i32_158 = arith.constant 0 : i32
    %c0_i32_159 = arith.constant 0 : i32
    %189 = tpu.memref_slice %arg7[%c2_i32_154, %c0_i32_158, %c0_i32_159] : memref<4x1x128xf32, #tpu.memory_space<vmem>> -> memref<1x1x128xf32, #tpu.memory_space<vmem>>
    %190 = tpu.memref_squeeze %189 : memref<1x1x128xf32, #tpu.memory_space<vmem>> -> memref<1x128xf32, #tpu.memory_space<vmem>>
    %191 = tpu.memref_slice %arg8[%c2_i32_155] : memref<4x!tpu.dma_semaphore, #tpu.memory_space<semaphore_mem>> -> memref<1x!tpu.dma_semaphore, #tpu.memory_space<semaphore_mem>>
    %192 = tpu.memref_squeeze %191 : memref<1x!tpu.dma_semaphore, #tpu.memory_space<semaphore_mem>> -> memref<!tpu.dma_semaphore, #tpu.memory_space<semaphore_mem>>
    tpu.wait_dma2 semaphore(%192 : memref<!tpu.dma_semaphore, #tpu.memory_space<semaphore_mem>>) src(%188 : memref<1x128xf32, #tpu.memory_space<any>>) dst(%190 : memref<1x128xf32, #tpu.memory_space<vmem>>)
    %c13_i32 = arith.constant 13 : i32
    %193 = arith.addi %0, %c13_i32 : i32
    %194 = arith.index_cast %193 : i32 to index
    %195 = memref.load %arg1[%194] : memref<64xi32, #tpu.memory_space<smem>>
    %c1_i32_160 = arith.constant 1 : i32
    %c1_i32_161 = arith.constant 1 : i32
    %c0_i32_162 = arith.constant 0 : i32
    %196 = tpu.memref_slice %arg5[%195, %c0_i32_162] : memref<512x128xf32, #tpu.memory_space<any>> -> memref<1x128xf32, #tpu.memory_space<any>>
    %c0_i32_163 = arith.constant 0 : i32
    %c0_i32_164 = arith.constant 0 : i32
    %197 = tpu.memref_slice %arg7[%c1_i32_160, %c0_i32_163, %c0_i32_164] : memref<4x1x128xf32, #tpu.memory_space<vmem>> -> memref<1x1x128xf32, #tpu.memory_space<vmem>>
    %198 = tpu.memref_squeeze %197 : memref<1x1x128xf32, #tpu.memory_space<vmem>> -> memref<1x128xf32, #tpu.memory_space<vmem>>
    %199 = tpu.memref_slice %arg8[%c1_i32_161] : memref<4x!tpu.dma_semaphore, #tpu.memory_space<semaphore_mem>> -> memref<1x!tpu.dma_semaphore, #tpu.memory_space<semaphore_mem>>
    %200 = tpu.memref_squeeze %199 : memref<1x!tpu.dma_semaphore, #tpu.memory_space<semaphore_mem>> -> memref<!tpu.dma_semaphore, #tpu.memory_space<semaphore_mem>>
    tpu.enqueue_dma source(%196 : memref<1x128xf32, #tpu.memory_space<any>>) target(%198 : memref<1x128xf32, #tpu.memory_space<vmem>>) target_semaphore(%200 : memref<!tpu.dma_semaphore, #tpu.memory_space<semaphore_mem>>)
    %c2_165 = arith.constant 2 : index
    %c0_166 = arith.constant 0 : index
    %c0_167 = arith.constant 0 : index
    %201 = vector.load %arg7[%c2_165, %c0_166, %c0_167] : memref<4x1x128xf32, #tpu.memory_space<vmem>>, vector<1x1x128xf32>
    %202 = vector.shape_cast %201 : vector<1x1x128xf32> to vector<1x128xf32>
    %203 = arith.addf %187, %202 : vector<1x128xf32>
    %c3_i32_168 = arith.constant 3 : i32
    %c3_i32_169 = arith.constant 3 : i32
    %c0_i32_170 = arith.constant 0 : i32
    %c0_i32_171 = arith.constant 0 : i32
    %204 = tpu.memref_slice %arg5[%c0_i32_170, %c0_i32_171] : memref<512x128xf32, #tpu.memory_space<any>> -> memref<1x128xf32, #tpu.memory_space<any>>
    %c0_i32_172 = arith.constant 0 : i32
    %c0_i32_173 = arith.constant 0 : i32
    %205 = tpu.memref_slice %arg7[%c3_i32_168, %c0_i32_172, %c0_i32_173] : memref<4x1x128xf32, #tpu.memory_space<vmem>> -> memref<1x1x128xf32, #tpu.memory_space<vmem>>
    %206 = tpu.memref_squeeze %205 : memref<1x1x128xf32, #tpu.memory_space<vmem>> -> memref<1x128xf32, #tpu.memory_space<vmem>>
    %207 = tpu.memref_slice %arg8[%c3_i32_169] : memref<4x!tpu.dma_semaphore, #tpu.memory_space<semaphore_mem>> -> memref<1x!tpu.dma_semaphore, #tpu.memory_space<semaphore_mem>>
    %208 = tpu.memref_squeeze %207 : memref<1x!tpu.dma_semaphore, #tpu.memory_space<semaphore_mem>> -> memref<!tpu.dma_semaphore, #tpu.memory_space<semaphore_mem>>
    tpu.wait_dma2 semaphore(%208 : memref<!tpu.dma_semaphore, #tpu.memory_space<semaphore_mem>>) src(%204 : memref<1x128xf32, #tpu.memory_space<any>>) dst(%206 : memref<1x128xf32, #tpu.memory_space<vmem>>)
    %c14_i32 = arith.constant 14 : i32
    %209 = arith.addi %0, %c14_i32 : i32
    %210 = arith.index_cast %209 : i32 to index
    %211 = memref.load %arg1[%210] : memref<64xi32, #tpu.memory_space<smem>>
    %c2_i32_174 = arith.constant 2 : i32
    %c2_i32_175 = arith.constant 2 : i32
    %c0_i32_176 = arith.constant 0 : i32
    %212 = tpu.memref_slice %arg5[%211, %c0_i32_176] : memref<512x128xf32, #tpu.memory_space<any>> -> memref<1x128xf32, #tpu.memory_space<any>>
    %c0_i32_177 = arith.constant 0 : i32
    %c0_i32_178 = arith.constant 0 : i32
    %213 = tpu.memref_slice %arg7[%c2_i32_174, %c0_i32_177, %c0_i32_178] : memref<4x1x128xf32, #tpu.memory_space<vmem>> -> memref<1x1x128xf32, #tpu.memory_space<vmem>>
    %214 = tpu.memref_squeeze %213 : memref<1x1x128xf32, #tpu.memory_space<vmem>> -> memref<1x128xf32, #tpu.memory_space<vmem>>
    %215 = tpu.memref_slice %arg8[%c2_i32_175] : memref<4x!tpu.dma_semaphore, #tpu.memory_space<semaphore_mem>> -> memref<1x!tpu.dma_semaphore, #tpu.memory_space<semaphore_mem>>
    %216 = tpu.memref_squeeze %215 : memref<1x!tpu.dma_semaphore, #tpu.memory_space<semaphore_mem>> -> memref<!tpu.dma_semaphore, #tpu.memory_space<semaphore_mem>>
    tpu.enqueue_dma source(%212 : memref<1x128xf32, #tpu.memory_space<any>>) target(%214 : memref<1x128xf32, #tpu.memory_space<vmem>>) target_semaphore(%216 : memref<!tpu.dma_semaphore, #tpu.memory_space<semaphore_mem>>)
    %c3_179 = arith.constant 3 : index
    %c0_180 = arith.constant 0 : index
    %c0_181 = arith.constant 0 : index
    %217 = vector.load %arg7[%c3_179, %c0_180, %c0_181] : memref<4x1x128xf32, #tpu.memory_space<vmem>>, vector<1x1x128xf32>
    %218 = vector.shape_cast %217 : vector<1x1x128xf32> to vector<1x128xf32>
    %219 = arith.addf %203, %218 : vector<1x128xf32>
    %c0_i32_182 = arith.constant 0 : i32
    %c0_i32_183 = arith.constant 0 : i32
    %c0_i32_184 = arith.constant 0 : i32
    %c0_i32_185 = arith.constant 0 : i32
    %220 = tpu.memref_slice %arg5[%c0_i32_184, %c0_i32_185] : memref<512x128xf32, #tpu.memory_space<any>> -> memref<1x128xf32, #tpu.memory_space<any>>
    %c0_i32_186 = arith.constant 0 : i32
    %c0_i32_187 = arith.constant 0 : i32
    %221 = tpu.memref_slice %arg7[%c0_i32_182, %c0_i32_186, %c0_i32_187] : memref<4x1x128xf32, #tpu.memory_space<vmem>> -> memref<1x1x128xf32, #tpu.memory_space<vmem>>
    %222 = tpu.memref_squeeze %221 : memref<1x1x128xf32, #tpu.memory_space<vmem>> -> memref<1x128xf32, #tpu.memory_space<vmem>>
    %223 = tpu.memref_slice %arg8[%c0_i32_183] : memref<4x!tpu.dma_semaphore, #tpu.memory_space<semaphore_mem>> -> memref<1x!tpu.dma_semaphore, #tpu.memory_space<semaphore_mem>>
    %224 = tpu.memref_squeeze %223 : memref<1x!tpu.dma_semaphore, #tpu.memory_space<semaphore_mem>> -> memref<!tpu.dma_semaphore, #tpu.memory_space<semaphore_mem>>
    tpu.wait_dma2 semaphore(%224 : memref<!tpu.dma_semaphore, #tpu.memory_space<semaphore_mem>>) src(%220 : memref<1x128xf32, #tpu.memory_space<any>>) dst(%222 : memref<1x128xf32, #tpu.memory_space<vmem>>)
    %c15_i32 = arith.constant 15 : i32
    %225 = arith.addi %0, %c15_i32 : i32
    %226 = arith.index_cast %225 : i32 to index
    %227 = memref.load %arg1[%226] : memref<64xi32, #tpu.memory_space<smem>>
    %c3_i32_188 = arith.constant 3 : i32
    %c3_i32_189 = arith.constant 3 : i32
    %c0_i32_190 = arith.constant 0 : i32
    %228 = tpu.memref_slice %arg5[%227, %c0_i32_190] : memref<512x128xf32, #tpu.memory_space<any>> -> memref<1x128xf32, #tpu.memory_space<any>>
    %c0_i32_191 = arith.constant 0 : i32
    %c0_i32_192 = arith.constant 0 : i32
    %229 = tpu.memref_slice %arg7[%c3_i32_188, %c0_i32_191, %c0_i32_192] : memref<4x1x128xf32, #tpu.memory_space<vmem>> -> memref<1x1x128xf32, #tpu.memory_space<vmem>>
    %230 = tpu.memref_squeeze %229 : memref<1x1x128xf32, #tpu.memory_space<vmem>> -> memref<1x128xf32, #tpu.memory_space<vmem>>
    %231 = tpu.memref_slice %arg8[%c3_i32_189] : memref<4x!tpu.dma_semaphore, #tpu.memory_space<semaphore_mem>> -> memref<1x!tpu.dma_semaphore, #tpu.memory_space<semaphore_mem>>
    %232 = tpu.memref_squeeze %231 : memref<1x!tpu.dma_semaphore, #tpu.memory_space<semaphore_mem>> -> memref<!tpu.dma_semaphore, #tpu.memory_space<semaphore_mem>>
    tpu.enqueue_dma source(%228 : memref<1x128xf32, #tpu.memory_space<any>>) target(%230 : memref<1x128xf32, #tpu.memory_space<vmem>>) target_semaphore(%232 : memref<!tpu.dma_semaphore, #tpu.memory_space<semaphore_mem>>)
    %c0_193 = arith.constant 0 : index
    %c0_194 = arith.constant 0 : index
    %c0_195 = arith.constant 0 : index
    %233 = vector.load %arg7[%c0_193, %c0_194, %c0_195] : memref<4x1x128xf32, #tpu.memory_space<vmem>>, vector<1x1x128xf32>
    %234 = vector.shape_cast %233 : vector<1x1x128xf32> to vector<1x128xf32>
    %235 = arith.addf %219, %234 : vector<1x128xf32>
    %c1_i32_196 = arith.constant 1 : i32
    %c1_i32_197 = arith.constant 1 : i32
    %c0_i32_198 = arith.constant 0 : i32
    %c0_i32_199 = arith.constant 0 : i32
    %236 = tpu.memref_slice %arg5[%c0_i32_198, %c0_i32_199] : memref<512x128xf32, #tpu.memory_space<any>> -> memref<1x128xf32, #tpu.memory_space<any>>
    %c0_i32_200 = arith.constant 0 : i32
    %c0_i32_201 = arith.constant 0 : i32
    %237 = tpu.memref_slice %arg7[%c1_i32_196, %c0_i32_200, %c0_i32_201] : memref<4x1x128xf32, #tpu.memory_space<vmem>> -> memref<1x1x128xf32, #tpu.memory_space<vmem>>
    %238 = tpu.memref_squeeze %237 : memref<1x1x128xf32, #tpu.memory_space<vmem>> -> memref<1x128xf32, #tpu.memory_space<vmem>>
    %239 = tpu.memref_slice %arg8[%c1_i32_197] : memref<4x!tpu.dma_semaphore, #tpu.memory_space<semaphore_mem>> -> memref<1x!tpu.dma_semaphore, #tpu.memory_space<semaphore_mem>>
    %240 = tpu.memref_squeeze %239 : memref<1x!tpu.dma_semaphore, #tpu.memory_space<semaphore_mem>> -> memref<!tpu.dma_semaphore, #tpu.memory_space<semaphore_mem>>
    tpu.wait_dma2 semaphore(%240 : memref<!tpu.dma_semaphore, #tpu.memory_space<semaphore_mem>>) src(%236 : memref<1x128xf32, #tpu.memory_space<any>>) dst(%238 : memref<1x128xf32, #tpu.memory_space<vmem>>)
    %c16_i32 = arith.constant 16 : i32
    %241 = arith.addi %0, %c16_i32 : i32
    %242 = arith.index_cast %241 : i32 to index
    %243 = memref.load %arg1[%242] : memref<64xi32, #tpu.memory_space<smem>>
    %c0_i32_202 = arith.constant 0 : i32
    %c0_i32_203 = arith.constant 0 : i32
    %c0_i32_204 = arith.constant 0 : i32
    %244 = tpu.memref_slice %arg5[%243, %c0_i32_204] : memref<512x128xf32, #tpu.memory_space<any>> -> memref<1x128xf32, #tpu.memory_space<any>>
    %c0_i32_205 = arith.constant 0 : i32
    %c0_i32_206 = arith.constant 0 : i32
    %245 = tpu.memref_slice %arg7[%c0_i32_202, %c0_i32_205, %c0_i32_206] : memref<4x1x128xf32, #tpu.memory_space<vmem>> -> memref<1x1x128xf32, #tpu.memory_space<vmem>>
    %246 = tpu.memref_squeeze %245 : memref<1x1x128xf32, #tpu.memory_space<vmem>> -> memref<1x128xf32, #tpu.memory_space<vmem>>
    %247 = tpu.memref_slice %arg8[%c0_i32_203] : memref<4x!tpu.dma_semaphore, #tpu.memory_space<semaphore_mem>> -> memref<1x!tpu.dma_semaphore, #tpu.memory_space<semaphore_mem>>
    %248 = tpu.memref_squeeze %247 : memref<1x!tpu.dma_semaphore, #tpu.memory_space<semaphore_mem>> -> memref<!tpu.dma_semaphore, #tpu.memory_space<semaphore_mem>>
    tpu.enqueue_dma source(%244 : memref<1x128xf32, #tpu.memory_space<any>>) target(%246 : memref<1x128xf32, #tpu.memory_space<vmem>>) target_semaphore(%248 : memref<!tpu.dma_semaphore, #tpu.memory_space<semaphore_mem>>)
    %c1_207 = arith.constant 1 : index
    %c0_208 = arith.constant 0 : index
    %c0_209 = arith.constant 0 : index
    %249 = vector.load %arg7[%c1_207, %c0_208, %c0_209] : memref<4x1x128xf32, #tpu.memory_space<vmem>>, vector<1x1x128xf32>
    %250 = vector.shape_cast %249 : vector<1x1x128xf32> to vector<1x128xf32>
    %251 = arith.addf %235, %250 : vector<1x128xf32>
    %c2_i32_210 = arith.constant 2 : i32
    %c2_i32_211 = arith.constant 2 : i32
    %c0_i32_212 = arith.constant 0 : i32
    %c0_i32_213 = arith.constant 0 : i32
    %252 = tpu.memref_slice %arg5[%c0_i32_212, %c0_i32_213] : memref<512x128xf32, #tpu.memory_space<any>> -> memref<1x128xf32, #tpu.memory_space<any>>
    %c0_i32_214 = arith.constant 0 : i32
    %c0_i32_215 = arith.constant 0 : i32
    %253 = tpu.memref_slice %arg7[%c2_i32_210, %c0_i32_214, %c0_i32_215] : memref<4x1x128xf32, #tpu.memory_space<vmem>> -> memref<1x1x128xf32, #tpu.memory_space<vmem>>
    %254 = tpu.memref_squeeze %253 : memref<1x1x128xf32, #tpu.memory_space<vmem>> -> memref<1x128xf32, #tpu.memory_space<vmem>>
    %255 = tpu.memref_slice %arg8[%c2_i32_211] : memref<4x!tpu.dma_semaphore, #tpu.memory_space<semaphore_mem>> -> memref<1x!tpu.dma_semaphore, #tpu.memory_space<semaphore_mem>>
    %256 = tpu.memref_squeeze %255 : memref<1x!tpu.dma_semaphore, #tpu.memory_space<semaphore_mem>> -> memref<!tpu.dma_semaphore, #tpu.memory_space<semaphore_mem>>
    tpu.wait_dma2 semaphore(%256 : memref<!tpu.dma_semaphore, #tpu.memory_space<semaphore_mem>>) src(%252 : memref<1x128xf32, #tpu.memory_space<any>>) dst(%254 : memref<1x128xf32, #tpu.memory_space<vmem>>)
    %c17_i32 = arith.constant 17 : i32
    %257 = arith.addi %0, %c17_i32 : i32
    %258 = arith.index_cast %257 : i32 to index
    %259 = memref.load %arg1[%258] : memref<64xi32, #tpu.memory_space<smem>>
    %c1_i32_216 = arith.constant 1 : i32
    %c1_i32_217 = arith.constant 1 : i32
    %c0_i32_218 = arith.constant 0 : i32
    %260 = tpu.memref_slice %arg5[%259, %c0_i32_218] : memref<512x128xf32, #tpu.memory_space<any>> -> memref<1x128xf32, #tpu.memory_space<any>>
    %c0_i32_219 = arith.constant 0 : i32
    %c0_i32_220 = arith.constant 0 : i32
    %261 = tpu.memref_slice %arg7[%c1_i32_216, %c0_i32_219, %c0_i32_220] : memref<4x1x128xf32, #tpu.memory_space<vmem>> -> memref<1x1x128xf32, #tpu.memory_space<vmem>>
    %262 = tpu.memref_squeeze %261 : memref<1x1x128xf32, #tpu.memory_space<vmem>> -> memref<1x128xf32, #tpu.memory_space<vmem>>
    %263 = tpu.memref_slice %arg8[%c1_i32_217] : memref<4x!tpu.dma_semaphore, #tpu.memory_space<semaphore_mem>> -> memref<1x!tpu.dma_semaphore, #tpu.memory_space<semaphore_mem>>
    %264 = tpu.memref_squeeze %263 : memref<1x!tpu.dma_semaphore, #tpu.memory_space<semaphore_mem>> -> memref<!tpu.dma_semaphore, #tpu.memory_space<semaphore_mem>>
    tpu.enqueue_dma source(%260 : memref<1x128xf32, #tpu.memory_space<any>>) target(%262 : memref<1x128xf32, #tpu.memory_space<vmem>>) target_semaphore(%264 : memref<!tpu.dma_semaphore, #tpu.memory_space<semaphore_mem>>)
    %c2_221 = arith.constant 2 : index
    %c0_222 = arith.constant 0 : index
    %c0_223 = arith.constant 0 : index
    %265 = vector.load %arg7[%c2_221, %c0_222, %c0_223] : memref<4x1x128xf32, #tpu.memory_space<vmem>>, vector<1x1x128xf32>
    %266 = vector.shape_cast %265 : vector<1x1x128xf32> to vector<1x128xf32>
    %267 = arith.addf %251, %266 : vector<1x128xf32>
    %c3_i32_224 = arith.constant 3 : i32
    %c3_i32_225 = arith.constant 3 : i32
    %c0_i32_226 = arith.constant 0 : i32
    %c0_i32_227 = arith.constant 0 : i32
    %268 = tpu.memref_slice %arg5[%c0_i32_226, %c0_i32_227] : memref<512x128xf32, #tpu.memory_space<any>> -> memref<1x128xf32, #tpu.memory_space<any>>
    %c0_i32_228 = arith.constant 0 : i32
    %c0_i32_229 = arith.constant 0 : i32
    %269 = tpu.memref_slice %arg7[%c3_i32_224, %c0_i32_228, %c0_i32_229] : memref<4x1x128xf32, #tpu.memory_space<vmem>> -> memref<1x1x128xf32, #tpu.memory_space<vmem>>
    %270 = tpu.memref_squeeze %269 : memref<1x1x128xf32, #tpu.memory_space<vmem>> -> memref<1x128xf32, #tpu.memory_space<vmem>>
    %271 = tpu.memref_slice %arg8[%c3_i32_225] : memref<4x!tpu.dma_semaphore, #tpu.memory_space<semaphore_mem>> -> memref<1x!tpu.dma_semaphore, #tpu.memory_space<semaphore_mem>>
    %272 = tpu.memref_squeeze %271 : memref<1x!tpu.dma_semaphore, #tpu.memory_space<semaphore_mem>> -> memref<!tpu.dma_semaphore, #tpu.memory_space<semaphore_mem>>
    tpu.wait_dma2 semaphore(%272 : memref<!tpu.dma_semaphore, #tpu.memory_space<semaphore_mem>>) src(%268 : memref<1x128xf32, #tpu.memory_space<any>>) dst(%270 : memref<1x128xf32, #tpu.memory_space<vmem>>)
    %c18_i32 = arith.constant 18 : i32
    %273 = arith.addi %0, %c18_i32 : i32
    %274 = arith.index_cast %273 : i32 to index
    %275 = memref.load %arg1[%274] : memref<64xi32, #tpu.memory_space<smem>>
    %c2_i32_230 = arith.constant 2 : i32
    %c2_i32_231 = arith.constant 2 : i32
    %c0_i32_232 = arith.constant 0 : i32
    %276 = tpu.memref_slice %arg5[%275, %c0_i32_232] : memref<512x128xf32, #tpu.memory_space<any>> -> memref<1x128xf32, #tpu.memory_space<any>>
    %c0_i32_233 = arith.constant 0 : i32
    %c0_i32_234 = arith.constant 0 : i32
    %277 = tpu.memref_slice %arg7[%c2_i32_230, %c0_i32_233, %c0_i32_234] : memref<4x1x128xf32, #tpu.memory_space<vmem>> -> memref<1x1x128xf32, #tpu.memory_space<vmem>>
    %278 = tpu.memref_squeeze %277 : memref<1x1x128xf32, #tpu.memory_space<vmem>> -> memref<1x128xf32, #tpu.memory_space<vmem>>
    %279 = tpu.memref_slice %arg8[%c2_i32_231] : memref<4x!tpu.dma_semaphore, #tpu.memory_space<semaphore_mem>> -> memref<1x!tpu.dma_semaphore, #tpu.memory_space<semaphore_mem>>
    %280 = tpu.memref_squeeze %279 : memref<1x!tpu.dma_semaphore, #tpu.memory_space<semaphore_mem>> -> memref<!tpu.dma_semaphore, #tpu.memory_space<semaphore_mem>>
    tpu.enqueue_dma source(%276 : memref<1x128xf32, #tpu.memory_space<any>>) target(%278 : memref<1x128xf32, #tpu.memory_space<vmem>>) target_semaphore(%280 : memref<!tpu.dma_semaphore, #tpu.memory_space<semaphore_mem>>)
    %c3_235 = arith.constant 3 : index
    %c0_236 = arith.constant 0 : index
    %c0_237 = arith.constant 0 : index
    %281 = vector.load %arg7[%c3_235, %c0_236, %c0_237] : memref<4x1x128xf32, #tpu.memory_space<vmem>>, vector<1x1x128xf32>
    %282 = vector.shape_cast %281 : vector<1x1x128xf32> to vector<1x128xf32>
    %283 = arith.addf %267, %282 : vector<1x128xf32>
    %c1_238 = arith.constant 1 : index
    %c0_239 = arith.constant 0 : index
    %284 = vector.load %arg9[%c1_238, %c0_239] : memref<8x128xf32, #tpu.memory_space<vmem>>, vector<1x128xf32>
    tpu.vector_store %arg9[%c1_238, %c0_239], %283 {strides = array<i32>} : memref<8x128xf32, #tpu.memory_space<vmem>>, vector<1x128xf32>,
    %cst_240 = arith.constant 0.000000e+00 : f32
    %285 = vector.broadcast %cst_240 : f32 to vector<1x128xf32>
    %c0_i32_241 = arith.constant 0 : i32
    %c0_i32_242 = arith.constant 0 : i32
    %c0_i32_243 = arith.constant 0 : i32
    %c0_i32_244 = arith.constant 0 : i32
    %286 = tpu.memref_slice %arg5[%c0_i32_243, %c0_i32_244] : memref<512x128xf32, #tpu.memory_space<any>> -> memref<1x128xf32, #tpu.memory_space<any>>
    %c0_i32_245 = arith.constant 0 : i32
    %c0_i32_246 = arith.constant 0 : i32
    %287 = tpu.memref_slice %arg7[%c0_i32_241, %c0_i32_245, %c0_i32_246] : memref<4x1x128xf32, #tpu.memory_space<vmem>> -> memref<1x1x128xf32, #tpu.memory_space<vmem>>
    %288 = tpu.memref_squeeze %287 : memref<1x1x128xf32, #tpu.memory_space<vmem>> -> memref<1x128xf32, #tpu.memory_space<vmem>>
    %289 = tpu.memref_slice %arg8[%c0_i32_242] : memref<4x!tpu.dma_semaphore, #tpu.memory_space<semaphore_mem>> -> memref<1x!tpu.dma_semaphore, #tpu.memory_space<semaphore_mem>>
    %290 = tpu.memref_squeeze %289 : memref<1x!tpu.dma_semaphore, #tpu.memory_space<semaphore_mem>> -> memref<!tpu.dma_semaphore, #tpu.memory_space<semaphore_mem>>
    tpu.wait_dma2 semaphore(%290 : memref<!tpu.dma_semaphore, #tpu.memory_space<semaphore_mem>>) src(%286 : memref<1x128xf32, #tpu.memory_space<any>>) dst(%288 : memref<1x128xf32, #tpu.memory_space<vmem>>)
    %c19_i32 = arith.constant 19 : i32
    %291 = arith.addi %0, %c19_i32 : i32
    %292 = arith.index_cast %291 : i32 to index
    %293 = memref.load %arg1[%292] : memref<64xi32, #tpu.memory_space<smem>>
    %c3_i32_247 = arith.constant 3 : i32
    %c3_i32_248 = arith.constant 3 : i32
    %c0_i32_249 = arith.constant 0 : i32
    %294 = tpu.memref_slice %arg5[%293, %c0_i32_249] : memref<512x128xf32, #tpu.memory_space<any>> -> memref<1x128xf32, #tpu.memory_space<any>>
    %c0_i32_250 = arith.constant 0 : i32
    %c0_i32_251 = arith.constant 0 : i32
    %295 = tpu.memref_slice %arg7[%c3_i32_247, %c0_i32_250, %c0_i32_251] : memref<4x1x128xf32, #tpu.memory_space<vmem>> -> memref<1x1x128xf32, #tpu.memory_space<vmem>>
    %296 = tpu.memref_squeeze %295 : memref<1x1x128xf32, #tpu.memory_space<vmem>> -> memref<1x128xf32, #tpu.memory_space<vmem>>
    %297 = tpu.memref_slice %arg8[%c3_i32_248] : memref<4x!tpu.dma_semaphore, #tpu.memory_space<semaphore_mem>> -> memref<1x!tpu.dma_semaphore, #tpu.memory_space<semaphore_mem>>
    %298 = tpu.memref_squeeze %297 : memref<1x!tpu.dma_semaphore, #tpu.memory_space<semaphore_mem>> -> memref<!tpu.dma_semaphore, #tpu.memory_space<semaphore_mem>>
    tpu.enqueue_dma source(%294 : memref<1x128xf32, #tpu.memory_space<any>>) target(%296 : memref<1x128xf32, #tpu.memory_space<vmem>>) target_semaphore(%298 : memref<!tpu.dma_semaphore, #tpu.memory_space<semaphore_mem>>)
    %c0_252 = arith.constant 0 : index
    %c0_253 = arith.constant 0 : index
    %c0_254 = arith.constant 0 : index
    %299 = vector.load %arg7[%c0_252, %c0_253, %c0_254] : memref<4x1x128xf32, #tpu.memory_space<vmem>>, vector<1x1x128xf32>
    %300 = vector.shape_cast %299 : vector<1x1x128xf32> to vector<1x128xf32>
    %301 = arith.addf %285, %300 : vector<1x128xf32>
    %c1_i32_255 = arith.constant 1 : i32
    %c1_i32_256 = arith.constant 1 : i32
    %c0_i32_257 = arith.constant 0 : i32
    %c0_i32_258 = arith.constant 0 : i32
    %302 = tpu.memref_slice %arg5[%c0_i32_257, %c0_i32_258] : memref<512x128xf32, #tpu.memory_space<any>> -> memref<1x128xf32, #tpu.memory_space<any>>
    %c0_i32_259 = arith.constant 0 : i32
    %c0_i32_260 = arith.constant 0 : i32
    %303 = tpu.memref_slice %arg7[%c1_i32_255, %c0_i32_259, %c0_i32_260] : memref<4x1x128xf32, #tpu.memory_space<vmem>> -> memref<1x1x128xf32, #tpu.memory_space<vmem>>
    %304 = tpu.memref_squeeze %303 : memref<1x1x128xf32, #tpu.memory_space<vmem>> -> memref<1x128xf32, #tpu.memory_space<vmem>>
    %305 = tpu.memref_slice %arg8[%c1_i32_256] : memref<4x!tpu.dma_semaphore, #tpu.memory_space<semaphore_mem>> -> memref<1x!tpu.dma_semaphore, #tpu.memory_space<semaphore_mem>>
    %306 = tpu.memref_squeeze %305 : memref<1x!tpu.dma_semaphore, #tpu.memory_space<semaphore_mem>> -> memref<!tpu.dma_semaphore, #tpu.memory_space<semaphore_mem>>
    tpu.wait_dma2 semaphore(%306 : memref<!tpu.dma_semaphore, #tpu.memory_space<semaphore_mem>>) src(%302 : memref<1x128xf32, #tpu.memory_space<any>>) dst(%304 : memref<1x128xf32, #tpu.memory_space<vmem>>)
    %c20_i32 = arith.constant 20 : i32
    %307 = arith.addi %0, %c20_i32 : i32
    %308 = arith.index_cast %307 : i32 to index
    %309 = memref.load %arg1[%308] : memref<64xi32, #tpu.memory_space<smem>>
    %c0_i32_261 = arith.constant 0 : i32
    %c0_i32_262 = arith.constant 0 : i32
    %c0_i32_263 = arith.constant 0 : i32
    %310 = tpu.memref_slice %arg5[%309, %c0_i32_263] : memref<512x128xf32, #tpu.memory_space<any>> -> memref<1x128xf32, #tpu.memory_space<any>>
    %c0_i32_264 = arith.constant 0 : i32
    %c0_i32_265 = arith.constant 0 : i32
    %311 = tpu.memref_slice %arg7[%c0_i32_261, %c0_i32_264, %c0_i32_265] : memref<4x1x128xf32, #tpu.memory_space<vmem>> -> memref<1x1x128xf32, #tpu.memory_space<vmem>>
    %312 = tpu.memref_squeeze %311 : memref<1x1x128xf32, #tpu.memory_space<vmem>> -> memref<1x128xf32, #tpu.memory_space<vmem>>
    %313 = tpu.memref_slice %arg8[%c0_i32_262] : memref<4x!tpu.dma_semaphore, #tpu.memory_space<semaphore_mem>> -> memref<1x!tpu.dma_semaphore, #tpu.memory_space<semaphore_mem>>
    %314 = tpu.memref_squeeze %313 : memref<1x!tpu.dma_semaphore, #tpu.memory_space<semaphore_mem>> -> memref<!tpu.dma_semaphore, #tpu.memory_space<semaphore_mem>>
    tpu.enqueue_dma source(%310 : memref<1x128xf32, #tpu.memory_space<any>>) target(%312 : memref<1x128xf32, #tpu.memory_space<vmem>>) target_semaphore(%314 : memref<!tpu.dma_semaphore, #tpu.memory_space<semaphore_mem>>)
    %c1_266 = arith.constant 1 : index
    %c0_267 = arith.constant 0 : index
    %c0_268 = arith.constant 0 : index
    %315 = vector.load %arg7[%c1_266, %c0_267, %c0_268] : memref<4x1x128xf32, #tpu.memory_space<vmem>>, vector<1x1x128xf32>
    %316 = vector.shape_cast %315 : vector<1x1x128xf32> to vector<1x128xf32>
    %317 = arith.addf %301, %316 : vector<1x128xf32>
    %c2_i32_269 = arith.constant 2 : i32
    %c2_i32_270 = arith.constant 2 : i32
    %c0_i32_271 = arith.constant 0 : i32
    %c0_i32_272 = arith.constant 0 : i32
    %318 = tpu.memref_slice %arg5[%c0_i32_271, %c0_i32_272] : memref<512x128xf32, #tpu.memory_space<any>> -> memref<1x128xf32, #tpu.memory_space<any>>
    %c0_i32_273 = arith.constant 0 : i32
    %c0_i32_274 = arith.constant 0 : i32
    %319 = tpu.memref_slice %arg7[%c2_i32_269, %c0_i32_273, %c0_i32_274] : memref<4x1x128xf32, #tpu.memory_space<vmem>> -> memref<1x1x128xf32, #tpu.memory_space<vmem>>
    %320 = tpu.memref_squeeze %319 : memref<1x1x128xf32, #tpu.memory_space<vmem>> -> memref<1x128xf32, #tpu.memory_space<vmem>>
    %321 = tpu.memref_slice %arg8[%c2_i32_270] : memref<4x!tpu.dma_semaphore, #tpu.memory_space<semaphore_mem>> -> memref<1x!tpu.dma_semaphore, #tpu.memory_space<semaphore_mem>>
    %322 = tpu.memref_squeeze %321 : memref<1x!tpu.dma_semaphore, #tpu.memory_space<semaphore_mem>> -> memref<!tpu.dma_semaphore, #tpu.memory_space<semaphore_mem>>
    tpu.wait_dma2 semaphore(%322 : memref<!tpu.dma_semaphore, #tpu.memory_space<semaphore_mem>>) src(%318 : memref<1x128xf32, #tpu.memory_space<any>>) dst(%320 : memref<1x128xf32, #tpu.memory_space<vmem>>)
    %c21_i32 = arith.constant 21 : i32
    %323 = arith.addi %0, %c21_i32 : i32
    %324 = arith.index_cast %323 : i32 to index
    %325 = memref.load %arg1[%324] : memref<64xi32, #tpu.memory_space<smem>>
    %c1_i32_275 = arith.constant 1 : i32
    %c1_i32_276 = arith.constant 1 : i32
    %c0_i32_277 = arith.constant 0 : i32
    %326 = tpu.memref_slice %arg5[%325, %c0_i32_277] : memref<512x128xf32, #tpu.memory_space<any>> -> memref<1x128xf32, #tpu.memory_space<any>>
    %c0_i32_278 = arith.constant 0 : i32
    %c0_i32_279 = arith.constant 0 : i32
    %327 = tpu.memref_slice %arg7[%c1_i32_275, %c0_i32_278, %c0_i32_279] : memref<4x1x128xf32, #tpu.memory_space<vmem>> -> memref<1x1x128xf32, #tpu.memory_space<vmem>>
    %328 = tpu.memref_squeeze %327 : memref<1x1x128xf32, #tpu.memory_space<vmem>> -> memref<1x128xf32, #tpu.memory_space<vmem>>
    %329 = tpu.memref_slice %arg8[%c1_i32_276] : memref<4x!tpu.dma_semaphore, #tpu.memory_space<semaphore_mem>> -> memref<1x!tpu.dma_semaphore, #tpu.memory_space<semaphore_mem>>
    %330 = tpu.memref_squeeze %329 : memref<1x!tpu.dma_semaphore, #tpu.memory_space<semaphore_mem>> -> memref<!tpu.dma_semaphore, #tpu.memory_space<semaphore_mem>>
    tpu.enqueue_dma source(%326 : memref<1x128xf32, #tpu.memory_space<any>>) target(%328 : memref<1x128xf32, #tpu.memory_space<vmem>>) target_semaphore(%330 : memref<!tpu.dma_semaphore, #tpu.memory_space<semaphore_mem>>)
    %c2_280 = arith.constant 2 : index
    %c0_281 = arith.constant 0 : index
    %c0_282 = arith.constant 0 : index
    %331 = vector.load %arg7[%c2_280, %c0_281, %c0_282] : memref<4x1x128xf32, #tpu.memory_space<vmem>>, vector<1x1x128xf32>
    %332 = vector.shape_cast %331 : vector<1x1x128xf32> to vector<1x128xf32>
    %333 = arith.addf %317, %332 : vector<1x128xf32>
    %c3_i32_283 = arith.constant 3 : i32
    %c3_i32_284 = arith.constant 3 : i32
    %c0_i32_285 = arith.constant 0 : i32
    %c0_i32_286 = arith.constant 0 : i32
    %334 = tpu.memref_slice %arg5[%c0_i32_285, %c0_i32_286] : memref<512x128xf32, #tpu.memory_space<any>> -> memref<1x128xf32, #tpu.memory_space<any>>
    %c0_i32_287 = arith.constant 0 : i32
    %c0_i32_288 = arith.constant 0 : i32
    %335 = tpu.memref_slice %arg7[%c3_i32_283, %c0_i32_287, %c0_i32_288] : memref<4x1x128xf32, #tpu.memory_space<vmem>> -> memref<1x1x128xf32, #tpu.memory_space<vmem>>
    %336 = tpu.memref_squeeze %335 : memref<1x1x128xf32, #tpu.memory_space<vmem>> -> memref<1x128xf32, #tpu.memory_space<vmem>>
    %337 = tpu.memref_slice %arg8[%c3_i32_284] : memref<4x!tpu.dma_semaphore, #tpu.memory_space<semaphore_mem>> -> memref<1x!tpu.dma_semaphore, #tpu.memory_space<semaphore_mem>>
    %338 = tpu.memref_squeeze %337 : memref<1x!tpu.dma_semaphore, #tpu.memory_space<semaphore_mem>> -> memref<!tpu.dma_semaphore, #tpu.memory_space<semaphore_mem>>
    tpu.wait_dma2 semaphore(%338 : memref<!tpu.dma_semaphore, #tpu.memory_space<semaphore_mem>>) src(%334 : memref<1x128xf32, #tpu.memory_space<any>>) dst(%336 : memref<1x128xf32, #tpu.memory_space<vmem>>)
    %c22_i32 = arith.constant 22 : i32
    %339 = arith.addi %0, %c22_i32 : i32
    %340 = arith.index_cast %339 : i32 to index
    %341 = memref.load %arg1[%340] : memref<64xi32, #tpu.memory_space<smem>>
    %c2_i32_289 = arith.constant 2 : i32
    %c2_i32_290 = arith.constant 2 : i32
    %c0_i32_291 = arith.constant 0 : i32
    %342 = tpu.memref_slice %arg5[%341, %c0_i32_291] : memref<512x128xf32, #tpu.memory_space<any>> -> memref<1x128xf32, #tpu.memory_space<any>>
    %c0_i32_292 = arith.constant 0 : i32
    %c0_i32_293 = arith.constant 0 : i32
    %343 = tpu.memref_slice %arg7[%c2_i32_289, %c0_i32_292, %c0_i32_293] : memref<4x1x128xf32, #tpu.memory_space<vmem>> -> memref<1x1x128xf32, #tpu.memory_space<vmem>>
    %344 = tpu.memref_squeeze %343 : memref<1x1x128xf32, #tpu.memory_space<vmem>> -> memref<1x128xf32, #tpu.memory_space<vmem>>
    %345 = tpu.memref_slice %arg8[%c2_i32_290] : memref<4x!tpu.dma_semaphore, #tpu.memory_space<semaphore_mem>> -> memref<1x!tpu.dma_semaphore, #tpu.memory_space<semaphore_mem>>
    %346 = tpu.memref_squeeze %345 : memref<1x!tpu.dma_semaphore, #tpu.memory_space<semaphore_mem>> -> memref<!tpu.dma_semaphore, #tpu.memory_space<semaphore_mem>>
    tpu.enqueue_dma source(%342 : memref<1x128xf32, #tpu.memory_space<any>>) target(%344 : memref<1x128xf32, #tpu.memory_space<vmem>>) target_semaphore(%346 : memref<!tpu.dma_semaphore, #tpu.memory_space<semaphore_mem>>)
    %c3_294 = arith.constant 3 : index
    %c0_295 = arith.constant 0 : index
    %c0_296 = arith.constant 0 : index
    %347 = vector.load %arg7[%c3_294, %c0_295, %c0_296] : memref<4x1x128xf32, #tpu.memory_space<vmem>>, vector<1x1x128xf32>
    %348 = vector.shape_cast %347 : vector<1x1x128xf32> to vector<1x128xf32>
    %349 = arith.addf %333, %348 : vector<1x128xf32>
    %c0_i32_297 = arith.constant 0 : i32
    %c0_i32_298 = arith.constant 0 : i32
    %c0_i32_299 = arith.constant 0 : i32
    %c0_i32_300 = arith.constant 0 : i32
    %350 = tpu.memref_slice %arg5[%c0_i32_299, %c0_i32_300] : memref<512x128xf32, #tpu.memory_space<any>> -> memref<1x128xf32, #tpu.memory_space<any>>
    %c0_i32_301 = arith.constant 0 : i32
    %c0_i32_302 = arith.constant 0 : i32
    %351 = tpu.memref_slice %arg7[%c0_i32_297, %c0_i32_301, %c0_i32_302] : memref<4x1x128xf32, #tpu.memory_space<vmem>> -> memref<1x1x128xf32, #tpu.memory_space<vmem>>
    %352 = tpu.memref_squeeze %351 : memref<1x1x128xf32, #tpu.memory_space<vmem>> -> memref<1x128xf32, #tpu.memory_space<vmem>>
    %353 = tpu.memref_slice %arg8[%c0_i32_298] : memref<4x!tpu.dma_semaphore, #tpu.memory_space<semaphore_mem>> -> memref<1x!tpu.dma_semaphore, #tpu.memory_space<semaphore_mem>>
    %354 = tpu.memref_squeeze %353 : memref<1x!tpu.dma_semaphore, #tpu.memory_space<semaphore_mem>> -> memref<!tpu.dma_semaphore, #tpu.memory_space<semaphore_mem>>
    tpu.wait_dma2 semaphore(%354 : memref<!tpu.dma_semaphore, #tpu.memory_space<semaphore_mem>>) src(%350 : memref<1x128xf32, #tpu.memory_space<any>>) dst(%352 : memref<1x128xf32, #tpu.memory_space<vmem>>)
    %c23_i32 = arith.constant 23 : i32
    %355 = arith.addi %0, %c23_i32 : i32
    %356 = arith.index_cast %355 : i32 to index
    %357 = memref.load %arg1[%356] : memref<64xi32, #tpu.memory_space<smem>>
    %c3_i32_303 = arith.constant 3 : i32
    %c3_i32_304 = arith.constant 3 : i32
    %c0_i32_305 = arith.constant 0 : i32
    %358 = tpu.memref_slice %arg5[%357, %c0_i32_305] : memref<512x128xf32, #tpu.memory_space<any>> -> memref<1x128xf32, #tpu.memory_space<any>>
    %c0_i32_306 = arith.constant 0 : i32
    %c0_i32_307 = arith.constant 0 : i32
    %359 = tpu.memref_slice %arg7[%c3_i32_303, %c0_i32_306, %c0_i32_307] : memref<4x1x128xf32, #tpu.memory_space<vmem>> -> memref<1x1x128xf32, #tpu.memory_space<vmem>>
    %360 = tpu.memref_squeeze %359 : memref<1x1x128xf32, #tpu.memory_space<vmem>> -> memref<1x128xf32, #tpu.memory_space<vmem>>
    %361 = tpu.memref_slice %arg8[%c3_i32_304] : memref<4x!tpu.dma_semaphore, #tpu.memory_space<semaphore_mem>> -> memref<1x!tpu.dma_semaphore, #tpu.memory_space<semaphore_mem>>
    %362 = tpu.memref_squeeze %361 : memref<1x!tpu.dma_semaphore, #tpu.memory_space<semaphore_mem>> -> memref<!tpu.dma_semaphore, #tpu.memory_space<semaphore_mem>>
    tpu.enqueue_dma source(%358 : memref<1x128xf32, #tpu.memory_space<any>>) target(%360 : memref<1x128xf32, #tpu.memory_space<vmem>>) target_semaphore(%362 : memref<!tpu.dma_semaphore, #tpu.memory_space<semaphore_mem>>)
    %c0_308 = arith.constant 0 : index
    %c0_309 = arith.constant 0 : index
    %c0_310 = arith.constant 0 : index
    %363 = vector.load %arg7[%c0_308, %c0_309, %c0_310] : memref<4x1x128xf32, #tpu.memory_space<vmem>>, vector<1x1x128xf32>
    %364 = vector.shape_cast %363 : vector<1x1x128xf32> to vector<1x128xf32>
    %365 = arith.addf %349, %364 : vector<1x128xf32>
    %c1_i32_311 = arith.constant 1 : i32
    %c1_i32_312 = arith.constant 1 : i32
    %c0_i32_313 = arith.constant 0 : i32
    %c0_i32_314 = arith.constant 0 : i32
    %366 = tpu.memref_slice %arg5[%c0_i32_313, %c0_i32_314] : memref<512x128xf32, #tpu.memory_space<any>> -> memref<1x128xf32, #tpu.memory_space<any>>
    %c0_i32_315 = arith.constant 0 : i32
    %c0_i32_316 = arith.constant 0 : i32
    %367 = tpu.memref_slice %arg7[%c1_i32_311, %c0_i32_315, %c0_i32_316] : memref<4x1x128xf32, #tpu.memory_space<vmem>> -> memref<1x1x128xf32, #tpu.memory_space<vmem>>
    %368 = tpu.memref_squeeze %367 : memref<1x1x128xf32, #tpu.memory_space<vmem>> -> memref<1x128xf32, #tpu.memory_space<vmem>>
    %369 = tpu.memref_slice %arg8[%c1_i32_312] : memref<4x!tpu.dma_semaphore, #tpu.memory_space<semaphore_mem>> -> memref<1x!tpu.dma_semaphore, #tpu.memory_space<semaphore_mem>>
    %370 = tpu.memref_squeeze %369 : memref<1x!tpu.dma_semaphore, #tpu.memory_space<semaphore_mem>> -> memref<!tpu.dma_semaphore, #tpu.memory_space<semaphore_mem>>
    tpu.wait_dma2 semaphore(%370 : memref<!tpu.dma_semaphore, #tpu.memory_space<semaphore_mem>>) src(%366 : memref<1x128xf32, #tpu.memory_space<any>>) dst(%368 : memref<1x128xf32, #tpu.memory_space<vmem>>)
    %c24_i32 = arith.constant 24 : i32
    %371 = arith.addi %0, %c24_i32 : i32
    %372 = arith.index_cast %371 : i32 to index
    %373 = memref.load %arg1[%372] : memref<64xi32, #tpu.memory_space<smem>>
    %c0_i32_317 = arith.constant 0 : i32
    %c0_i32_318 = arith.constant 0 : i32
    %c0_i32_319 = arith.constant 0 : i32
    %374 = tpu.memref_slice %arg5[%373, %c0_i32_319] : memref<512x128xf32, #tpu.memory_space<any>> -> memref<1x128xf32, #tpu.memory_space<any>>
    %c0_i32_320 = arith.constant 0 : i32
    %c0_i32_321 = arith.constant 0 : i32
    %375 = tpu.memref_slice %arg7[%c0_i32_317, %c0_i32_320, %c0_i32_321] : memref<4x1x128xf32, #tpu.memory_space<vmem>> -> memref<1x1x128xf32, #tpu.memory_space<vmem>>
    %376 = tpu.memref_squeeze %375 : memref<1x1x128xf32, #tpu.memory_space<vmem>> -> memref<1x128xf32, #tpu.memory_space<vmem>>
    %377 = tpu.memref_slice %arg8[%c0_i32_318] : memref<4x!tpu.dma_semaphore, #tpu.memory_space<semaphore_mem>> -> memref<1x!tpu.dma_semaphore, #tpu.memory_space<semaphore_mem>>
    %378 = tpu.memref_squeeze %377 : memref<1x!tpu.dma_semaphore, #tpu.memory_space<semaphore_mem>> -> memref<!tpu.dma_semaphore, #tpu.memory_space<semaphore_mem>>
    tpu.enqueue_dma source(%374 : memref<1x128xf32, #tpu.memory_space<any>>) target(%376 : memref<1x128xf32, #tpu.memory_space<vmem>>) target_semaphore(%378 : memref<!tpu.dma_semaphore, #tpu.memory_space<semaphore_mem>>)
    %c1_322 = arith.constant 1 : index
    %c0_323 = arith.constant 0 : index
    %c0_324 = arith.constant 0 : index
    %379 = vector.load %arg7[%c1_322, %c0_323, %c0_324] : memref<4x1x128xf32, #tpu.memory_space<vmem>>, vector<1x1x128xf32>
    %380 = vector.shape_cast %379 : vector<1x1x128xf32> to vector<1x128xf32>
    %381 = arith.addf %365, %380 : vector<1x128xf32>
    %c2_i32_325 = arith.constant 2 : i32
    %c2_i32_326 = arith.constant 2 : i32
    %c0_i32_327 = arith.constant 0 : i32
    %c0_i32_328 = arith.constant 0 : i32
    %382 = tpu.memref_slice %arg5[%c0_i32_327, %c0_i32_328] : memref<512x128xf32, #tpu.memory_space<any>> -> memref<1x128xf32, #tpu.memory_space<any>>
    %c0_i32_329 = arith.constant 0 : i32
    %c0_i32_330 = arith.constant 0 : i32
    %383 = tpu.memref_slice %arg7[%c2_i32_325, %c0_i32_329, %c0_i32_330] : memref<4x1x128xf32, #tpu.memory_space<vmem>> -> memref<1x1x128xf32, #tpu.memory_space<vmem>>
    %384 = tpu.memref_squeeze %383 : memref<1x1x128xf32, #tpu.memory_space<vmem>> -> memref<1x128xf32, #tpu.memory_space<vmem>>
    %385 = tpu.memref_slice %arg8[%c2_i32_326] : memref<4x!tpu.dma_semaphore, #tpu.memory_space<semaphore_mem>> -> memref<1x!tpu.dma_semaphore, #tpu.memory_space<semaphore_mem>>
    %386 = tpu.memref_squeeze %385 : memref<1x!tpu.dma_semaphore, #tpu.memory_space<semaphore_mem>> -> memref<!tpu.dma_semaphore, #tpu.memory_space<semaphore_mem>>
    tpu.wait_dma2 semaphore(%386 : memref<!tpu.dma_semaphore, #tpu.memory_space<semaphore_mem>>) src(%382 : memref<1x128xf32, #tpu.memory_space<any>>) dst(%384 : memref<1x128xf32, #tpu.memory_space<vmem>>)
    %c25_i32 = arith.constant 25 : i32
    %387 = arith.addi %0, %c25_i32 : i32
    %388 = arith.index_cast %387 : i32 to index
    %389 = memref.load %arg1[%388] : memref<64xi32, #tpu.memory_space<smem>>
    %c1_i32_331 = arith.constant 1 : i32
    %c1_i32_332 = arith.constant 1 : i32
    %c0_i32_333 = arith.constant 0 : i32
    %390 = tpu.memref_slice %arg5[%389, %c0_i32_333] : memref<512x128xf32, #tpu.memory_space<any>> -> memref<1x128xf32, #tpu.memory_space<any>>
    %c0_i32_334 = arith.constant 0 : i32
    %c0_i32_335 = arith.constant 0 : i32
    %391 = tpu.memref_slice %arg7[%c1_i32_331, %c0_i32_334, %c0_i32_335] : memref<4x1x128xf32, #tpu.memory_space<vmem>> -> memref<1x1x128xf32, #tpu.memory_space<vmem>>
    %392 = tpu.memref_squeeze %391 : memref<1x1x128xf32, #tpu.memory_space<vmem>> -> memref<1x128xf32, #tpu.memory_space<vmem>>
    %393 = tpu.memref_slice %arg8[%c1_i32_332] : memref<4x!tpu.dma_semaphore, #tpu.memory_space<semaphore_mem>> -> memref<1x!tpu.dma_semaphore, #tpu.memory_space<semaphore_mem>>
    %394 = tpu.memref_squeeze %393 : memref<1x!tpu.dma_semaphore, #tpu.memory_space<semaphore_mem>> -> memref<!tpu.dma_semaphore, #tpu.memory_space<semaphore_mem>>
    tpu.enqueue_dma source(%390 : memref<1x128xf32, #tpu.memory_space<any>>) target(%392 : memref<1x128xf32, #tpu.memory_space<vmem>>) target_semaphore(%394 : memref<!tpu.dma_semaphore, #tpu.memory_space<semaphore_mem>>)
    %c2_336 = arith.constant 2 : index
    %c0_337 = arith.constant 0 : index
    %c0_338 = arith.constant 0 : index
    %395 = vector.load %arg7[%c2_336, %c0_337, %c0_338] : memref<4x1x128xf32, #tpu.memory_space<vmem>>, vector<1x1x128xf32>
    %396 = vector.shape_cast %395 : vector<1x1x128xf32> to vector<1x128xf32>
    %397 = arith.addf %381, %396 : vector<1x128xf32>
    %c3_i32_339 = arith.constant 3 : i32
    %c3_i32_340 = arith.constant 3 : i32
    %c0_i32_341 = arith.constant 0 : i32
    %c0_i32_342 = arith.constant 0 : i32
    %398 = tpu.memref_slice %arg5[%c0_i32_341, %c0_i32_342] : memref<512x128xf32, #tpu.memory_space<any>> -> memref<1x128xf32, #tpu.memory_space<any>>
    %c0_i32_343 = arith.constant 0 : i32
    %c0_i32_344 = arith.constant 0 : i32
    %399 = tpu.memref_slice %arg7[%c3_i32_339, %c0_i32_343, %c0_i32_344] : memref<4x1x128xf32, #tpu.memory_space<vmem>> -> memref<1x1x128xf32, #tpu.memory_space<vmem>>
    %400 = tpu.memref_squeeze %399 : memref<1x1x128xf32, #tpu.memory_space<vmem>> -> memref<1x128xf32, #tpu.memory_space<vmem>>
    %401 = tpu.memref_slice %arg8[%c3_i32_340] : memref<4x!tpu.dma_semaphore, #tpu.memory_space<semaphore_mem>> -> memref<1x!tpu.dma_semaphore, #tpu.memory_space<semaphore_mem>>
    %402 = tpu.memref_squeeze %401 : memref<1x!tpu.dma_semaphore, #tpu.memory_space<semaphore_mem>> -> memref<!tpu.dma_semaphore, #tpu.memory_space<semaphore_mem>>
    tpu.wait_dma2 semaphore(%402 : memref<!tpu.dma_semaphore, #tpu.memory_space<semaphore_mem>>) src(%398 : memref<1x128xf32, #tpu.memory_space<any>>) dst(%400 : memref<1x128xf32, #tpu.memory_space<vmem>>)
    %c26_i32 = arith.constant 26 : i32
    %403 = arith.addi %0, %c26_i32 : i32
    %404 = arith.index_cast %403 : i32 to index
    %405 = memref.load %arg1[%404] : memref<64xi32, #tpu.memory_space<smem>>
    %c2_i32_345 = arith.constant 2 : i32
    %c2_i32_346 = arith.constant 2 : i32
    %c0_i32_347 = arith.constant 0 : i32
    %406 = tpu.memref_slice %arg5[%405, %c0_i32_347] : memref<512x128xf32, #tpu.memory_space<any>> -> memref<1x128xf32, #tpu.memory_space<any>>
    %c0_i32_348 = arith.constant 0 : i32
    %c0_i32_349 = arith.constant 0 : i32
    %407 = tpu.memref_slice %arg7[%c2_i32_345, %c0_i32_348, %c0_i32_349] : memref<4x1x128xf32, #tpu.memory_space<vmem>> -> memref<1x1x128xf32, #tpu.memory_space<vmem>>
    %408 = tpu.memref_squeeze %407 : memref<1x1x128xf32, #tpu.memory_space<vmem>> -> memref<1x128xf32, #tpu.memory_space<vmem>>
    %409 = tpu.memref_slice %arg8[%c2_i32_346] : memref<4x!tpu.dma_semaphore, #tpu.memory_space<semaphore_mem>> -> memref<1x!tpu.dma_semaphore, #tpu.memory_space<semaphore_mem>>
    %410 = tpu.memref_squeeze %409 : memref<1x!tpu.dma_semaphore, #tpu.memory_space<semaphore_mem>> -> memref<!tpu.dma_semaphore, #tpu.memory_space<semaphore_mem>>
    tpu.enqueue_dma source(%406 : memref<1x128xf32, #tpu.memory_space<any>>) target(%408 : memref<1x128xf32, #tpu.memory_space<vmem>>) target_semaphore(%410 : memref<!tpu.dma_semaphore, #tpu.memory_space<semaphore_mem>>)
    %c3_350 = arith.constant 3 : index
    %c0_351 = arith.constant 0 : index
    %c0_352 = arith.constant 0 : index
    %411 = vector.load %arg7[%c3_350, %c0_351, %c0_352] : memref<4x1x128xf32, #tpu.memory_space<vmem>>, vector<1x1x128xf32>
    %412 = vector.shape_cast %411 : vector<1x1x128xf32> to vector<1x128xf32>
    %413 = arith.addf %397, %412 : vector<1x128xf32>
    %c2_353 = arith.constant 2 : index
    %c0_354 = arith.constant 0 : index
    %414 = vector.load %arg9[%c2_353, %c0_354] : memref<8x128xf32, #tpu.memory_space<vmem>>, vector<1x128xf32>
    tpu.vector_store %arg9[%c2_353, %c0_354], %413 {strides = array<i32>} : memref<8x128xf32, #tpu.memory_space<vmem>>, vector<1x128xf32>,
    %cst_355 = arith.constant 0.000000e+00 : f32
    %415 = vector.broadcast %cst_355 : f32 to vector<1x128xf32>
    %c0_i32_356 = arith.constant 0 : i32
    %c0_i32_357 = arith.constant 0 : i32
    %c0_i32_358 = arith.constant 0 : i32
    %c0_i32_359 = arith.constant 0 : i32
    %416 = tpu.memref_slice %arg5[%c0_i32_358, %c0_i32_359] : memref<512x128xf32, #tpu.memory_space<any>> -> memref<1x128xf32, #tpu.memory_space<any>>
    %c0_i32_360 = arith.constant 0 : i32
    %c0_i32_361 = arith.constant 0 : i32
    %417 = tpu.memref_slice %arg7[%c0_i32_356, %c0_i32_360, %c0_i32_361] : memref<4x1x128xf32, #tpu.memory_space<vmem>> -> memref<1x1x128xf32, #tpu.memory_space<vmem>>
    %418 = tpu.memref_squeeze %417 : memref<1x1x128xf32, #tpu.memory_space<vmem>> -> memref<1x128xf32, #tpu.memory_space<vmem>>
    %419 = tpu.memref_slice %arg8[%c0_i32_357] : memref<4x!tpu.dma_semaphore, #tpu.memory_space<semaphore_mem>> -> memref<1x!tpu.dma_semaphore, #tpu.memory_space<semaphore_mem>>
    %420 = tpu.memref_squeeze %419 : memref<1x!tpu.dma_semaphore, #tpu.memory_space<semaphore_mem>> -> memref<!tpu.dma_semaphore, #tpu.memory_space<semaphore_mem>>
    tpu.wait_dma2 semaphore(%420 : memref<!tpu.dma_semaphore, #tpu.memory_space<semaphore_mem>>) src(%416 : memref<1x128xf32, #tpu.memory_space<any>>) dst(%418 : memref<1x128xf32, #tpu.memory_space<vmem>>)
    %c27_i32 = arith.constant 27 : i32
    %421 = arith.addi %0, %c27_i32 : i32
    %422 = arith.index_cast %421 : i32 to index
    %423 = memref.load %arg1[%422] : memref<64xi32, #tpu.memory_space<smem>>
    %c3_i32_362 = arith.constant 3 : i32
    %c3_i32_363 = arith.constant 3 : i32
    %c0_i32_364 = arith.constant 0 : i32
    %424 = tpu.memref_slice %arg5[%423, %c0_i32_364] : memref<512x128xf32, #tpu.memory_space<any>> -> memref<1x128xf32, #tpu.memory_space<any>>
    %c0_i32_365 = arith.constant 0 : i32
    %c0_i32_366 = arith.constant 0 : i32
    %425 = tpu.memref_slice %arg7[%c3_i32_362, %c0_i32_365, %c0_i32_366] : memref<4x1x128xf32, #tpu.memory_space<vmem>> -> memref<1x1x128xf32, #tpu.memory_space<vmem>>
    %426 = tpu.memref_squeeze %425 : memref<1x1x128xf32, #tpu.memory_space<vmem>> -> memref<1x128xf32, #tpu.memory_space<vmem>>
    %427 = tpu.memref_slice %arg8[%c3_i32_363] : memref<4x!tpu.dma_semaphore, #tpu.memory_space<semaphore_mem>> -> memref<1x!tpu.dma_semaphore, #tpu.memory_space<semaphore_mem>>
    %428 = tpu.memref_squeeze %427 : memref<1x!tpu.dma_semaphore, #tpu.memory_space<semaphore_mem>> -> memref<!tpu.dma_semaphore, #tpu.memory_space<semaphore_mem>>
    tpu.enqueue_dma source(%424 : memref<1x128xf32, #tpu.memory_space<any>>) target(%426 : memref<1x128xf32, #tpu.memory_space<vmem>>) target_semaphore(%428 : memref<!tpu.dma_semaphore, #tpu.memory_space<semaphore_mem>>)
    %c0_367 = arith.constant 0 : index
    %c0_368 = arith.constant 0 : index
    %c0_369 = arith.constant 0 : index
    %429 = vector.load %arg7[%c0_367, %c0_368, %c0_369] : memref<4x1x128xf32, #tpu.memory_space<vmem>>, vector<1x1x128xf32>
    %430 = vector.shape_cast %429 : vector<1x1x128xf32> to vector<1x128xf32>
    %431 = arith.addf %415, %430 : vector<1x128xf32>
    %c1_i32_370 = arith.constant 1 : i32
    %c1_i32_371 = arith.constant 1 : i32
    %c0_i32_372 = arith.constant 0 : i32
    %c0_i32_373 = arith.constant 0 : i32
    %432 = tpu.memref_slice %arg5[%c0_i32_372, %c0_i32_373] : memref<512x128xf32, #tpu.memory_space<any>> -> memref<1x128xf32, #tpu.memory_space<any>>
    %c0_i32_374 = arith.constant 0 : i32
    %c0_i32_375 = arith.constant 0 : i32
    %433 = tpu.memref_slice %arg7[%c1_i32_370, %c0_i32_374, %c0_i32_375] : memref<4x1x128xf32, #tpu.memory_space<vmem>> -> memref<1x1x128xf32, #tpu.memory_space<vmem>>
    %434 = tpu.memref_squeeze %433 : memref<1x1x128xf32, #tpu.memory_space<vmem>> -> memref<1x128xf32, #tpu.memory_space<vmem>>
    %435 = tpu.memref_slice %arg8[%c1_i32_371] : memref<4x!tpu.dma_semaphore, #tpu.memory_space<semaphore_mem>> -> memref<1x!tpu.dma_semaphore, #tpu.memory_space<semaphore_mem>>
    %436 = tpu.memref_squeeze %435 : memref<1x!tpu.dma_semaphore, #tpu.memory_space<semaphore_mem>> -> memref<!tpu.dma_semaphore, #tpu.memory_space<semaphore_mem>>
    tpu.wait_dma2 semaphore(%436 : memref<!tpu.dma_semaphore, #tpu.memory_space<semaphore_mem>>) src(%432 : memref<1x128xf32, #tpu.memory_space<any>>) dst(%434 : memref<1x128xf32, #tpu.memory_space<vmem>>)
    %c28_i32 = arith.constant 28 : i32
    %437 = arith.addi %0, %c28_i32 : i32
    %438 = arith.index_cast %437 : i32 to index
    %439 = memref.load %arg1[%438] : memref<64xi32, #tpu.memory_space<smem>>
    %c0_i32_376 = arith.constant 0 : i32
    %c0_i32_377 = arith.constant 0 : i32
    %c0_i32_378 = arith.constant 0 : i32
    %440 = tpu.memref_slice %arg5[%439, %c0_i32_378] : memref<512x128xf32, #tpu.memory_space<any>> -> memref<1x128xf32, #tpu.memory_space<any>>
    %c0_i32_379 = arith.constant 0 : i32
    %c0_i32_380 = arith.constant 0 : i32
    %441 = tpu.memref_slice %arg7[%c0_i32_376, %c0_i32_379, %c0_i32_380] : memref<4x1x128xf32, #tpu.memory_space<vmem>> -> memref<1x1x128xf32, #tpu.memory_space<vmem>>
    %442 = tpu.memref_squeeze %441 : memref<1x1x128xf32, #tpu.memory_space<vmem>> -> memref<1x128xf32, #tpu.memory_space<vmem>>
    %443 = tpu.memref_slice %arg8[%c0_i32_377] : memref<4x!tpu.dma_semaphore, #tpu.memory_space<semaphore_mem>> -> memref<1x!tpu.dma_semaphore, #tpu.memory_space<semaphore_mem>>
    %444 = tpu.memref_squeeze %443 : memref<1x!tpu.dma_semaphore, #tpu.memory_space<semaphore_mem>> -> memref<!tpu.dma_semaphore, #tpu.memory_space<semaphore_mem>>
    tpu.enqueue_dma source(%440 : memref<1x128xf32, #tpu.memory_space<any>>) target(%442 : memref<1x128xf32, #tpu.memory_space<vmem>>) target_semaphore(%444 : memref<!tpu.dma_semaphore, #tpu.memory_space<semaphore_mem>>)
    %c1_381 = arith.constant 1 : index
    %c0_382 = arith.constant 0 : index
    %c0_383 = arith.constant 0 : index
    %445 = vector.load %arg7[%c1_381, %c0_382, %c0_383] : memref<4x1x128xf32, #tpu.memory_space<vmem>>, vector<1x1x128xf32>
    %446 = vector.shape_cast %445 : vector<1x1x128xf32> to vector<1x128xf32>
    %447 = arith.addf %431, %446 : vector<1x128xf32>
    %c2_i32_384 = arith.constant 2 : i32
    %c2_i32_385 = arith.constant 2 : i32
    %c0_i32_386 = arith.constant 0 : i32
    %c0_i32_387 = arith.constant 0 : i32
    %448 = tpu.memref_slice %arg5[%c0_i32_386, %c0_i32_387] : memref<512x128xf32, #tpu.memory_space<any>> -> memref<1x128xf32, #tpu.memory_space<any>>
    %c0_i32_388 = arith.constant 0 : i32
    %c0_i32_389 = arith.constant 0 : i32
    %449 = tpu.memref_slice %arg7[%c2_i32_384, %c0_i32_388, %c0_i32_389] : memref<4x1x128xf32, #tpu.memory_space<vmem>> -> memref<1x1x128xf32, #tpu.memory_space<vmem>>
    %450 = tpu.memref_squeeze %449 : memref<1x1x128xf32, #tpu.memory_space<vmem>> -> memref<1x128xf32, #tpu.memory_space<vmem>>
    %451 = tpu.memref_slice %arg8[%c2_i32_385] : memref<4x!tpu.dma_semaphore, #tpu.memory_space<semaphore_mem>> -> memref<1x!tpu.dma_semaphore, #tpu.memory_space<semaphore_mem>>
    %452 = tpu.memref_squeeze %451 : memref<1x!tpu.dma_semaphore, #tpu.memory_space<semaphore_mem>> -> memref<!tpu.dma_semaphore, #tpu.memory_space<semaphore_mem>>
    tpu.wait_dma2 semaphore(%452 : memref<!tpu.dma_semaphore, #tpu.memory_space<semaphore_mem>>) src(%448 : memref<1x128xf32, #tpu.memory_space<any>>) dst(%450 : memref<1x128xf32, #tpu.memory_space<vmem>>)
    %c29_i32 = arith.constant 29 : i32
    %453 = arith.addi %0, %c29_i32 : i32
    %454 = arith.index_cast %453 : i32 to index
    %455 = memref.load %arg1[%454] : memref<64xi32, #tpu.memory_space<smem>>
    %c1_i32_390 = arith.constant 1 : i32
    %c1_i32_391 = arith.constant 1 : i32
    %c0_i32_392 = arith.constant 0 : i32
    %456 = tpu.memref_slice %arg5[%455, %c0_i32_392] : memref<512x128xf32, #tpu.memory_space<any>> -> memref<1x128xf32, #tpu.memory_space<any>>
    %c0_i32_393 = arith.constant 0 : i32
    %c0_i32_394 = arith.constant 0 : i32
    %457 = tpu.memref_slice %arg7[%c1_i32_390, %c0_i32_393, %c0_i32_394] : memref<4x1x128xf32, #tpu.memory_space<vmem>> -> memref<1x1x128xf32, #tpu.memory_space<vmem>>
    %458 = tpu.memref_squeeze %457 : memref<1x1x128xf32, #tpu.memory_space<vmem>> -> memref<1x128xf32, #tpu.memory_space<vmem>>
    %459 = tpu.memref_slice %arg8[%c1_i32_391] : memref<4x!tpu.dma_semaphore, #tpu.memory_space<semaphore_mem>> -> memref<1x!tpu.dma_semaphore, #tpu.memory_space<semaphore_mem>>
    %460 = tpu.memref_squeeze %459 : memref<1x!tpu.dma_semaphore, #tpu.memory_space<semaphore_mem>> -> memref<!tpu.dma_semaphore, #tpu.memory_space<semaphore_mem>>
    tpu.enqueue_dma source(%456 : memref<1x128xf32, #tpu.memory_space<any>>) target(%458 : memref<1x128xf32, #tpu.memory_space<vmem>>) target_semaphore(%460 : memref<!tpu.dma_semaphore, #tpu.memory_space<semaphore_mem>>)
    %c2_395 = arith.constant 2 : index
    %c0_396 = arith.constant 0 : index
    %c0_397 = arith.constant 0 : index
    %461 = vector.load %arg7[%c2_395, %c0_396, %c0_397] : memref<4x1x128xf32, #tpu.memory_space<vmem>>, vector<1x1x128xf32>
    %462 = vector.shape_cast %461 : vector<1x1x128xf32> to vector<1x128xf32>
    %463 = arith.addf %447, %462 : vector<1x128xf32>
    %c3_i32_398 = arith.constant 3 : i32
    %c3_i32_399 = arith.constant 3 : i32
    %c0_i32_400 = arith.constant 0 : i32
    %c0_i32_401 = arith.constant 0 : i32
    %464 = tpu.memref_slice %arg5[%c0_i32_400, %c0_i32_401] : memref<512x128xf32, #tpu.memory_space<any>> -> memref<1x128xf32, #tpu.memory_space<any>>
    %c0_i32_402 = arith.constant 0 : i32
    %c0_i32_403 = arith.constant 0 : i32
    %465 = tpu.memref_slice %arg7[%c3_i32_398, %c0_i32_402, %c0_i32_403] : memref<4x1x128xf32, #tpu.memory_space<vmem>> -> memref<1x1x128xf32, #tpu.memory_space<vmem>>
    %466 = tpu.memref_squeeze %465 : memref<1x1x128xf32, #tpu.memory_space<vmem>> -> memref<1x128xf32, #tpu.memory_space<vmem>>
    %467 = tpu.memref_slice %arg8[%c3_i32_399] : memref<4x!tpu.dma_semaphore, #tpu.memory_space<semaphore_mem>> -> memref<1x!tpu.dma_semaphore, #tpu.memory_space<semaphore_mem>>
    %468 = tpu.memref_squeeze %467 : memref<1x!tpu.dma_semaphore, #tpu.memory_space<semaphore_mem>> -> memref<!tpu.dma_semaphore, #tpu.memory_space<semaphore_mem>>
    tpu.wait_dma2 semaphore(%468 : memref<!tpu.dma_semaphore, #tpu.memory_space<semaphore_mem>>) src(%464 : memref<1x128xf32, #tpu.memory_space<any>>) dst(%466 : memref<1x128xf32, #tpu.memory_space<vmem>>)
    %c30_i32 = arith.constant 30 : i32
    %469 = arith.addi %0, %c30_i32 : i32
    %470 = arith.index_cast %469 : i32 to index
    %471 = memref.load %arg1[%470] : memref<64xi32, #tpu.memory_space<smem>>
    %c2_i32_404 = arith.constant 2 : i32
    %c2_i32_405 = arith.constant 2 : i32
    %c0_i32_406 = arith.constant 0 : i32
    %472 = tpu.memref_slice %arg5[%471, %c0_i32_406] : memref<512x128xf32, #tpu.memory_space<any>> -> memref<1x128xf32, #tpu.memory_space<any>>
    %c0_i32_407 = arith.constant 0 : i32
    %c0_i32_408 = arith.constant 0 : i32
    %473 = tpu.memref_slice %arg7[%c2_i32_404, %c0_i32_407, %c0_i32_408] : memref<4x1x128xf32, #tpu.memory_space<vmem>> -> memref<1x1x128xf32, #tpu.memory_space<vmem>>
    %474 = tpu.memref_squeeze %473 : memref<1x1x128xf32, #tpu.memory_space<vmem>> -> memref<1x128xf32, #tpu.memory_space<vmem>>
    %475 = tpu.memref_slice %arg8[%c2_i32_405] : memref<4x!tpu.dma_semaphore, #tpu.memory_space<semaphore_mem>> -> memref<1x!tpu.dma_semaphore, #tpu.memory_space<semaphore_mem>>
    %476 = tpu.memref_squeeze %475 : memref<1x!tpu.dma_semaphore, #tpu.memory_space<semaphore_mem>> -> memref<!tpu.dma_semaphore, #tpu.memory_space<semaphore_mem>>
    tpu.enqueue_dma source(%472 : memref<1x128xf32, #tpu.memory_space<any>>) target(%474 : memref<1x128xf32, #tpu.memory_space<vmem>>) target_semaphore(%476 : memref<!tpu.dma_semaphore, #tpu.memory_space<semaphore_mem>>)
    %c3_409 = arith.constant 3 : index
    %c0_410 = arith.constant 0 : index
    %c0_411 = arith.constant 0 : index
    %477 = vector.load %arg7[%c3_409, %c0_410, %c0_411] : memref<4x1x128xf32, #tpu.memory_space<vmem>>, vector<1x1x128xf32>
    %478 = vector.shape_cast %477 : vector<1x1x128xf32> to vector<1x128xf32>
    %479 = arith.addf %463, %478 : vector<1x128xf32>
    %c0_i32_412 = arith.constant 0 : i32
    %c0_i32_413 = arith.constant 0 : i32
    %c0_i32_414 = arith.constant 0 : i32
    %c0_i32_415 = arith.constant 0 : i32
    %480 = tpu.memref_slice %arg5[%c0_i32_414, %c0_i32_415] : memref<512x128xf32, #tpu.memory_space<any>> -> memref<1x128xf32, #tpu.memory_space<any>>
    %c0_i32_416 = arith.constant 0 : i32
    %c0_i32_417 = arith.constant 0 : i32
    %481 = tpu.memref_slice %arg7[%c0_i32_412, %c0_i32_416, %c0_i32_417] : memref<4x1x128xf32, #tpu.memory_space<vmem>> -> memref<1x1x128xf32, #tpu.memory_space<vmem>>
    %482 = tpu.memref_squeeze %481 : memref<1x1x128xf32, #tpu.memory_space<vmem>> -> memref<1x128xf32, #tpu.memory_space<vmem>>
    %483 = tpu.memref_slice %arg8[%c0_i32_413] : memref<4x!tpu.dma_semaphore, #tpu.memory_space<semaphore_mem>> -> memref<1x!tpu.dma_semaphore, #tpu.memory_space<semaphore_mem>>
    %484 = tpu.memref_squeeze %483 : memref<1x!tpu.dma_semaphore, #tpu.memory_space<semaphore_mem>> -> memref<!tpu.dma_semaphore, #tpu.memory_space<semaphore_mem>>
    tpu.wait_dma2 semaphore(%484 : memref<!tpu.dma_semaphore, #tpu.memory_space<semaphore_mem>>) src(%480 : memref<1x128xf32, #tpu.memory_space<any>>) dst(%482 : memref<1x128xf32, #tpu.memory_space<vmem>>)
    %c31_i32 = arith.constant 31 : i32
    %485 = arith.addi %0, %c31_i32 : i32
    %486 = arith.index_cast %485 : i32 to index
    %487 = memref.load %arg1[%486] : memref<64xi32, #tpu.memory_space<smem>>
    %c3_i32_418 = arith.constant 3 : i32
    %c3_i32_419 = arith.constant 3 : i32
    %c0_i32_420 = arith.constant 0 : i32
    %488 = tpu.memref_slice %arg5[%487, %c0_i32_420] : memref<512x128xf32, #tpu.memory_space<any>> -> memref<1x128xf32, #tpu.memory_space<any>>
    %c0_i32_421 = arith.constant 0 : i32
    %c0_i32_422 = arith.constant 0 : i32
    %489 = tpu.memref_slice %arg7[%c3_i32_418, %c0_i32_421, %c0_i32_422] : memref<4x1x128xf32, #tpu.memory_space<vmem>> -> memref<1x1x128xf32, #tpu.memory_space<vmem>>
    %490 = tpu.memref_squeeze %489 : memref<1x1x128xf32, #tpu.memory_space<vmem>> -> memref<1x128xf32, #tpu.memory_space<vmem>>
    %491 = tpu.memref_slice %arg8[%c3_i32_419] : memref<4x!tpu.dma_semaphore, #tpu.memory_space<semaphore_mem>> -> memref<1x!tpu.dma_semaphore, #tpu.memory_space<semaphore_mem>>
    %492 = tpu.memref_squeeze %491 : memref<1x!tpu.dma_semaphore, #tpu.memory_space<semaphore_mem>> -> memref<!tpu.dma_semaphore, #tpu.memory_space<semaphore_mem>>
    tpu.enqueue_dma source(%488 : memref<1x128xf32, #tpu.memory_space<any>>) target(%490 : memref<1x128xf32, #tpu.memory_space<vmem>>) target_semaphore(%492 : memref<!tpu.dma_semaphore, #tpu.memory_space<semaphore_mem>>)
    %c0_423 = arith.constant 0 : index
    %c0_424 = arith.constant 0 : index
    %c0_425 = arith.constant 0 : index
    %493 = vector.load %arg7[%c0_423, %c0_424, %c0_425] : memref<4x1x128xf32, #tpu.memory_space<vmem>>, vector<1x1x128xf32>
    %494 = vector.shape_cast %493 : vector<1x1x128xf32> to vector<1x128xf32>
    %495 = arith.addf %479, %494 : vector<1x128xf32>
    %c1_i32_426 = arith.constant 1 : i32
    %c1_i32_427 = arith.constant 1 : i32
    %c0_i32_428 = arith.constant 0 : i32
    %c0_i32_429 = arith.constant 0 : i32
    %496 = tpu.memref_slice %arg5[%c0_i32_428, %c0_i32_429] : memref<512x128xf32, #tpu.memory_space<any>> -> memref<1x128xf32, #tpu.memory_space<any>>
    %c0_i32_430 = arith.constant 0 : i32
    %c0_i32_431 = arith.constant 0 : i32
    %497 = tpu.memref_slice %arg7[%c1_i32_426, %c0_i32_430, %c0_i32_431] : memref<4x1x128xf32, #tpu.memory_space<vmem>> -> memref<1x1x128xf32, #tpu.memory_space<vmem>>
    %498 = tpu.memref_squeeze %497 : memref<1x1x128xf32, #tpu.memory_space<vmem>> -> memref<1x128xf32, #tpu.memory_space<vmem>>
    %499 = tpu.memref_slice %arg8[%c1_i32_427] : memref<4x!tpu.dma_semaphore, #tpu.memory_space<semaphore_mem>> -> memref<1x!tpu.dma_semaphore, #tpu.memory_space<semaphore_mem>>
    %500 = tpu.memref_squeeze %499 : memref<1x!tpu.dma_semaphore, #tpu.memory_space<semaphore_mem>> -> memref<!tpu.dma_semaphore, #tpu.memory_space<semaphore_mem>>
    tpu.wait_dma2 semaphore(%500 : memref<!tpu.dma_semaphore, #tpu.memory_space<semaphore_mem>>) src(%496 : memref<1x128xf32, #tpu.memory_space<any>>) dst(%498 : memref<1x128xf32, #tpu.memory_space<vmem>>)
    %c32_i32 = arith.constant 32 : i32
    %501 = arith.addi %0, %c32_i32 : i32
    %502 = arith.index_cast %501 : i32 to index
    %503 = memref.load %arg1[%502] : memref<64xi32, #tpu.memory_space<smem>>
    %c0_i32_432 = arith.constant 0 : i32
    %c0_i32_433 = arith.constant 0 : i32
    %c0_i32_434 = arith.constant 0 : i32
    %504 = tpu.memref_slice %arg5[%503, %c0_i32_434] : memref<512x128xf32, #tpu.memory_space<any>> -> memref<1x128xf32, #tpu.memory_space<any>>
    %c0_i32_435 = arith.constant 0 : i32
    %c0_i32_436 = arith.constant 0 : i32
    %505 = tpu.memref_slice %arg7[%c0_i32_432, %c0_i32_435, %c0_i32_436] : memref<4x1x128xf32, #tpu.memory_space<vmem>> -> memref<1x1x128xf32, #tpu.memory_space<vmem>>
    %506 = tpu.memref_squeeze %505 : memref<1x1x128xf32, #tpu.memory_space<vmem>> -> memref<1x128xf32, #tpu.memory_space<vmem>>
    %507 = tpu.memref_slice %arg8[%c0_i32_433] : memref<4x!tpu.dma_semaphore, #tpu.memory_space<semaphore_mem>> -> memref<1x!tpu.dma_semaphore, #tpu.memory_space<semaphore_mem>>
    %508 = tpu.memref_squeeze %507 : memref<1x!tpu.dma_semaphore, #tpu.memory_space<semaphore_mem>> -> memref<!tpu.dma_semaphore, #tpu.memory_space<semaphore_mem>>
    tpu.enqueue_dma source(%504 : memref<1x128xf32, #tpu.memory_space<any>>) target(%506 : memref<1x128xf32, #tpu.memory_space<vmem>>) target_semaphore(%508 : memref<!tpu.dma_semaphore, #tpu.memory_space<semaphore_mem>>)
    %c1_437 = arith.constant 1 : index
    %c0_438 = arith.constant 0 : index
    %c0_439 = arith.constant 0 : index
    %509 = vector.load %arg7[%c1_437, %c0_438, %c0_439] : memref<4x1x128xf32, #tpu.memory_space<vmem>>, vector<1x1x128xf32>
    %510 = vector.shape_cast %509 : vector<1x1x128xf32> to vector<1x128xf32>
    %511 = arith.addf %495, %510 : vector<1x128xf32>
    %c2_i32_440 = arith.constant 2 : i32
    %c2_i32_441 = arith.constant 2 : i32
    %c0_i32_442 = arith.constant 0 : i32
    %c0_i32_443 = arith.constant 0 : i32
    %512 = tpu.memref_slice %arg5[%c0_i32_442, %c0_i32_443] : memref<512x128xf32, #tpu.memory_space<any>> -> memref<1x128xf32, #tpu.memory_space<any>>
    %c0_i32_444 = arith.constant 0 : i32
    %c0_i32_445 = arith.constant 0 : i32
    %513 = tpu.memref_slice %arg7[%c2_i32_440, %c0_i32_444, %c0_i32_445] : memref<4x1x128xf32, #tpu.memory_space<vmem>> -> memref<1x1x128xf32, #tpu.memory_space<vmem>>
    %514 = tpu.memref_squeeze %513 : memref<1x1x128xf32, #tpu.memory_space<vmem>> -> memref<1x128xf32, #tpu.memory_space<vmem>>
    %515 = tpu.memref_slice %arg8[%c2_i32_441] : memref<4x!tpu.dma_semaphore, #tpu.memory_space<semaphore_mem>> -> memref<1x!tpu.dma_semaphore, #tpu.memory_space<semaphore_mem>>
    %516 = tpu.memref_squeeze %515 : memref<1x!tpu.dma_semaphore, #tpu.memory_space<semaphore_mem>> -> memref<!tpu.dma_semaphore, #tpu.memory_space<semaphore_mem>>
    tpu.wait_dma2 semaphore(%516 : memref<!tpu.dma_semaphore, #tpu.memory_space<semaphore_mem>>) src(%512 : memref<1x128xf32, #tpu.memory_space<any>>) dst(%514 : memref<1x128xf32, #tpu.memory_space<vmem>>)
    %c33_i32 = arith.constant 33 : i32
    %517 = arith.addi %0, %c33_i32 : i32
    %518 = arith.index_cast %517 : i32 to index
    %519 = memref.load %arg1[%518] : memref<64xi32, #tpu.memory_space<smem>>
    %c1_i32_446 = arith.constant 1 : i32
    %c1_i32_447 = arith.constant 1 : i32
    %c0_i32_448 = arith.constant 0 : i32
    %520 = tpu.memref_slice %arg5[%519, %c0_i32_448] : memref<512x128xf32, #tpu.memory_space<any>> -> memref<1x128xf32, #tpu.memory_space<any>>
    %c0_i32_449 = arith.constant 0 : i32
    %c0_i32_450 = arith.constant 0 : i32
    %521 = tpu.memref_slice %arg7[%c1_i32_446, %c0_i32_449, %c0_i32_450] : memref<4x1x128xf32, #tpu.memory_space<vmem>> -> memref<1x1x128xf32, #tpu.memory_space<vmem>>
    %522 = tpu.memref_squeeze %521 : memref<1x1x128xf32, #tpu.memory_space<vmem>> -> memref<1x128xf32, #tpu.memory_space<vmem>>
    %523 = tpu.memref_slice %arg8[%c1_i32_447] : memref<4x!tpu.dma_semaphore, #tpu.memory_space<semaphore_mem>> -> memref<1x!tpu.dma_semaphore, #tpu.memory_space<semaphore_mem>>
    %524 = tpu.memref_squeeze %523 : memref<1x!tpu.dma_semaphore, #tpu.memory_space<semaphore_mem>> -> memref<!tpu.dma_semaphore, #tpu.memory_space<semaphore_mem>>
    tpu.enqueue_dma source(%520 : memref<1x128xf32, #tpu.memory_space<any>>) target(%522 : memref<1x128xf32, #tpu.memory_space<vmem>>) target_semaphore(%524 : memref<!tpu.dma_semaphore, #tpu.memory_space<semaphore_mem>>)
    %c2_451 = arith.constant 2 : index
    %c0_452 = arith.constant 0 : index
    %c0_453 = arith.constant 0 : index
    %525 = vector.load %arg7[%c2_451, %c0_452, %c0_453] : memref<4x1x128xf32, #tpu.memory_space<vmem>>, vector<1x1x128xf32>
    %526 = vector.shape_cast %525 : vector<1x1x128xf32> to vector<1x128xf32>
    %527 = arith.addf %511, %526 : vector<1x128xf32>
    %c3_i32_454 = arith.constant 3 : i32
    %c3_i32_455 = arith.constant 3 : i32
    %c0_i32_456 = arith.constant 0 : i32
    %c0_i32_457 = arith.constant 0 : i32
    %528 = tpu.memref_slice %arg5[%c0_i32_456, %c0_i32_457] : memref<512x128xf32, #tpu.memory_space<any>> -> memref<1x128xf32, #tpu.memory_space<any>>
    %c0_i32_458 = arith.constant 0 : i32
    %c0_i32_459 = arith.constant 0 : i32
    %529 = tpu.memref_slice %arg7[%c3_i32_454, %c0_i32_458, %c0_i32_459] : memref<4x1x128xf32, #tpu.memory_space<vmem>> -> memref<1x1x128xf32, #tpu.memory_space<vmem>>
    %530 = tpu.memref_squeeze %529 : memref<1x1x128xf32, #tpu.memory_space<vmem>> -> memref<1x128xf32, #tpu.memory_space<vmem>>
    %531 = tpu.memref_slice %arg8[%c3_i32_455] : memref<4x!tpu.dma_semaphore, #tpu.memory_space<semaphore_mem>> -> memref<1x!tpu.dma_semaphore, #tpu.memory_space<semaphore_mem>>
    %532 = tpu.memref_squeeze %531 : memref<1x!tpu.dma_semaphore, #tpu.memory_space<semaphore_mem>> -> memref<!tpu.dma_semaphore, #tpu.memory_space<semaphore_mem>>
    tpu.wait_dma2 semaphore(%532 : memref<!tpu.dma_semaphore, #tpu.memory_space<semaphore_mem>>) src(%528 : memref<1x128xf32, #tpu.memory_space<any>>) dst(%530 : memref<1x128xf32, #tpu.memory_space<vmem>>)
    %c34_i32 = arith.constant 34 : i32
    %533 = arith.addi %0, %c34_i32 : i32
    %534 = arith.index_cast %533 : i32 to index
    %535 = memref.load %arg1[%534] : memref<64xi32, #tpu.memory_space<smem>>
    %c2_i32_460 = arith.constant 2 : i32
    %c2_i32_461 = arith.constant 2 : i32
    %c0_i32_462 = arith.constant 0 : i32
    %536 = tpu.memref_slice %arg5[%535, %c0_i32_462] : memref<512x128xf32, #tpu.memory_space<any>> -> memref<1x128xf32, #tpu.memory_space<any>>
    %c0_i32_463 = arith.constant 0 : i32
    %c0_i32_464 = arith.constant 0 : i32
    %537 = tpu.memref_slice %arg7[%c2_i32_460, %c0_i32_463, %c0_i32_464] : memref<4x1x128xf32, #tpu.memory_space<vmem>> -> memref<1x1x128xf32, #tpu.memory_space<vmem>>
    %538 = tpu.memref_squeeze %537 : memref<1x1x128xf32, #tpu.memory_space<vmem>> -> memref<1x128xf32, #tpu.memory_space<vmem>>
    %539 = tpu.memref_slice %arg8[%c2_i32_461] : memref<4x!tpu.dma_semaphore, #tpu.memory_space<semaphore_mem>> -> memref<1x!tpu.dma_semaphore, #tpu.memory_space<semaphore_mem>>
    %540 = tpu.memref_squeeze %539 : memref<1x!tpu.dma_semaphore, #tpu.memory_space<semaphore_mem>> -> memref<!tpu.dma_semaphore, #tpu.memory_space<semaphore_mem>>
    tpu.enqueue_dma source(%536 : memref<1x128xf32, #tpu.memory_space<any>>) target(%538 : memref<1x128xf32, #tpu.memory_space<vmem>>) target_semaphore(%540 : memref<!tpu.dma_semaphore, #tpu.memory_space<semaphore_mem>>)
    %c3_465 = arith.constant 3 : index
    %c0_466 = arith.constant 0 : index
    %c0_467 = arith.constant 0 : index
    %541 = vector.load %arg7[%c3_465, %c0_466, %c0_467] : memref<4x1x128xf32, #tpu.memory_space<vmem>>, vector<1x1x128xf32>
    %542 = vector.shape_cast %541 : vector<1x1x128xf32> to vector<1x128xf32>
    %543 = arith.addf %527, %542 : vector<1x128xf32>
    %c3_468 = arith.constant 3 : index
    %c0_469 = arith.constant 0 : index
    %544 = vector.load %arg9[%c3_468, %c0_469] : memref<8x128xf32, #tpu.memory_space<vmem>>, vector<1x128xf32>
    tpu.vector_store %arg9[%c3_468, %c0_469], %543 {strides = array<i32>} : memref<8x128xf32, #tpu.memory_space<vmem>>, vector<1x128xf32>,
    %cst_470 = arith.constant 0.000000e+00 : f32
    %545 = vector.broadcast %cst_470 : f32 to vector<1x128xf32>
    %c0_i32_471 = arith.constant 0 : i32
    %c0_i32_472 = arith.constant 0 : i32
    %c0_i32_473 = arith.constant 0 : i32
    %c0_i32_474 = arith.constant 0 : i32
    %546 = tpu.memref_slice %arg5[%c0_i32_473, %c0_i32_474] : memref<512x128xf32, #tpu.memory_space<any>> -> memref<1x128xf32, #tpu.memory_space<any>>
    %c0_i32_475 = arith.constant 0 : i32
    %c0_i32_476 = arith.constant 0 : i32
    %547 = tpu.memref_slice %arg7[%c0_i32_471, %c0_i32_475, %c0_i32_476] : memref<4x1x128xf32, #tpu.memory_space<vmem>> -> memref<1x1x128xf32, #tpu.memory_space<vmem>>
    %548 = tpu.memref_squeeze %547 : memref<1x1x128xf32, #tpu.memory_space<vmem>> -> memref<1x128xf32, #tpu.memory_space<vmem>>
    %549 = tpu.memref_slice %arg8[%c0_i32_472] : memref<4x!tpu.dma_semaphore, #tpu.memory_space<semaphore_mem>> -> memref<1x!tpu.dma_semaphore, #tpu.memory_space<semaphore_mem>>
    %550 = tpu.memref_squeeze %549 : memref<1x!tpu.dma_semaphore, #tpu.memory_space<semaphore_mem>> -> memref<!tpu.dma_semaphore, #tpu.memory_space<semaphore_mem>>
    tpu.wait_dma2 semaphore(%550 : memref<!tpu.dma_semaphore, #tpu.memory_space<semaphore_mem>>) src(%546 : memref<1x128xf32, #tpu.memory_space<any>>) dst(%548 : memref<1x128xf32, #tpu.memory_space<vmem>>)
    %c35_i32 = arith.constant 35 : i32
    %551 = arith.addi %0, %c35_i32 : i32
    %552 = arith.index_cast %551 : i32 to index
    %553 = memref.load %arg1[%552] : memref<64xi32, #tpu.memory_space<smem>>
    %c3_i32_477 = arith.constant 3 : i32
    %c3_i32_478 = arith.constant 3 : i32
    %c0_i32_479 = arith.constant 0 : i32
    %554 = tpu.memref_slice %arg5[%553, %c0_i32_479] : memref<512x128xf32, #tpu.memory_space<any>> -> memref<1x128xf32, #tpu.memory_space<any>>
    %c0_i32_480 = arith.constant 0 : i32
    %c0_i32_481 = arith.constant 0 : i32
    %555 = tpu.memref_slice %arg7[%c3_i32_477, %c0_i32_480, %c0_i32_481] : memref<4x1x128xf32, #tpu.memory_space<vmem>> -> memref<1x1x128xf32, #tpu.memory_space<vmem>>
    %556 = tpu.memref_squeeze %555 : memref<1x1x128xf32, #tpu.memory_space<vmem>> -> memref<1x128xf32, #tpu.memory_space<vmem>>
    %557 = tpu.memref_slice %arg8[%c3_i32_478] : memref<4x!tpu.dma_semaphore, #tpu.memory_space<semaphore_mem>> -> memref<1x!tpu.dma_semaphore, #tpu.memory_space<semaphore_mem>>
    %558 = tpu.memref_squeeze %557 : memref<1x!tpu.dma_semaphore, #tpu.memory_space<semaphore_mem>> -> memref<!tpu.dma_semaphore, #tpu.memory_space<semaphore_mem>>
    tpu.enqueue_dma source(%554 : memref<1x128xf32, #tpu.memory_space<any>>) target(%556 : memref<1x128xf32, #tpu.memory_space<vmem>>) target_semaphore(%558 : memref<!tpu.dma_semaphore, #tpu.memory_space<semaphore_mem>>)
    %c0_482 = arith.constant 0 : index
    %c0_483 = arith.constant 0 : index
    %c0_484 = arith.constant 0 : index
    %559 = vector.load %arg7[%c0_482, %c0_483, %c0_484] : memref<4x1x128xf32, #tpu.memory_space<vmem>>, vector<1x1x128xf32>
    %560 = vector.shape_cast %559 : vector<1x1x128xf32> to vector<1x128xf32>
    %561 = arith.addf %545, %560 : vector<1x128xf32>
    %c1_i32_485 = arith.constant 1 : i32
    %c1_i32_486 = arith.constant 1 : i32
    %c0_i32_487 = arith.constant 0 : i32
    %c0_i32_488 = arith.constant 0 : i32
    %562 = tpu.memref_slice %arg5[%c0_i32_487, %c0_i32_488] : memref<512x128xf32, #tpu.memory_space<any>> -> memref<1x128xf32, #tpu.memory_space<any>>
    %c0_i32_489 = arith.constant 0 : i32
    %c0_i32_490 = arith.constant 0 : i32
    %563 = tpu.memref_slice %arg7[%c1_i32_485, %c0_i32_489, %c0_i32_490] : memref<4x1x128xf32, #tpu.memory_space<vmem>> -> memref<1x1x128xf32, #tpu.memory_space<vmem>>
    %564 = tpu.memref_squeeze %563 : memref<1x1x128xf32, #tpu.memory_space<vmem>> -> memref<1x128xf32, #tpu.memory_space<vmem>>
    %565 = tpu.memref_slice %arg8[%c1_i32_486] : memref<4x!tpu.dma_semaphore, #tpu.memory_space<semaphore_mem>> -> memref<1x!tpu.dma_semaphore, #tpu.memory_space<semaphore_mem>>
    %566 = tpu.memref_squeeze %565 : memref<1x!tpu.dma_semaphore, #tpu.memory_space<semaphore_mem>> -> memref<!tpu.dma_semaphore, #tpu.memory_space<semaphore_mem>>
    tpu.wait_dma2 semaphore(%566 : memref<!tpu.dma_semaphore, #tpu.memory_space<semaphore_mem>>) src(%562 : memref<1x128xf32, #tpu.memory_space<any>>) dst(%564 : memref<1x128xf32, #tpu.memory_space<vmem>>)
    %c36_i32 = arith.constant 36 : i32
    %567 = arith.addi %0, %c36_i32 : i32
    %568 = arith.index_cast %567 : i32 to index
    %569 = memref.load %arg1[%568] : memref<64xi32, #tpu.memory_space<smem>>
    %c0_i32_491 = arith.constant 0 : i32
    %c0_i32_492 = arith.constant 0 : i32
    %c0_i32_493 = arith.constant 0 : i32
    %570 = tpu.memref_slice %arg5[%569, %c0_i32_493] : memref<512x128xf32, #tpu.memory_space<any>> -> memref<1x128xf32, #tpu.memory_space<any>>
    %c0_i32_494 = arith.constant 0 : i32
    %c0_i32_495 = arith.constant 0 : i32
    %571 = tpu.memref_slice %arg7[%c0_i32_491, %c0_i32_494, %c0_i32_495] : memref<4x1x128xf32, #tpu.memory_space<vmem>> -> memref<1x1x128xf32, #tpu.memory_space<vmem>>
    %572 = tpu.memref_squeeze %571 : memref<1x1x128xf32, #tpu.memory_space<vmem>> -> memref<1x128xf32, #tpu.memory_space<vmem>>
    %573 = tpu.memref_slice %arg8[%c0_i32_492] : memref<4x!tpu.dma_semaphore, #tpu.memory_space<semaphore_mem>> -> memref<1x!tpu.dma_semaphore, #tpu.memory_space<semaphore_mem>>
    %574 = tpu.memref_squeeze %573 : memref<1x!tpu.dma_semaphore, #tpu.memory_space<semaphore_mem>> -> memref<!tpu.dma_semaphore, #tpu.memory_space<semaphore_mem>>
    tpu.enqueue_dma source(%570 : memref<1x128xf32, #tpu.memory_space<any>>) target(%572 : memref<1x128xf32, #tpu.memory_space<vmem>>) target_semaphore(%574 : memref<!tpu.dma_semaphore, #tpu.memory_space<semaphore_mem>>)
    %c1_496 = arith.constant 1 : index
    %c0_497 = arith.constant 0 : index
    %c0_498 = arith.constant 0 : index
    %575 = vector.load %arg7[%c1_496, %c0_497, %c0_498] : memref<4x1x128xf32, #tpu.memory_space<vmem>>, vector<1x1x128xf32>
    %576 = vector.shape_cast %575 : vector<1x1x128xf32> to vector<1x128xf32>
    %577 = arith.addf %561, %576 : vector<1x128xf32>
    %c2_i32_499 = arith.constant 2 : i32
    %c2_i32_500 = arith.constant 2 : i32
    %c0_i32_501 = arith.constant 0 : i32
    %c0_i32_502 = arith.constant 0 : i32
    %578 = tpu.memref_slice %arg5[%c0_i32_501, %c0_i32_502] : memref<512x128xf32, #tpu.memory_space<any>> -> memref<1x128xf32, #tpu.memory_space<any>>
    %c0_i32_503 = arith.constant 0 : i32
    %c0_i32_504 = arith.constant 0 : i32
    %579 = tpu.memref_slice %arg7[%c2_i32_499, %c0_i32_503, %c0_i32_504] : memref<4x1x128xf32, #tpu.memory_space<vmem>> -> memref<1x1x128xf32, #tpu.memory_space<vmem>>
    %580 = tpu.memref_squeeze %579 : memref<1x1x128xf32, #tpu.memory_space<vmem>> -> memref<1x128xf32, #tpu.memory_space<vmem>>
    %581 = tpu.memref_slice %arg8[%c2_i32_500] : memref<4x!tpu.dma_semaphore, #tpu.memory_space<semaphore_mem>> -> memref<1x!tpu.dma_semaphore, #tpu.memory_space<semaphore_mem>>
    %582 = tpu.memref_squeeze %581 : memref<1x!tpu.dma_semaphore, #tpu.memory_space<semaphore_mem>> -> memref<!tpu.dma_semaphore, #tpu.memory_space<semaphore_mem>>
    tpu.wait_dma2 semaphore(%582 : memref<!tpu.dma_semaphore, #tpu.memory_space<semaphore_mem>>) src(%578 : memref<1x128xf32, #tpu.memory_space<any>>) dst(%580 : memref<1x128xf32, #tpu.memory_space<vmem>>)
    %c37_i32 = arith.constant 37 : i32
    %583 = arith.addi %0, %c37_i32 : i32
    %584 = arith.index_cast %583 : i32 to index
    %585 = memref.load %arg1[%584] : memref<64xi32, #tpu.memory_space<smem>>
    %c1_i32_505 = arith.constant 1 : i32
    %c1_i32_506 = arith.constant 1 : i32
    %c0_i32_507 = arith.constant 0 : i32
    %586 = tpu.memref_slice %arg5[%585, %c0_i32_507] : memref<512x128xf32, #tpu.memory_space<any>> -> memref<1x128xf32, #tpu.memory_space<any>>
    %c0_i32_508 = arith.constant 0 : i32
    %c0_i32_509 = arith.constant 0 : i32
    %587 = tpu.memref_slice %arg7[%c1_i32_505, %c0_i32_508, %c0_i32_509] : memref<4x1x128xf32, #tpu.memory_space<vmem>> -> memref<1x1x128xf32, #tpu.memory_space<vmem>>
    %588 = tpu.memref_squeeze %587 : memref<1x1x128xf32, #tpu.memory_space<vmem>> -> memref<1x128xf32, #tpu.memory_space<vmem>>
    %589 = tpu.memref_slice %arg8[%c1_i32_506] : memref<4x!tpu.dma_semaphore, #tpu.memory_space<semaphore_mem>> -> memref<1x!tpu.dma_semaphore, #tpu.memory_space<semaphore_mem>>
    %590 = tpu.memref_squeeze %589 : memref<1x!tpu.dma_semaphore, #tpu.memory_space<semaphore_mem>> -> memref<!tpu.dma_semaphore, #tpu.memory_space<semaphore_mem>>
    tpu.enqueue_dma source(%586 : memref<1x128xf32, #tpu.memory_space<any>>) target(%588 : memref<1x128xf32, #tpu.memory_space<vmem>>) target_semaphore(%590 : memref<!tpu.dma_semaphore, #tpu.memory_space<semaphore_mem>>)
    %c2_510 = arith.constant 2 : index
    %c0_511 = arith.constant 0 : index
    %c0_512 = arith.constant 0 : index
    %591 = vector.load %arg7[%c2_510, %c0_511, %c0_512] : memref<4x1x128xf32, #tpu.memory_space<vmem>>, vector<1x1x128xf32>
    %592 = vector.shape_cast %591 : vector<1x1x128xf32> to vector<1x128xf32>
    %593 = arith.addf %577, %592 : vector<1x128xf32>
    %c3_i32_513 = arith.constant 3 : i32
    %c3_i32_514 = arith.constant 3 : i32
    %c0_i32_515 = arith.constant 0 : i32
    %c0_i32_516 = arith.constant 0 : i32
    %594 = tpu.memref_slice %arg5[%c0_i32_515, %c0_i32_516] : memref<512x128xf32, #tpu.memory_space<any>> -> memref<1x128xf32, #tpu.memory_space<any>>
    %c0_i32_517 = arith.constant 0 : i32
    %c0_i32_518 = arith.constant 0 : i32
    %595 = tpu.memref_slice %arg7[%c3_i32_513, %c0_i32_517, %c0_i32_518] : memref<4x1x128xf32, #tpu.memory_space<vmem>> -> memref<1x1x128xf32, #tpu.memory_space<vmem>>
    %596 = tpu.memref_squeeze %595 : memref<1x1x128xf32, #tpu.memory_space<vmem>> -> memref<1x128xf32, #tpu.memory_space<vmem>>
    %597 = tpu.memref_slice %arg8[%c3_i32_514] : memref<4x!tpu.dma_semaphore, #tpu.memory_space<semaphore_mem>> -> memref<1x!tpu.dma_semaphore, #tpu.memory_space<semaphore_mem>>
    %598 = tpu.memref_squeeze %597 : memref<1x!tpu.dma_semaphore, #tpu.memory_space<semaphore_mem>> -> memref<!tpu.dma_semaphore, #tpu.memory_space<semaphore_mem>>
    tpu.wait_dma2 semaphore(%598 : memref<!tpu.dma_semaphore, #tpu.memory_space<semaphore_mem>>) src(%594 : memref<1x128xf32, #tpu.memory_space<any>>) dst(%596 : memref<1x128xf32, #tpu.memory_space<vmem>>)
    %c38_i32 = arith.constant 38 : i32
    %599 = arith.addi %0, %c38_i32 : i32
    %600 = arith.index_cast %599 : i32 to index
    %601 = memref.load %arg1[%600] : memref<64xi32, #tpu.memory_space<smem>>
    %c2_i32_519 = arith.constant 2 : i32
    %c2_i32_520 = arith.constant 2 : i32
    %c0_i32_521 = arith.constant 0 : i32
    %602 = tpu.memref_slice %arg5[%601, %c0_i32_521] : memref<512x128xf32, #tpu.memory_space<any>> -> memref<1x128xf32, #tpu.memory_space<any>>
    %c0_i32_522 = arith.constant 0 : i32
    %c0_i32_523 = arith.constant 0 : i32
    %603 = tpu.memref_slice %arg7[%c2_i32_519, %c0_i32_522, %c0_i32_523] : memref<4x1x128xf32, #tpu.memory_space<vmem>> -> memref<1x1x128xf32, #tpu.memory_space<vmem>>
    %604 = tpu.memref_squeeze %603 : memref<1x1x128xf32, #tpu.memory_space<vmem>> -> memref<1x128xf32, #tpu.memory_space<vmem>>
    %605 = tpu.memref_slice %arg8[%c2_i32_520] : memref<4x!tpu.dma_semaphore, #tpu.memory_space<semaphore_mem>> -> memref<1x!tpu.dma_semaphore, #tpu.memory_space<semaphore_mem>>
    %606 = tpu.memref_squeeze %605 : memref<1x!tpu.dma_semaphore, #tpu.memory_space<semaphore_mem>> -> memref<!tpu.dma_semaphore, #tpu.memory_space<semaphore_mem>>
    tpu.enqueue_dma source(%602 : memref<1x128xf32, #tpu.memory_space<any>>) target(%604 : memref<1x128xf32, #tpu.memory_space<vmem>>) target_semaphore(%606 : memref<!tpu.dma_semaphore, #tpu.memory_space<semaphore_mem>>)
    %c3_524 = arith.constant 3 : index
    %c0_525 = arith.constant 0 : index
    %c0_526 = arith.constant 0 : index
    %607 = vector.load %arg7[%c3_524, %c0_525, %c0_526] : memref<4x1x128xf32, #tpu.memory_space<vmem>>, vector<1x1x128xf32>
    %608 = vector.shape_cast %607 : vector<1x1x128xf32> to vector<1x128xf32>
    %609 = arith.addf %593, %608 : vector<1x128xf32>
    %c0_i32_527 = arith.constant 0 : i32
    %c0_i32_528 = arith.constant 0 : i32
    %c0_i32_529 = arith.constant 0 : i32
    %c0_i32_530 = arith.constant 0 : i32
    %610 = tpu.memref_slice %arg5[%c0_i32_529, %c0_i32_530] : memref<512x128xf32, #tpu.memory_space<any>> -> memref<1x128xf32, #tpu.memory_space<any>>
    %c0_i32_531 = arith.constant 0 : i32
    %c0_i32_532 = arith.constant 0 : i32
    %611 = tpu.memref_slice %arg7[%c0_i32_527, %c0_i32_531, %c0_i32_532] : memref<4x1x128xf32, #tpu.memory_space<vmem>> -> memref<1x1x128xf32, #tpu.memory_space<vmem>>
    %612 = tpu.memref_squeeze %611 : memref<1x1x128xf32, #tpu.memory_space<vmem>> -> memref<1x128xf32, #tpu.memory_space<vmem>>
    %613 = tpu.memref_slice %arg8[%c0_i32_528] : memref<4x!tpu.dma_semaphore, #tpu.memory_space<semaphore_mem>> -> memref<1x!tpu.dma_semaphore, #tpu.memory_space<semaphore_mem>>
    %614 = tpu.memref_squeeze %613 : memref<1x!tpu.dma_semaphore, #tpu.memory_space<semaphore_mem>> -> memref<!tpu.dma_semaphore, #tpu.memory_space<semaphore_mem>>
    tpu.wait_dma2 semaphore(%614 : memref<!tpu.dma_semaphore, #tpu.memory_space<semaphore_mem>>) src(%610 : memref<1x128xf32, #tpu.memory_space<any>>) dst(%612 : memref<1x128xf32, #tpu.memory_space<vmem>>)
    %c39_i32 = arith.constant 39 : i32
    %615 = arith.addi %0, %c39_i32 : i32
    %616 = arith.index_cast %615 : i32 to index
    %617 = memref.load %arg1[%616] : memref<64xi32, #tpu.memory_space<smem>>
    %c3_i32_533 = arith.constant 3 : i32
    %c3_i32_534 = arith.constant 3 : i32
    %c0_i32_535 = arith.constant 0 : i32
    %618 = tpu.memref_slice %arg5[%617, %c0_i32_535] : memref<512x128xf32, #tpu.memory_space<any>> -> memref<1x128xf32, #tpu.memory_space<any>>
    %c0_i32_536 = arith.constant 0 : i32
    %c0_i32_537 = arith.constant 0 : i32
    %619 = tpu.memref_slice %arg7[%c3_i32_533, %c0_i32_536, %c0_i32_537] : memref<4x1x128xf32, #tpu.memory_space<vmem>> -> memref<1x1x128xf32, #tpu.memory_space<vmem>>
    %620 = tpu.memref_squeeze %619 : memref<1x1x128xf32, #tpu.memory_space<vmem>> -> memref<1x128xf32, #tpu.memory_space<vmem>>
    %621 = tpu.memref_slice %arg8[%c3_i32_534] : memref<4x!tpu.dma_semaphore, #tpu.memory_space<semaphore_mem>> -> memref<1x!tpu.dma_semaphore, #tpu.memory_space<semaphore_mem>>
    %622 = tpu.memref_squeeze %621 : memref<1x!tpu.dma_semaphore, #tpu.memory_space<semaphore_mem>> -> memref<!tpu.dma_semaphore, #tpu.memory_space<semaphore_mem>>
    tpu.enqueue_dma source(%618 : memref<1x128xf32, #tpu.memory_space<any>>) target(%620 : memref<1x128xf32, #tpu.memory_space<vmem>>) target_semaphore(%622 : memref<!tpu.dma_semaphore, #tpu.memory_space<semaphore_mem>>)
    %c0_538 = arith.constant 0 : index
    %c0_539 = arith.constant 0 : index
    %c0_540 = arith.constant 0 : index
    %623 = vector.load %arg7[%c0_538, %c0_539, %c0_540] : memref<4x1x128xf32, #tpu.memory_space<vmem>>, vector<1x1x128xf32>
    %624 = vector.shape_cast %623 : vector<1x1x128xf32> to vector<1x128xf32>
    %625 = arith.addf %609, %624 : vector<1x128xf32>
    %c1_i32_541 = arith.constant 1 : i32
    %c1_i32_542 = arith.constant 1 : i32
    %c0_i32_543 = arith.constant 0 : i32
    %c0_i32_544 = arith.constant 0 : i32
    %626 = tpu.memref_slice %arg5[%c0_i32_543, %c0_i32_544] : memref<512x128xf32, #tpu.memory_space<any>> -> memref<1x128xf32, #tpu.memory_space<any>>
    %c0_i32_545 = arith.constant 0 : i32
    %c0_i32_546 = arith.constant 0 : i32
    %627 = tpu.memref_slice %arg7[%c1_i32_541, %c0_i32_545, %c0_i32_546] : memref<4x1x128xf32, #tpu.memory_space<vmem>> -> memref<1x1x128xf32, #tpu.memory_space<vmem>>
    %628 = tpu.memref_squeeze %627 : memref<1x1x128xf32, #tpu.memory_space<vmem>> -> memref<1x128xf32, #tpu.memory_space<vmem>>
    %629 = tpu.memref_slice %arg8[%c1_i32_542] : memref<4x!tpu.dma_semaphore, #tpu.memory_space<semaphore_mem>> -> memref<1x!tpu.dma_semaphore, #tpu.memory_space<semaphore_mem>>
    %630 = tpu.memref_squeeze %629 : memref<1x!tpu.dma_semaphore, #tpu.memory_space<semaphore_mem>> -> memref<!tpu.dma_semaphore, #tpu.memory_space<semaphore_mem>>
    tpu.wait_dma2 semaphore(%630 : memref<!tpu.dma_semaphore, #tpu.memory_space<semaphore_mem>>) src(%626 : memref<1x128xf32, #tpu.memory_space<any>>) dst(%628 : memref<1x128xf32, #tpu.memory_space<vmem>>)
    %c40_i32 = arith.constant 40 : i32
    %631 = arith.addi %0, %c40_i32 : i32
    %632 = arith.index_cast %631 : i32 to index
    %633 = memref.load %arg1[%632] : memref<64xi32, #tpu.memory_space<smem>>
    %c0_i32_547 = arith.constant 0 : i32
    %c0_i32_548 = arith.constant 0 : i32
    %c0_i32_549 = arith.constant 0 : i32
    %634 = tpu.memref_slice %arg5[%633, %c0_i32_549] : memref<512x128xf32, #tpu.memory_space<any>> -> memref<1x128xf32, #tpu.memory_space<any>>
    %c0_i32_550 = arith.constant 0 : i32
    %c0_i32_551 = arith.constant 0 : i32
    %635 = tpu.memref_slice %arg7[%c0_i32_547, %c0_i32_550, %c0_i32_551] : memref<4x1x128xf32, #tpu.memory_space<vmem>> -> memref<1x1x128xf32, #tpu.memory_space<vmem>>
    %636 = tpu.memref_squeeze %635 : memref<1x1x128xf32, #tpu.memory_space<vmem>> -> memref<1x128xf32, #tpu.memory_space<vmem>>
    %637 = tpu.memref_slice %arg8[%c0_i32_548] : memref<4x!tpu.dma_semaphore, #tpu.memory_space<semaphore_mem>> -> memref<1x!tpu.dma_semaphore, #tpu.memory_space<semaphore_mem>>
    %638 = tpu.memref_squeeze %637 : memref<1x!tpu.dma_semaphore, #tpu.memory_space<semaphore_mem>> -> memref<!tpu.dma_semaphore, #tpu.memory_space<semaphore_mem>>
    tpu.enqueue_dma source(%634 : memref<1x128xf32, #tpu.memory_space<any>>) target(%636 : memref<1x128xf32, #tpu.memory_space<vmem>>) target_semaphore(%638 : memref<!tpu.dma_semaphore, #tpu.memory_space<semaphore_mem>>)
    %c1_552 = arith.constant 1 : index
    %c0_553 = arith.constant 0 : index
    %c0_554 = arith.constant 0 : index
    %639 = vector.load %arg7[%c1_552, %c0_553, %c0_554] : memref<4x1x128xf32, #tpu.memory_space<vmem>>, vector<1x1x128xf32>
    %640 = vector.shape_cast %639 : vector<1x1x128xf32> to vector<1x128xf32>
    %641 = arith.addf %625, %640 : vector<1x128xf32>
    %c2_i32_555 = arith.constant 2 : i32
    %c2_i32_556 = arith.constant 2 : i32
    %c0_i32_557 = arith.constant 0 : i32
    %c0_i32_558 = arith.constant 0 : i32
    %642 = tpu.memref_slice %arg5[%c0_i32_557, %c0_i32_558] : memref<512x128xf32, #tpu.memory_space<any>> -> memref<1x128xf32, #tpu.memory_space<any>>
    %c0_i32_559 = arith.constant 0 : i32
    %c0_i32_560 = arith.constant 0 : i32
    %643 = tpu.memref_slice %arg7[%c2_i32_555, %c0_i32_559, %c0_i32_560] : memref<4x1x128xf32, #tpu.memory_space<vmem>> -> memref<1x1x128xf32, #tpu.memory_space<vmem>>
    %644 = tpu.memref_squeeze %643 : memref<1x1x128xf32, #tpu.memory_space<vmem>> -> memref<1x128xf32, #tpu.memory_space<vmem>>
    %645 = tpu.memref_slice %arg8[%c2_i32_556] : memref<4x!tpu.dma_semaphore, #tpu.memory_space<semaphore_mem>> -> memref<1x!tpu.dma_semaphore, #tpu.memory_space<semaphore_mem>>
    %646 = tpu.memref_squeeze %645 : memref<1x!tpu.dma_semaphore, #tpu.memory_space<semaphore_mem>> -> memref<!tpu.dma_semaphore, #tpu.memory_space<semaphore_mem>>
    tpu.wait_dma2 semaphore(%646 : memref<!tpu.dma_semaphore, #tpu.memory_space<semaphore_mem>>) src(%642 : memref<1x128xf32, #tpu.memory_space<any>>) dst(%644 : memref<1x128xf32, #tpu.memory_space<vmem>>)
    %c41_i32 = arith.constant 41 : i32
    %647 = arith.addi %0, %c41_i32 : i32
    %648 = arith.index_cast %647 : i32 to index
    %649 = memref.load %arg1[%648] : memref<64xi32, #tpu.memory_space<smem>>
    %c1_i32_561 = arith.constant 1 : i32
    %c1_i32_562 = arith.constant 1 : i32
    %c0_i32_563 = arith.constant 0 : i32
    %650 = tpu.memref_slice %arg5[%649, %c0_i32_563] : memref<512x128xf32, #tpu.memory_space<any>> -> memref<1x128xf32, #tpu.memory_space<any>>
    %c0_i32_564 = arith.constant 0 : i32
    %c0_i32_565 = arith.constant 0 : i32
    %651 = tpu.memref_slice %arg7[%c1_i32_561, %c0_i32_564, %c0_i32_565] : memref<4x1x128xf32, #tpu.memory_space<vmem>> -> memref<1x1x128xf32, #tpu.memory_space<vmem>>
    %652 = tpu.memref_squeeze %651 : memref<1x1x128xf32, #tpu.memory_space<vmem>> -> memref<1x128xf32, #tpu.memory_space<vmem>>
    %653 = tpu.memref_slice %arg8[%c1_i32_562] : memref<4x!tpu.dma_semaphore, #tpu.memory_space<semaphore_mem>> -> memref<1x!tpu.dma_semaphore, #tpu.memory_space<semaphore_mem>>
    %654 = tpu.memref_squeeze %653 : memref<1x!tpu.dma_semaphore, #tpu.memory_space<semaphore_mem>> -> memref<!tpu.dma_semaphore, #tpu.memory_space<semaphore_mem>>
    tpu.enqueue_dma source(%650 : memref<1x128xf32, #tpu.memory_space<any>>) target(%652 : memref<1x128xf32, #tpu.memory_space<vmem>>) target_semaphore(%654 : memref<!tpu.dma_semaphore, #tpu.memory_space<semaphore_mem>>)
    %c2_566 = arith.constant 2 : index
    %c0_567 = arith.constant 0 : index
    %c0_568 = arith.constant 0 : index
    %655 = vector.load %arg7[%c2_566, %c0_567, %c0_568] : memref<4x1x128xf32, #tpu.memory_space<vmem>>, vector<1x1x128xf32>
    %656 = vector.shape_cast %655 : vector<1x1x128xf32> to vector<1x128xf32>
    %657 = arith.addf %641, %656 : vector<1x128xf32>
    %c3_i32_569 = arith.constant 3 : i32
    %c3_i32_570 = arith.constant 3 : i32
    %c0_i32_571 = arith.constant 0 : i32
    %c0_i32_572 = arith.constant 0 : i32
    %658 = tpu.memref_slice %arg5[%c0_i32_571, %c0_i32_572] : memref<512x128xf32, #tpu.memory_space<any>> -> memref<1x128xf32, #tpu.memory_space<any>>
    %c0_i32_573 = arith.constant 0 : i32
    %c0_i32_574 = arith.constant 0 : i32
    %659 = tpu.memref_slice %arg7[%c3_i32_569, %c0_i32_573, %c0_i32_574] : memref<4x1x128xf32, #tpu.memory_space<vmem>> -> memref<1x1x128xf32, #tpu.memory_space<vmem>>
    %660 = tpu.memref_squeeze %659 : memref<1x1x128xf32, #tpu.memory_space<vmem>> -> memref<1x128xf32, #tpu.memory_space<vmem>>
    %661 = tpu.memref_slice %arg8[%c3_i32_570] : memref<4x!tpu.dma_semaphore, #tpu.memory_space<semaphore_mem>> -> memref<1x!tpu.dma_semaphore, #tpu.memory_space<semaphore_mem>>
    %662 = tpu.memref_squeeze %661 : memref<1x!tpu.dma_semaphore, #tpu.memory_space<semaphore_mem>> -> memref<!tpu.dma_semaphore, #tpu.memory_space<semaphore_mem>>
    tpu.wait_dma2 semaphore(%662 : memref<!tpu.dma_semaphore, #tpu.memory_space<semaphore_mem>>) src(%658 : memref<1x128xf32, #tpu.memory_space<any>>) dst(%660 : memref<1x128xf32, #tpu.memory_space<vmem>>)
    %c42_i32 = arith.constant 42 : i32
    %663 = arith.addi %0, %c42_i32 : i32
    %664 = arith.index_cast %663 : i32 to index
    %665 = memref.load %arg1[%664] : memref<64xi32, #tpu.memory_space<smem>>
    %c2_i32_575 = arith.constant 2 : i32
    %c2_i32_576 = arith.constant 2 : i32
    %c0_i32_577 = arith.constant 0 : i32
    %666 = tpu.memref_slice %arg5[%665, %c0_i32_577] : memref<512x128xf32, #tpu.memory_space<any>> -> memref<1x128xf32, #tpu.memory_space<any>>
    %c0_i32_578 = arith.constant 0 : i32
    %c0_i32_579 = arith.constant 0 : i32
    %667 = tpu.memref_slice %arg7[%c2_i32_575, %c0_i32_578, %c0_i32_579] : memref<4x1x128xf32, #tpu.memory_space<vmem>> -> memref<1x1x128xf32, #tpu.memory_space<vmem>>
    %668 = tpu.memref_squeeze %667 : memref<1x1x128xf32, #tpu.memory_space<vmem>> -> memref<1x128xf32, #tpu.memory_space<vmem>>
    %669 = tpu.memref_slice %arg8[%c2_i32_576] : memref<4x!tpu.dma_semaphore, #tpu.memory_space<semaphore_mem>> -> memref<1x!tpu.dma_semaphore, #tpu.memory_space<semaphore_mem>>
    %670 = tpu.memref_squeeze %669 : memref<1x!tpu.dma_semaphore, #tpu.memory_space<semaphore_mem>> -> memref<!tpu.dma_semaphore, #tpu.memory_space<semaphore_mem>>
    tpu.enqueue_dma source(%666 : memref<1x128xf32, #tpu.memory_space<any>>) target(%668 : memref<1x128xf32, #tpu.memory_space<vmem>>) target_semaphore(%670 : memref<!tpu.dma_semaphore, #tpu.memory_space<semaphore_mem>>)
    %c3_580 = arith.constant 3 : index
    %c0_581 = arith.constant 0 : index
    %c0_582 = arith.constant 0 : index
    %671 = vector.load %arg7[%c3_580, %c0_581, %c0_582] : memref<4x1x128xf32, #tpu.memory_space<vmem>>, vector<1x1x128xf32>
    %672 = vector.shape_cast %671 : vector<1x1x128xf32> to vector<1x128xf32>
    %673 = arith.addf %657, %672 : vector<1x128xf32>
    %c4 = arith.constant 4 : index
    %c0_583 = arith.constant 0 : index
    %674 = vector.load %arg9[%c4, %c0_583] : memref<8x128xf32, #tpu.memory_space<vmem>>, vector<1x128xf32>
    tpu.vector_store %arg9[%c4, %c0_583], %673 {strides = array<i32>} : memref<8x128xf32, #tpu.memory_space<vmem>>, vector<1x128xf32>,
    %cst_584 = arith.constant 0.000000e+00 : f32
    %675 = vector.broadcast %cst_584 : f32 to vector<1x128xf32>
    %c0_i32_585 = arith.constant 0 : i32
    %c0_i32_586 = arith.constant 0 : i32
    %c0_i32_587 = arith.constant 0 : i32
    %c0_i32_588 = arith.constant 0 : i32
    %676 = tpu.memref_slice %arg5[%c0_i32_587, %c0_i32_588] : memref<512x128xf32, #tpu.memory_space<any>> -> memref<1x128xf32, #tpu.memory_space<any>>
    %c0_i32_589 = arith.constant 0 : i32
    %c0_i32_590 = arith.constant 0 : i32
    %677 = tpu.memref_slice %arg7[%c0_i32_585, %c0_i32_589, %c0_i32_590] : memref<4x1x128xf32, #tpu.memory_space<vmem>> -> memref<1x1x128xf32, #tpu.memory_space<vmem>>
    %678 = tpu.memref_squeeze %677 : memref<1x1x128xf32, #tpu.memory_space<vmem>> -> memref<1x128xf32, #tpu.memory_space<vmem>>
    %679 = tpu.memref_slice %arg8[%c0_i32_586] : memref<4x!tpu.dma_semaphore, #tpu.memory_space<semaphore_mem>> -> memref<1x!tpu.dma_semaphore, #tpu.memory_space<semaphore_mem>>
    %680 = tpu.memref_squeeze %679 : memref<1x!tpu.dma_semaphore, #tpu.memory_space<semaphore_mem>> -> memref<!tpu.dma_semaphore, #tpu.memory_space<semaphore_mem>>
    tpu.wait_dma2 semaphore(%680 : memref<!tpu.dma_semaphore, #tpu.memory_space<semaphore_mem>>) src(%676 : memref<1x128xf32, #tpu.memory_space<any>>) dst(%678 : memref<1x128xf32, #tpu.memory_space<vmem>>)
    %c43_i32 = arith.constant 43 : i32
    %681 = arith.addi %0, %c43_i32 : i32
    %682 = arith.index_cast %681 : i32 to index
    %683 = memref.load %arg1[%682] : memref<64xi32, #tpu.memory_space<smem>>
    %c3_i32_591 = arith.constant 3 : i32
    %c3_i32_592 = arith.constant 3 : i32
    %c0_i32_593 = arith.constant 0 : i32
    %684 = tpu.memref_slice %arg5[%683, %c0_i32_593] : memref<512x128xf32, #tpu.memory_space<any>> -> memref<1x128xf32, #tpu.memory_space<any>>
    %c0_i32_594 = arith.constant 0 : i32
    %c0_i32_595 = arith.constant 0 : i32
    %685 = tpu.memref_slice %arg7[%c3_i32_591, %c0_i32_594, %c0_i32_595] : memref<4x1x128xf32, #tpu.memory_space<vmem>> -> memref<1x1x128xf32, #tpu.memory_space<vmem>>
    %686 = tpu.memref_squeeze %685 : memref<1x1x128xf32, #tpu.memory_space<vmem>> -> memref<1x128xf32, #tpu.memory_space<vmem>>
    %687 = tpu.memref_slice %arg8[%c3_i32_592] : memref<4x!tpu.dma_semaphore, #tpu.memory_space<semaphore_mem>> -> memref<1x!tpu.dma_semaphore, #tpu.memory_space<semaphore_mem>>
    %688 = tpu.memref_squeeze %687 : memref<1x!tpu.dma_semaphore, #tpu.memory_space<semaphore_mem>> -> memref<!tpu.dma_semaphore, #tpu.memory_space<semaphore_mem>>
    tpu.enqueue_dma source(%684 : memref<1x128xf32, #tpu.memory_space<any>>) target(%686 : memref<1x128xf32, #tpu.memory_space<vmem>>) target_semaphore(%688 : memref<!tpu.dma_semaphore, #tpu.memory_space<semaphore_mem>>)
    %c0_596 = arith.constant 0 : index
    %c0_597 = arith.constant 0 : index
    %c0_598 = arith.constant 0 : index
    %689 = vector.load %arg7[%c0_596, %c0_597, %c0_598] : memref<4x1x128xf32, #tpu.memory_space<vmem>>, vector<1x1x128xf32>
    %690 = vector.shape_cast %689 : vector<1x1x128xf32> to vector<1x128xf32>
    %691 = arith.addf %675, %690 : vector<1x128xf32>
    %c1_i32_599 = arith.constant 1 : i32
    %c1_i32_600 = arith.constant 1 : i32
    %c0_i32_601 = arith.constant 0 : i32
    %c0_i32_602 = arith.constant 0 : i32
    %692 = tpu.memref_slice %arg5[%c0_i32_601, %c0_i32_602] : memref<512x128xf32, #tpu.memory_space<any>> -> memref<1x128xf32, #tpu.memory_space<any>>
    %c0_i32_603 = arith.constant 0 : i32
    %c0_i32_604 = arith.constant 0 : i32
    %693 = tpu.memref_slice %arg7[%c1_i32_599, %c0_i32_603, %c0_i32_604] : memref<4x1x128xf32, #tpu.memory_space<vmem>> -> memref<1x1x128xf32, #tpu.memory_space<vmem>>
    %694 = tpu.memref_squeeze %693 : memref<1x1x128xf32, #tpu.memory_space<vmem>> -> memref<1x128xf32, #tpu.memory_space<vmem>>
    %695 = tpu.memref_slice %arg8[%c1_i32_600] : memref<4x!tpu.dma_semaphore, #tpu.memory_space<semaphore_mem>> -> memref<1x!tpu.dma_semaphore, #tpu.memory_space<semaphore_mem>>
    %696 = tpu.memref_squeeze %695 : memref<1x!tpu.dma_semaphore, #tpu.memory_space<semaphore_mem>> -> memref<!tpu.dma_semaphore, #tpu.memory_space<semaphore_mem>>
    tpu.wait_dma2 semaphore(%696 : memref<!tpu.dma_semaphore, #tpu.memory_space<semaphore_mem>>) src(%692 : memref<1x128xf32, #tpu.memory_space<any>>) dst(%694 : memref<1x128xf32, #tpu.memory_space<vmem>>)
    %c44_i32 = arith.constant 44 : i32
    %697 = arith.addi %0, %c44_i32 : i32
    %698 = arith.index_cast %697 : i32 to index
    %699 = memref.load %arg1[%698] : memref<64xi32, #tpu.memory_space<smem>>
    %c0_i32_605 = arith.constant 0 : i32
    %c0_i32_606 = arith.constant 0 : i32
    %c0_i32_607 = arith.constant 0 : i32
    %700 = tpu.memref_slice %arg5[%699, %c0_i32_607] : memref<512x128xf32, #tpu.memory_space<any>> -> memref<1x128xf32, #tpu.memory_space<any>>
    %c0_i32_608 = arith.constant 0 : i32
    %c0_i32_609 = arith.constant 0 : i32
    %701 = tpu.memref_slice %arg7[%c0_i32_605, %c0_i32_608, %c0_i32_609] : memref<4x1x128xf32, #tpu.memory_space<vmem>> -> memref<1x1x128xf32, #tpu.memory_space<vmem>>
    %702 = tpu.memref_squeeze %701 : memref<1x1x128xf32, #tpu.memory_space<vmem>> -> memref<1x128xf32, #tpu.memory_space<vmem>>
    %703 = tpu.memref_slice %arg8[%c0_i32_606] : memref<4x!tpu.dma_semaphore, #tpu.memory_space<semaphore_mem>> -> memref<1x!tpu.dma_semaphore, #tpu.memory_space<semaphore_mem>>
    %704 = tpu.memref_squeeze %703 : memref<1x!tpu.dma_semaphore, #tpu.memory_space<semaphore_mem>> -> memref<!tpu.dma_semaphore, #tpu.memory_space<semaphore_mem>>
    tpu.enqueue_dma source(%700 : memref<1x128xf32, #tpu.memory_space<any>>) target(%702 : memref<1x128xf32, #tpu.memory_space<vmem>>) target_semaphore(%704 : memref<!tpu.dma_semaphore, #tpu.memory_space<semaphore_mem>>)
    %c1_610 = arith.constant 1 : index
    %c0_611 = arith.constant 0 : index
    %c0_612 = arith.constant 0 : index
    %705 = vector.load %arg7[%c1_610, %c0_611, %c0_612] : memref<4x1x128xf32, #tpu.memory_space<vmem>>, vector<1x1x128xf32>
    %706 = vector.shape_cast %705 : vector<1x1x128xf32> to vector<1x128xf32>
    %707 = arith.addf %691, %706 : vector<1x128xf32>
    %c2_i32_613 = arith.constant 2 : i32
    %c2_i32_614 = arith.constant 2 : i32
    %c0_i32_615 = arith.constant 0 : i32
    %c0_i32_616 = arith.constant 0 : i32
    %708 = tpu.memref_slice %arg5[%c0_i32_615, %c0_i32_616] : memref<512x128xf32, #tpu.memory_space<any>> -> memref<1x128xf32, #tpu.memory_space<any>>
    %c0_i32_617 = arith.constant 0 : i32
    %c0_i32_618 = arith.constant 0 : i32
    %709 = tpu.memref_slice %arg7[%c2_i32_613, %c0_i32_617, %c0_i32_618] : memref<4x1x128xf32, #tpu.memory_space<vmem>> -> memref<1x1x128xf32, #tpu.memory_space<vmem>>
    %710 = tpu.memref_squeeze %709 : memref<1x1x128xf32, #tpu.memory_space<vmem>> -> memref<1x128xf32, #tpu.memory_space<vmem>>
    %711 = tpu.memref_slice %arg8[%c2_i32_614] : memref<4x!tpu.dma_semaphore, #tpu.memory_space<semaphore_mem>> -> memref<1x!tpu.dma_semaphore, #tpu.memory_space<semaphore_mem>>
    %712 = tpu.memref_squeeze %711 : memref<1x!tpu.dma_semaphore, #tpu.memory_space<semaphore_mem>> -> memref<!tpu.dma_semaphore, #tpu.memory_space<semaphore_mem>>
    tpu.wait_dma2 semaphore(%712 : memref<!tpu.dma_semaphore, #tpu.memory_space<semaphore_mem>>) src(%708 : memref<1x128xf32, #tpu.memory_space<any>>) dst(%710 : memref<1x128xf32, #tpu.memory_space<vmem>>)
    %c45_i32 = arith.constant 45 : i32
    %713 = arith.addi %0, %c45_i32 : i32
    %714 = arith.index_cast %713 : i32 to index
    %715 = memref.load %arg1[%714] : memref<64xi32, #tpu.memory_space<smem>>
    %c1_i32_619 = arith.constant 1 : i32
    %c1_i32_620 = arith.constant 1 : i32
    %c0_i32_621 = arith.constant 0 : i32
    %716 = tpu.memref_slice %arg5[%715, %c0_i32_621] : memref<512x128xf32, #tpu.memory_space<any>> -> memref<1x128xf32, #tpu.memory_space<any>>
    %c0_i32_622 = arith.constant 0 : i32
    %c0_i32_623 = arith.constant 0 : i32
    %717 = tpu.memref_slice %arg7[%c1_i32_619, %c0_i32_622, %c0_i32_623] : memref<4x1x128xf32, #tpu.memory_space<vmem>> -> memref<1x1x128xf32, #tpu.memory_space<vmem>>
    %718 = tpu.memref_squeeze %717 : memref<1x1x128xf32, #tpu.memory_space<vmem>> -> memref<1x128xf32, #tpu.memory_space<vmem>>
    %719 = tpu.memref_slice %arg8[%c1_i32_620] : memref<4x!tpu.dma_semaphore, #tpu.memory_space<semaphore_mem>> -> memref<1x!tpu.dma_semaphore, #tpu.memory_space<semaphore_mem>>
    %720 = tpu.memref_squeeze %719 : memref<1x!tpu.dma_semaphore, #tpu.memory_space<semaphore_mem>> -> memref<!tpu.dma_semaphore, #tpu.memory_space<semaphore_mem>>
    tpu.enqueue_dma source(%716 : memref<1x128xf32, #tpu.memory_space<any>>) target(%718 : memref<1x128xf32, #tpu.memory_space<vmem>>) target_semaphore(%720 : memref<!tpu.dma_semaphore, #tpu.memory_space<semaphore_mem>>)
    %c2_624 = arith.constant 2 : index
    %c0_625 = arith.constant 0 : index
    %c0_626 = arith.constant 0 : index
    %721 = vector.load %arg7[%c2_624, %c0_625, %c0_626] : memref<4x1x128xf32, #tpu.memory_space<vmem>>, vector<1x1x128xf32>
    %722 = vector.shape_cast %721 : vector<1x1x128xf32> to vector<1x128xf32>
    %723 = arith.addf %707, %722 : vector<1x128xf32>
    %c3_i32_627 = arith.constant 3 : i32
    %c3_i32_628 = arith.constant 3 : i32
    %c0_i32_629 = arith.constant 0 : i32
    %c0_i32_630 = arith.constant 0 : i32
    %724 = tpu.memref_slice %arg5[%c0_i32_629, %c0_i32_630] : memref<512x128xf32, #tpu.memory_space<any>> -> memref<1x128xf32, #tpu.memory_space<any>>
    %c0_i32_631 = arith.constant 0 : i32
    %c0_i32_632 = arith.constant 0 : i32
    %725 = tpu.memref_slice %arg7[%c3_i32_627, %c0_i32_631, %c0_i32_632] : memref<4x1x128xf32, #tpu.memory_space<vmem>> -> memref<1x1x128xf32, #tpu.memory_space<vmem>>
    %726 = tpu.memref_squeeze %725 : memref<1x1x128xf32, #tpu.memory_space<vmem>> -> memref<1x128xf32, #tpu.memory_space<vmem>>
    %727 = tpu.memref_slice %arg8[%c3_i32_628] : memref<4x!tpu.dma_semaphore, #tpu.memory_space<semaphore_mem>> -> memref<1x!tpu.dma_semaphore, #tpu.memory_space<semaphore_mem>>
    %728 = tpu.memref_squeeze %727 : memref<1x!tpu.dma_semaphore, #tpu.memory_space<semaphore_mem>> -> memref<!tpu.dma_semaphore, #tpu.memory_space<semaphore_mem>>
    tpu.wait_dma2 semaphore(%728 : memref<!tpu.dma_semaphore, #tpu.memory_space<semaphore_mem>>) src(%724 : memref<1x128xf32, #tpu.memory_space<any>>) dst(%726 : memref<1x128xf32, #tpu.memory_space<vmem>>)
    %c46_i32 = arith.constant 46 : i32
    %729 = arith.addi %0, %c46_i32 : i32
    %730 = arith.index_cast %729 : i32 to index
    %731 = memref.load %arg1[%730] : memref<64xi32, #tpu.memory_space<smem>>
    %c2_i32_633 = arith.constant 2 : i32
    %c2_i32_634 = arith.constant 2 : i32
    %c0_i32_635 = arith.constant 0 : i32
    %732 = tpu.memref_slice %arg5[%731, %c0_i32_635] : memref<512x128xf32, #tpu.memory_space<any>> -> memref<1x128xf32, #tpu.memory_space<any>>
    %c0_i32_636 = arith.constant 0 : i32
    %c0_i32_637 = arith.constant 0 : i32
    %733 = tpu.memref_slice %arg7[%c2_i32_633, %c0_i32_636, %c0_i32_637] : memref<4x1x128xf32, #tpu.memory_space<vmem>> -> memref<1x1x128xf32, #tpu.memory_space<vmem>>
    %734 = tpu.memref_squeeze %733 : memref<1x1x128xf32, #tpu.memory_space<vmem>> -> memref<1x128xf32, #tpu.memory_space<vmem>>
    %735 = tpu.memref_slice %arg8[%c2_i32_634] : memref<4x!tpu.dma_semaphore, #tpu.memory_space<semaphore_mem>> -> memref<1x!tpu.dma_semaphore, #tpu.memory_space<semaphore_mem>>
    %736 = tpu.memref_squeeze %735 : memref<1x!tpu.dma_semaphore, #tpu.memory_space<semaphore_mem>> -> memref<!tpu.dma_semaphore, #tpu.memory_space<semaphore_mem>>
    tpu.enqueue_dma source(%732 : memref<1x128xf32, #tpu.memory_space<any>>) target(%734 : memref<1x128xf32, #tpu.memory_space<vmem>>) target_semaphore(%736 : memref<!tpu.dma_semaphore, #tpu.memory_space<semaphore_mem>>)
    %c3_638 = arith.constant 3 : index
    %c0_639 = arith.constant 0 : index
    %c0_640 = arith.constant 0 : index
    %737 = vector.load %arg7[%c3_638, %c0_639, %c0_640] : memref<4x1x128xf32, #tpu.memory_space<vmem>>, vector<1x1x128xf32>
    %738 = vector.shape_cast %737 : vector<1x1x128xf32> to vector<1x128xf32>
    %739 = arith.addf %723, %738 : vector<1x128xf32>
    %c0_i32_641 = arith.constant 0 : i32
    %c0_i32_642 = arith.constant 0 : i32
    %c0_i32_643 = arith.constant 0 : i32
    %c0_i32_644 = arith.constant 0 : i32
    %740 = tpu.memref_slice %arg5[%c0_i32_643, %c0_i32_644] : memref<512x128xf32, #tpu.memory_space<any>> -> memref<1x128xf32, #tpu.memory_space<any>>
    %c0_i32_645 = arith.constant 0 : i32
    %c0_i32_646 = arith.constant 0 : i32
    %741 = tpu.memref_slice %arg7[%c0_i32_641, %c0_i32_645, %c0_i32_646] : memref<4x1x128xf32, #tpu.memory_space<vmem>> -> memref<1x1x128xf32, #tpu.memory_space<vmem>>
    %742 = tpu.memref_squeeze %741 : memref<1x1x128xf32, #tpu.memory_space<vmem>> -> memref<1x128xf32, #tpu.memory_space<vmem>>
    %743 = tpu.memref_slice %arg8[%c0_i32_642] : memref<4x!tpu.dma_semaphore, #tpu.memory_space<semaphore_mem>> -> memref<1x!tpu.dma_semaphore, #tpu.memory_space<semaphore_mem>>
    %744 = tpu.memref_squeeze %743 : memref<1x!tpu.dma_semaphore, #tpu.memory_space<semaphore_mem>> -> memref<!tpu.dma_semaphore, #tpu.memory_space<semaphore_mem>>
    tpu.wait_dma2 semaphore(%744 : memref<!tpu.dma_semaphore, #tpu.memory_space<semaphore_mem>>) src(%740 : memref<1x128xf32, #tpu.memory_space<any>>) dst(%742 : memref<1x128xf32, #tpu.memory_space<vmem>>)
    %c47_i32 = arith.constant 47 : i32
    %745 = arith.addi %0, %c47_i32 : i32
    %746 = arith.index_cast %745 : i32 to index
    %747 = memref.load %arg1[%746] : memref<64xi32, #tpu.memory_space<smem>>
    %c3_i32_647 = arith.constant 3 : i32
    %c3_i32_648 = arith.constant 3 : i32
    %c0_i32_649 = arith.constant 0 : i32
    %748 = tpu.memref_slice %arg5[%747, %c0_i32_649] : memref<512x128xf32, #tpu.memory_space<any>> -> memref<1x128xf32, #tpu.memory_space<any>>
    %c0_i32_650 = arith.constant 0 : i32
    %c0_i32_651 = arith.constant 0 : i32
    %749 = tpu.memref_slice %arg7[%c3_i32_647, %c0_i32_650, %c0_i32_651] : memref<4x1x128xf32, #tpu.memory_space<vmem>> -> memref<1x1x128xf32, #tpu.memory_space<vmem>>
    %750 = tpu.memref_squeeze %749 : memref<1x1x128xf32, #tpu.memory_space<vmem>> -> memref<1x128xf32, #tpu.memory_space<vmem>>
    %751 = tpu.memref_slice %arg8[%c3_i32_648] : memref<4x!tpu.dma_semaphore, #tpu.memory_space<semaphore_mem>> -> memref<1x!tpu.dma_semaphore, #tpu.memory_space<semaphore_mem>>
    %752 = tpu.memref_squeeze %751 : memref<1x!tpu.dma_semaphore, #tpu.memory_space<semaphore_mem>> -> memref<!tpu.dma_semaphore, #tpu.memory_space<semaphore_mem>>
    tpu.enqueue_dma source(%748 : memref<1x128xf32, #tpu.memory_space<any>>) target(%750 : memref<1x128xf32, #tpu.memory_space<vmem>>) target_semaphore(%752 : memref<!tpu.dma_semaphore, #tpu.memory_space<semaphore_mem>>)
    %c0_652 = arith.constant 0 : index
    %c0_653 = arith.constant 0 : index
    %c0_654 = arith.constant 0 : index
    %753 = vector.load %arg7[%c0_652, %c0_653, %c0_654] : memref<4x1x128xf32, #tpu.memory_space<vmem>>, vector<1x1x128xf32>
    %754 = vector.shape_cast %753 : vector<1x1x128xf32> to vector<1x128xf32>
    %755 = arith.addf %739, %754 : vector<1x128xf32>
    %c1_i32_655 = arith.constant 1 : i32
    %c1_i32_656 = arith.constant 1 : i32
    %c0_i32_657 = arith.constant 0 : i32
    %c0_i32_658 = arith.constant 0 : i32
    %756 = tpu.memref_slice %arg5[%c0_i32_657, %c0_i32_658] : memref<512x128xf32, #tpu.memory_space<any>> -> memref<1x128xf32, #tpu.memory_space<any>>
    %c0_i32_659 = arith.constant 0 : i32
    %c0_i32_660 = arith.constant 0 : i32
    %757 = tpu.memref_slice %arg7[%c1_i32_655, %c0_i32_659, %c0_i32_660] : memref<4x1x128xf32, #tpu.memory_space<vmem>> -> memref<1x1x128xf32, #tpu.memory_space<vmem>>
    %758 = tpu.memref_squeeze %757 : memref<1x1x128xf32, #tpu.memory_space<vmem>> -> memref<1x128xf32, #tpu.memory_space<vmem>>
    %759 = tpu.memref_slice %arg8[%c1_i32_656] : memref<4x!tpu.dma_semaphore, #tpu.memory_space<semaphore_mem>> -> memref<1x!tpu.dma_semaphore, #tpu.memory_space<semaphore_mem>>
    %760 = tpu.memref_squeeze %759 : memref<1x!tpu.dma_semaphore, #tpu.memory_space<semaphore_mem>> -> memref<!tpu.dma_semaphore, #tpu.memory_space<semaphore_mem>>
    tpu.wait_dma2 semaphore(%760 : memref<!tpu.dma_semaphore, #tpu.memory_space<semaphore_mem>>) src(%756 : memref<1x128xf32, #tpu.memory_space<any>>) dst(%758 : memref<1x128xf32, #tpu.memory_space<vmem>>)
    %c48_i32 = arith.constant 48 : i32
    %761 = arith.addi %0, %c48_i32 : i32
    %762 = arith.index_cast %761 : i32 to index
    %763 = memref.load %arg1[%762] : memref<64xi32, #tpu.memory_space<smem>>
    %c0_i32_661 = arith.constant 0 : i32
    %c0_i32_662 = arith.constant 0 : i32
    %c0_i32_663 = arith.constant 0 : i32
    %764 = tpu.memref_slice %arg5[%763, %c0_i32_663] : memref<512x128xf32, #tpu.memory_space<any>> -> memref<1x128xf32, #tpu.memory_space<any>>
    %c0_i32_664 = arith.constant 0 : i32
    %c0_i32_665 = arith.constant 0 : i32
    %765 = tpu.memref_slice %arg7[%c0_i32_661, %c0_i32_664, %c0_i32_665] : memref<4x1x128xf32, #tpu.memory_space<vmem>> -> memref<1x1x128xf32, #tpu.memory_space<vmem>>
    %766 = tpu.memref_squeeze %765 : memref<1x1x128xf32, #tpu.memory_space<vmem>> -> memref<1x128xf32, #tpu.memory_space<vmem>>
    %767 = tpu.memref_slice %arg8[%c0_i32_662] : memref<4x!tpu.dma_semaphore, #tpu.memory_space<semaphore_mem>> -> memref<1x!tpu.dma_semaphore, #tpu.memory_space<semaphore_mem>>
    %768 = tpu.memref_squeeze %767 : memref<1x!tpu.dma_semaphore, #tpu.memory_space<semaphore_mem>> -> memref<!tpu.dma_semaphore, #tpu.memory_space<semaphore_mem>>
    tpu.enqueue_dma source(%764 : memref<1x128xf32, #tpu.memory_space<any>>) target(%766 : memref<1x128xf32, #tpu.memory_space<vmem>>) target_semaphore(%768 : memref<!tpu.dma_semaphore, #tpu.memory_space<semaphore_mem>>)
    %c1_666 = arith.constant 1 : index
    %c0_667 = arith.constant 0 : index
    %c0_668 = arith.constant 0 : index
    %769 = vector.load %arg7[%c1_666, %c0_667, %c0_668] : memref<4x1x128xf32, #tpu.memory_space<vmem>>, vector<1x1x128xf32>
    %770 = vector.shape_cast %769 : vector<1x1x128xf32> to vector<1x128xf32>
    %771 = arith.addf %755, %770 : vector<1x128xf32>
    %c2_i32_669 = arith.constant 2 : i32
    %c2_i32_670 = arith.constant 2 : i32
    %c0_i32_671 = arith.constant 0 : i32
    %c0_i32_672 = arith.constant 0 : i32
    %772 = tpu.memref_slice %arg5[%c0_i32_671, %c0_i32_672] : memref<512x128xf32, #tpu.memory_space<any>> -> memref<1x128xf32, #tpu.memory_space<any>>
    %c0_i32_673 = arith.constant 0 : i32
    %c0_i32_674 = arith.constant 0 : i32
    %773 = tpu.memref_slice %arg7[%c2_i32_669, %c0_i32_673, %c0_i32_674] : memref<4x1x128xf32, #tpu.memory_space<vmem>> -> memref<1x1x128xf32, #tpu.memory_space<vmem>>
    %774 = tpu.memref_squeeze %773 : memref<1x1x128xf32, #tpu.memory_space<vmem>> -> memref<1x128xf32, #tpu.memory_space<vmem>>
    %775 = tpu.memref_slice %arg8[%c2_i32_670] : memref<4x!tpu.dma_semaphore, #tpu.memory_space<semaphore_mem>> -> memref<1x!tpu.dma_semaphore, #tpu.memory_space<semaphore_mem>>
    %776 = tpu.memref_squeeze %775 : memref<1x!tpu.dma_semaphore, #tpu.memory_space<semaphore_mem>> -> memref<!tpu.dma_semaphore, #tpu.memory_space<semaphore_mem>>
    tpu.wait_dma2 semaphore(%776 : memref<!tpu.dma_semaphore, #tpu.memory_space<semaphore_mem>>) src(%772 : memref<1x128xf32, #tpu.memory_space<any>>) dst(%774 : memref<1x128xf32, #tpu.memory_space<vmem>>)
    %c49_i32 = arith.constant 49 : i32
    %777 = arith.addi %0, %c49_i32 : i32
    %778 = arith.index_cast %777 : i32 to index
    %779 = memref.load %arg1[%778] : memref<64xi32, #tpu.memory_space<smem>>
    %c1_i32_675 = arith.constant 1 : i32
    %c1_i32_676 = arith.constant 1 : i32
    %c0_i32_677 = arith.constant 0 : i32
    %780 = tpu.memref_slice %arg5[%779, %c0_i32_677] : memref<512x128xf32, #tpu.memory_space<any>> -> memref<1x128xf32, #tpu.memory_space<any>>
    %c0_i32_678 = arith.constant 0 : i32
    %c0_i32_679 = arith.constant 0 : i32
    %781 = tpu.memref_slice %arg7[%c1_i32_675, %c0_i32_678, %c0_i32_679] : memref<4x1x128xf32, #tpu.memory_space<vmem>> -> memref<1x1x128xf32, #tpu.memory_space<vmem>>
    %782 = tpu.memref_squeeze %781 : memref<1x1x128xf32, #tpu.memory_space<vmem>> -> memref<1x128xf32, #tpu.memory_space<vmem>>
    %783 = tpu.memref_slice %arg8[%c1_i32_676] : memref<4x!tpu.dma_semaphore, #tpu.memory_space<semaphore_mem>> -> memref<1x!tpu.dma_semaphore, #tpu.memory_space<semaphore_mem>>
    %784 = tpu.memref_squeeze %783 : memref<1x!tpu.dma_semaphore, #tpu.memory_space<semaphore_mem>> -> memref<!tpu.dma_semaphore, #tpu.memory_space<semaphore_mem>>
    tpu.enqueue_dma source(%780 : memref<1x128xf32, #tpu.memory_space<any>>) target(%782 : memref<1x128xf32, #tpu.memory_space<vmem>>) target_semaphore(%784 : memref<!tpu.dma_semaphore, #tpu.memory_space<semaphore_mem>>)
    %c2_680 = arith.constant 2 : index
    %c0_681 = arith.constant 0 : index
    %c0_682 = arith.constant 0 : index
    %785 = vector.load %arg7[%c2_680, %c0_681, %c0_682] : memref<4x1x128xf32, #tpu.memory_space<vmem>>, vector<1x1x128xf32>
    %786 = vector.shape_cast %785 : vector<1x1x128xf32> to vector<1x128xf32>
    %787 = arith.addf %771, %786 : vector<1x128xf32>
    %c3_i32_683 = arith.constant 3 : i32
    %c3_i32_684 = arith.constant 3 : i32
    %c0_i32_685 = arith.constant 0 : i32
    %c0_i32_686 = arith.constant 0 : i32
    %788 = tpu.memref_slice %arg5[%c0_i32_685, %c0_i32_686] : memref<512x128xf32, #tpu.memory_space<any>> -> memref<1x128xf32, #tpu.memory_space<any>>
    %c0_i32_687 = arith.constant 0 : i32
    %c0_i32_688 = arith.constant 0 : i32
    %789 = tpu.memref_slice %arg7[%c3_i32_683, %c0_i32_687, %c0_i32_688] : memref<4x1x128xf32, #tpu.memory_space<vmem>> -> memref<1x1x128xf32, #tpu.memory_space<vmem>>
    %790 = tpu.memref_squeeze %789 : memref<1x1x128xf32, #tpu.memory_space<vmem>> -> memref<1x128xf32, #tpu.memory_space<vmem>>
    %791 = tpu.memref_slice %arg8[%c3_i32_684] : memref<4x!tpu.dma_semaphore, #tpu.memory_space<semaphore_mem>> -> memref<1x!tpu.dma_semaphore, #tpu.memory_space<semaphore_mem>>
    %792 = tpu.memref_squeeze %791 : memref<1x!tpu.dma_semaphore, #tpu.memory_space<semaphore_mem>> -> memref<!tpu.dma_semaphore, #tpu.memory_space<semaphore_mem>>
    tpu.wait_dma2 semaphore(%792 : memref<!tpu.dma_semaphore, #tpu.memory_space<semaphore_mem>>) src(%788 : memref<1x128xf32, #tpu.memory_space<any>>) dst(%790 : memref<1x128xf32, #tpu.memory_space<vmem>>)
    %c50_i32 = arith.constant 50 : i32
    %793 = arith.addi %0, %c50_i32 : i32
    %794 = arith.index_cast %793 : i32 to index
    %795 = memref.load %arg1[%794] : memref<64xi32, #tpu.memory_space<smem>>
    %c2_i32_689 = arith.constant 2 : i32
    %c2_i32_690 = arith.constant 2 : i32
    %c0_i32_691 = arith.constant 0 : i32
    %796 = tpu.memref_slice %arg5[%795, %c0_i32_691] : memref<512x128xf32, #tpu.memory_space<any>> -> memref<1x128xf32, #tpu.memory_space<any>>
    %c0_i32_692 = arith.constant 0 : i32
    %c0_i32_693 = arith.constant 0 : i32
    %797 = tpu.memref_slice %arg7[%c2_i32_689, %c0_i32_692, %c0_i32_693] : memref<4x1x128xf32, #tpu.memory_space<vmem>> -> memref<1x1x128xf32, #tpu.memory_space<vmem>>
    %798 = tpu.memref_squeeze %797 : memref<1x1x128xf32, #tpu.memory_space<vmem>> -> memref<1x128xf32, #tpu.memory_space<vmem>>
    %799 = tpu.memref_slice %arg8[%c2_i32_690] : memref<4x!tpu.dma_semaphore, #tpu.memory_space<semaphore_mem>> -> memref<1x!tpu.dma_semaphore, #tpu.memory_space<semaphore_mem>>
    %800 = tpu.memref_squeeze %799 : memref<1x!tpu.dma_semaphore, #tpu.memory_space<semaphore_mem>> -> memref<!tpu.dma_semaphore, #tpu.memory_space<semaphore_mem>>
    tpu.enqueue_dma source(%796 : memref<1x128xf32, #tpu.memory_space<any>>) target(%798 : memref<1x128xf32, #tpu.memory_space<vmem>>) target_semaphore(%800 : memref<!tpu.dma_semaphore, #tpu.memory_space<semaphore_mem>>)
    %c3_694 = arith.constant 3 : index
    %c0_695 = arith.constant 0 : index
    %c0_696 = arith.constant 0 : index
    %801 = vector.load %arg7[%c3_694, %c0_695, %c0_696] : memref<4x1x128xf32, #tpu.memory_space<vmem>>, vector<1x1x128xf32>
    %802 = vector.shape_cast %801 : vector<1x1x128xf32> to vector<1x128xf32>
    %803 = arith.addf %787, %802 : vector<1x128xf32>
    %c5 = arith.constant 5 : index
    %c0_697 = arith.constant 0 : index
    %804 = vector.load %arg9[%c5, %c0_697] : memref<8x128xf32, #tpu.memory_space<vmem>>, vector<1x128xf32>
    tpu.vector_store %arg9[%c5, %c0_697], %803 {strides = array<i32>} : memref<8x128xf32, #tpu.memory_space<vmem>>, vector<1x128xf32>,
    %cst_698 = arith.constant 0.000000e+00 : f32
    %805 = vector.broadcast %cst_698 : f32 to vector<1x128xf32>
    %c0_i32_699 = arith.constant 0 : i32
    %c0_i32_700 = arith.constant 0 : i32
    %c0_i32_701 = arith.constant 0 : i32
    %c0_i32_702 = arith.constant 0 : i32
    %806 = tpu.memref_slice %arg5[%c0_i32_701, %c0_i32_702] : memref<512x128xf32, #tpu.memory_space<any>> -> memref<1x128xf32, #tpu.memory_space<any>>
    %c0_i32_703 = arith.constant 0 : i32
    %c0_i32_704 = arith.constant 0 : i32
    %807 = tpu.memref_slice %arg7[%c0_i32_699, %c0_i32_703, %c0_i32_704] : memref<4x1x128xf32, #tpu.memory_space<vmem>> -> memref<1x1x128xf32, #tpu.memory_space<vmem>>
    %808 = tpu.memref_squeeze %807 : memref<1x1x128xf32, #tpu.memory_space<vmem>> -> memref<1x128xf32, #tpu.memory_space<vmem>>
    %809 = tpu.memref_slice %arg8[%c0_i32_700] : memref<4x!tpu.dma_semaphore, #tpu.memory_space<semaphore_mem>> -> memref<1x!tpu.dma_semaphore, #tpu.memory_space<semaphore_mem>>
    %810 = tpu.memref_squeeze %809 : memref<1x!tpu.dma_semaphore, #tpu.memory_space<semaphore_mem>> -> memref<!tpu.dma_semaphore, #tpu.memory_space<semaphore_mem>>
    tpu.wait_dma2 semaphore(%810 : memref<!tpu.dma_semaphore, #tpu.memory_space<semaphore_mem>>) src(%806 : memref<1x128xf32, #tpu.memory_space<any>>) dst(%808 : memref<1x128xf32, #tpu.memory_space<vmem>>)
    %c51_i32 = arith.constant 51 : i32
    %811 = arith.addi %0, %c51_i32 : i32
    %812 = arith.index_cast %811 : i32 to index
    %813 = memref.load %arg1[%812] : memref<64xi32, #tpu.memory_space<smem>>
    %c3_i32_705 = arith.constant 3 : i32
    %c3_i32_706 = arith.constant 3 : i32
    %c0_i32_707 = arith.constant 0 : i32
    %814 = tpu.memref_slice %arg5[%813, %c0_i32_707] : memref<512x128xf32, #tpu.memory_space<any>> -> memref<1x128xf32, #tpu.memory_space<any>>
    %c0_i32_708 = arith.constant 0 : i32
    %c0_i32_709 = arith.constant 0 : i32
    %815 = tpu.memref_slice %arg7[%c3_i32_705, %c0_i32_708, %c0_i32_709] : memref<4x1x128xf32, #tpu.memory_space<vmem>> -> memref<1x1x128xf32, #tpu.memory_space<vmem>>
    %816 = tpu.memref_squeeze %815 : memref<1x1x128xf32, #tpu.memory_space<vmem>> -> memref<1x128xf32, #tpu.memory_space<vmem>>
    %817 = tpu.memref_slice %arg8[%c3_i32_706] : memref<4x!tpu.dma_semaphore, #tpu.memory_space<semaphore_mem>> -> memref<1x!tpu.dma_semaphore, #tpu.memory_space<semaphore_mem>>
    %818 = tpu.memref_squeeze %817 : memref<1x!tpu.dma_semaphore, #tpu.memory_space<semaphore_mem>> -> memref<!tpu.dma_semaphore, #tpu.memory_space<semaphore_mem>>
    tpu.enqueue_dma source(%814 : memref<1x128xf32, #tpu.memory_space<any>>) target(%816 : memref<1x128xf32, #tpu.memory_space<vmem>>) target_semaphore(%818 : memref<!tpu.dma_semaphore, #tpu.memory_space<semaphore_mem>>)
    %c0_710 = arith.constant 0 : index
    %c0_711 = arith.constant 0 : index
    %c0_712 = arith.constant 0 : index
    %819 = vector.load %arg7[%c0_710, %c0_711, %c0_712] : memref<4x1x128xf32, #tpu.memory_space<vmem>>, vector<1x1x128xf32>
    %820 = vector.shape_cast %819 : vector<1x1x128xf32> to vector<1x128xf32>
    %821 = arith.addf %805, %820 : vector<1x128xf32>
    %c1_i32_713 = arith.constant 1 : i32
    %c1_i32_714 = arith.constant 1 : i32
    %c0_i32_715 = arith.constant 0 : i32
    %c0_i32_716 = arith.constant 0 : i32
    %822 = tpu.memref_slice %arg5[%c0_i32_715, %c0_i32_716] : memref<512x128xf32, #tpu.memory_space<any>> -> memref<1x128xf32, #tpu.memory_space<any>>
    %c0_i32_717 = arith.constant 0 : i32
    %c0_i32_718 = arith.constant 0 : i32
    %823 = tpu.memref_slice %arg7[%c1_i32_713, %c0_i32_717, %c0_i32_718] : memref<4x1x128xf32, #tpu.memory_space<vmem>> -> memref<1x1x128xf32, #tpu.memory_space<vmem>>
    %824 = tpu.memref_squeeze %823 : memref<1x1x128xf32, #tpu.memory_space<vmem>> -> memref<1x128xf32, #tpu.memory_space<vmem>>
    %825 = tpu.memref_slice %arg8[%c1_i32_714] : memref<4x!tpu.dma_semaphore, #tpu.memory_space<semaphore_mem>> -> memref<1x!tpu.dma_semaphore, #tpu.memory_space<semaphore_mem>>
    %826 = tpu.memref_squeeze %825 : memref<1x!tpu.dma_semaphore, #tpu.memory_space<semaphore_mem>> -> memref<!tpu.dma_semaphore, #tpu.memory_space<semaphore_mem>>
    tpu.wait_dma2 semaphore(%826 : memref<!tpu.dma_semaphore, #tpu.memory_space<semaphore_mem>>) src(%822 : memref<1x128xf32, #tpu.memory_space<any>>) dst(%824 : memref<1x128xf32, #tpu.memory_space<vmem>>)
    %c52_i32 = arith.constant 52 : i32
    %827 = arith.addi %0, %c52_i32 : i32
    %828 = arith.index_cast %827 : i32 to index
    %829 = memref.load %arg1[%828] : memref<64xi32, #tpu.memory_space<smem>>
    %c0_i32_719 = arith.constant 0 : i32
    %c0_i32_720 = arith.constant 0 : i32
    %c0_i32_721 = arith.constant 0 : i32
    %830 = tpu.memref_slice %arg5[%829, %c0_i32_721] : memref<512x128xf32, #tpu.memory_space<any>> -> memref<1x128xf32, #tpu.memory_space<any>>
    %c0_i32_722 = arith.constant 0 : i32
    %c0_i32_723 = arith.constant 0 : i32
    %831 = tpu.memref_slice %arg7[%c0_i32_719, %c0_i32_722, %c0_i32_723] : memref<4x1x128xf32, #tpu.memory_space<vmem>> -> memref<1x1x128xf32, #tpu.memory_space<vmem>>
    %832 = tpu.memref_squeeze %831 : memref<1x1x128xf32, #tpu.memory_space<vmem>> -> memref<1x128xf32, #tpu.memory_space<vmem>>
    %833 = tpu.memref_slice %arg8[%c0_i32_720] : memref<4x!tpu.dma_semaphore, #tpu.memory_space<semaphore_mem>> -> memref<1x!tpu.dma_semaphore, #tpu.memory_space<semaphore_mem>>
    %834 = tpu.memref_squeeze %833 : memref<1x!tpu.dma_semaphore, #tpu.memory_space<semaphore_mem>> -> memref<!tpu.dma_semaphore, #tpu.memory_space<semaphore_mem>>
    tpu.enqueue_dma source(%830 : memref<1x128xf32, #tpu.memory_space<any>>) target(%832 : memref<1x128xf32, #tpu.memory_space<vmem>>) target_semaphore(%834 : memref<!tpu.dma_semaphore, #tpu.memory_space<semaphore_mem>>)
    %c1_724 = arith.constant 1 : index
    %c0_725 = arith.constant 0 : index
    %c0_726 = arith.constant 0 : index
    %835 = vector.load %arg7[%c1_724, %c0_725, %c0_726] : memref<4x1x128xf32, #tpu.memory_space<vmem>>, vector<1x1x128xf32>
    %836 = vector.shape_cast %835 : vector<1x1x128xf32> to vector<1x128xf32>
    %837 = arith.addf %821, %836 : vector<1x128xf32>
    %c2_i32_727 = arith.constant 2 : i32
    %c2_i32_728 = arith.constant 2 : i32
    %c0_i32_729 = arith.constant 0 : i32
    %c0_i32_730 = arith.constant 0 : i32
    %838 = tpu.memref_slice %arg5[%c0_i32_729, %c0_i32_730] : memref<512x128xf32, #tpu.memory_space<any>> -> memref<1x128xf32, #tpu.memory_space<any>>
    %c0_i32_731 = arith.constant 0 : i32
    %c0_i32_732 = arith.constant 0 : i32
    %839 = tpu.memref_slice %arg7[%c2_i32_727, %c0_i32_731, %c0_i32_732] : memref<4x1x128xf32, #tpu.memory_space<vmem>> -> memref<1x1x128xf32, #tpu.memory_space<vmem>>
    %840 = tpu.memref_squeeze %839 : memref<1x1x128xf32, #tpu.memory_space<vmem>> -> memref<1x128xf32, #tpu.memory_space<vmem>>
    %841 = tpu.memref_slice %arg8[%c2_i32_728] : memref<4x!tpu.dma_semaphore, #tpu.memory_space<semaphore_mem>> -> memref<1x!tpu.dma_semaphore, #tpu.memory_space<semaphore_mem>>
    %842 = tpu.memref_squeeze %841 : memref<1x!tpu.dma_semaphore, #tpu.memory_space<semaphore_mem>> -> memref<!tpu.dma_semaphore, #tpu.memory_space<semaphore_mem>>
    tpu.wait_dma2 semaphore(%842 : memref<!tpu.dma_semaphore, #tpu.memory_space<semaphore_mem>>) src(%838 : memref<1x128xf32, #tpu.memory_space<any>>) dst(%840 : memref<1x128xf32, #tpu.memory_space<vmem>>)
    %c53_i32 = arith.constant 53 : i32
    %843 = arith.addi %0, %c53_i32 : i32
    %844 = arith.index_cast %843 : i32 to index
    %845 = memref.load %arg1[%844] : memref<64xi32, #tpu.memory_space<smem>>
    %c1_i32_733 = arith.constant 1 : i32
    %c1_i32_734 = arith.constant 1 : i32
    %c0_i32_735 = arith.constant 0 : i32
    %846 = tpu.memref_slice %arg5[%845, %c0_i32_735] : memref<512x128xf32, #tpu.memory_space<any>> -> memref<1x128xf32, #tpu.memory_space<any>>
    %c0_i32_736 = arith.constant 0 : i32
    %c0_i32_737 = arith.constant 0 : i32
    %847 = tpu.memref_slice %arg7[%c1_i32_733, %c0_i32_736, %c0_i32_737] : memref<4x1x128xf32, #tpu.memory_space<vmem>> -> memref<1x1x128xf32, #tpu.memory_space<vmem>>
    %848 = tpu.memref_squeeze %847 : memref<1x1x128xf32, #tpu.memory_space<vmem>> -> memref<1x128xf32, #tpu.memory_space<vmem>>
    %849 = tpu.memref_slice %arg8[%c1_i32_734] : memref<4x!tpu.dma_semaphore, #tpu.memory_space<semaphore_mem>> -> memref<1x!tpu.dma_semaphore, #tpu.memory_space<semaphore_mem>>
    %850 = tpu.memref_squeeze %849 : memref<1x!tpu.dma_semaphore, #tpu.memory_space<semaphore_mem>> -> memref<!tpu.dma_semaphore, #tpu.memory_space<semaphore_mem>>
    tpu.enqueue_dma source(%846 : memref<1x128xf32, #tpu.memory_space<any>>) target(%848 : memref<1x128xf32, #tpu.memory_space<vmem>>) target_semaphore(%850 : memref<!tpu.dma_semaphore, #tpu.memory_space<semaphore_mem>>)
    %c2_738 = arith.constant 2 : index
    %c0_739 = arith.constant 0 : index
    %c0_740 = arith.constant 0 : index
    %851 = vector.load %arg7[%c2_738, %c0_739, %c0_740] : memref<4x1x128xf32, #tpu.memory_space<vmem>>, vector<1x1x128xf32>
    %852 = vector.shape_cast %851 : vector<1x1x128xf32> to vector<1x128xf32>
    %853 = arith.addf %837, %852 : vector<1x128xf32>
    %c3_i32_741 = arith.constant 3 : i32
    %c3_i32_742 = arith.constant 3 : i32
    %c0_i32_743 = arith.constant 0 : i32
    %c0_i32_744 = arith.constant 0 : i32
    %854 = tpu.memref_slice %arg5[%c0_i32_743, %c0_i32_744] : memref<512x128xf32, #tpu.memory_space<any>> -> memref<1x128xf32, #tpu.memory_space<any>>
    %c0_i32_745 = arith.constant 0 : i32
    %c0_i32_746 = arith.constant 0 : i32
    %855 = tpu.memref_slice %arg7[%c3_i32_741, %c0_i32_745, %c0_i32_746] : memref<4x1x128xf32, #tpu.memory_space<vmem>> -> memref<1x1x128xf32, #tpu.memory_space<vmem>>
    %856 = tpu.memref_squeeze %855 : memref<1x1x128xf32, #tpu.memory_space<vmem>> -> memref<1x128xf32, #tpu.memory_space<vmem>>
    %857 = tpu.memref_slice %arg8[%c3_i32_742] : memref<4x!tpu.dma_semaphore, #tpu.memory_space<semaphore_mem>> -> memref<1x!tpu.dma_semaphore, #tpu.memory_space<semaphore_mem>>
    %858 = tpu.memref_squeeze %857 : memref<1x!tpu.dma_semaphore, #tpu.memory_space<semaphore_mem>> -> memref<!tpu.dma_semaphore, #tpu.memory_space<semaphore_mem>>
    tpu.wait_dma2 semaphore(%858 : memref<!tpu.dma_semaphore, #tpu.memory_space<semaphore_mem>>) src(%854 : memref<1x128xf32, #tpu.memory_space<any>>) dst(%856 : memref<1x128xf32, #tpu.memory_space<vmem>>)
    %c54_i32 = arith.constant 54 : i32
    %859 = arith.addi %0, %c54_i32 : i32
    %860 = arith.index_cast %859 : i32 to index
    %861 = memref.load %arg1[%860] : memref<64xi32, #tpu.memory_space<smem>>
    %c2_i32_747 = arith.constant 2 : i32
    %c2_i32_748 = arith.constant 2 : i32
    %c0_i32_749 = arith.constant 0 : i32
    %862 = tpu.memref_slice %arg5[%861, %c0_i32_749] : memref<512x128xf32, #tpu.memory_space<any>> -> memref<1x128xf32, #tpu.memory_space<any>>
    %c0_i32_750 = arith.constant 0 : i32
    %c0_i32_751 = arith.constant 0 : i32
    %863 = tpu.memref_slice %arg7[%c2_i32_747, %c0_i32_750, %c0_i32_751] : memref<4x1x128xf32, #tpu.memory_space<vmem>> -> memref<1x1x128xf32, #tpu.memory_space<vmem>>
    %864 = tpu.memref_squeeze %863 : memref<1x1x128xf32, #tpu.memory_space<vmem>> -> memref<1x128xf32, #tpu.memory_space<vmem>>
    %865 = tpu.memref_slice %arg8[%c2_i32_748] : memref<4x!tpu.dma_semaphore, #tpu.memory_space<semaphore_mem>> -> memref<1x!tpu.dma_semaphore, #tpu.memory_space<semaphore_mem>>
    %866 = tpu.memref_squeeze %865 : memref<1x!tpu.dma_semaphore, #tpu.memory_space<semaphore_mem>> -> memref<!tpu.dma_semaphore, #tpu.memory_space<semaphore_mem>>
    tpu.enqueue_dma source(%862 : memref<1x128xf32, #tpu.memory_space<any>>) target(%864 : memref<1x128xf32, #tpu.memory_space<vmem>>) target_semaphore(%866 : memref<!tpu.dma_semaphore, #tpu.memory_space<semaphore_mem>>)
    %c3_752 = arith.constant 3 : index
    %c0_753 = arith.constant 0 : index
    %c0_754 = arith.constant 0 : index
    %867 = vector.load %arg7[%c3_752, %c0_753, %c0_754] : memref<4x1x128xf32, #tpu.memory_space<vmem>>, vector<1x1x128xf32>
    %868 = vector.shape_cast %867 : vector<1x1x128xf32> to vector<1x128xf32>
    %869 = arith.addf %853, %868 : vector<1x128xf32>
    %c0_i32_755 = arith.constant 0 : i32
    %c0_i32_756 = arith.constant 0 : i32
    %c0_i32_757 = arith.constant 0 : i32
    %c0_i32_758 = arith.constant 0 : i32
    %870 = tpu.memref_slice %arg5[%c0_i32_757, %c0_i32_758] : memref<512x128xf32, #tpu.memory_space<any>> -> memref<1x128xf32, #tpu.memory_space<any>>
    %c0_i32_759 = arith.constant 0 : i32
    %c0_i32_760 = arith.constant 0 : i32
    %871 = tpu.memref_slice %arg7[%c0_i32_755, %c0_i32_759, %c0_i32_760] : memref<4x1x128xf32, #tpu.memory_space<vmem>> -> memref<1x1x128xf32, #tpu.memory_space<vmem>>
    %872 = tpu.memref_squeeze %871 : memref<1x1x128xf32, #tpu.memory_space<vmem>> -> memref<1x128xf32, #tpu.memory_space<vmem>>
    %873 = tpu.memref_slice %arg8[%c0_i32_756] : memref<4x!tpu.dma_semaphore, #tpu.memory_space<semaphore_mem>> -> memref<1x!tpu.dma_semaphore, #tpu.memory_space<semaphore_mem>>
    %874 = tpu.memref_squeeze %873 : memref<1x!tpu.dma_semaphore, #tpu.memory_space<semaphore_mem>> -> memref<!tpu.dma_semaphore, #tpu.memory_space<semaphore_mem>>
    tpu.wait_dma2 semaphore(%874 : memref<!tpu.dma_semaphore, #tpu.memory_space<semaphore_mem>>) src(%870 : memref<1x128xf32, #tpu.memory_space<any>>) dst(%872 : memref<1x128xf32, #tpu.memory_space<vmem>>)
    %c55_i32 = arith.constant 55 : i32
    %875 = arith.addi %0, %c55_i32 : i32
    %876 = arith.index_cast %875 : i32 to index
    %877 = memref.load %arg1[%876] : memref<64xi32, #tpu.memory_space<smem>>
    %c3_i32_761 = arith.constant 3 : i32
    %c3_i32_762 = arith.constant 3 : i32
    %c0_i32_763 = arith.constant 0 : i32
    %878 = tpu.memref_slice %arg5[%877, %c0_i32_763] : memref<512x128xf32, #tpu.memory_space<any>> -> memref<1x128xf32, #tpu.memory_space<any>>
    %c0_i32_764 = arith.constant 0 : i32
    %c0_i32_765 = arith.constant 0 : i32
    %879 = tpu.memref_slice %arg7[%c3_i32_761, %c0_i32_764, %c0_i32_765] : memref<4x1x128xf32, #tpu.memory_space<vmem>> -> memref<1x1x128xf32, #tpu.memory_space<vmem>>
    %880 = tpu.memref_squeeze %879 : memref<1x1x128xf32, #tpu.memory_space<vmem>> -> memref<1x128xf32, #tpu.memory_space<vmem>>
    %881 = tpu.memref_slice %arg8[%c3_i32_762] : memref<4x!tpu.dma_semaphore, #tpu.memory_space<semaphore_mem>> -> memref<1x!tpu.dma_semaphore, #tpu.memory_space<semaphore_mem>>
    %882 = tpu.memref_squeeze %881 : memref<1x!tpu.dma_semaphore, #tpu.memory_space<semaphore_mem>> -> memref<!tpu.dma_semaphore, #tpu.memory_space<semaphore_mem>>
    tpu.enqueue_dma source(%878 : memref<1x128xf32, #tpu.memory_space<any>>) target(%880 : memref<1x128xf32, #tpu.memory_space<vmem>>) target_semaphore(%882 : memref<!tpu.dma_semaphore, #tpu.memory_space<semaphore_mem>>)
    %c0_766 = arith.constant 0 : index
    %c0_767 = arith.constant 0 : index
    %c0_768 = arith.constant 0 : index
    %883 = vector.load %arg7[%c0_766, %c0_767, %c0_768] : memref<4x1x128xf32, #tpu.memory_space<vmem>>, vector<1x1x128xf32>
    %884 = vector.shape_cast %883 : vector<1x1x128xf32> to vector<1x128xf32>
    %885 = arith.addf %869, %884 : vector<1x128xf32>
    %c1_i32_769 = arith.constant 1 : i32
    %c1_i32_770 = arith.constant 1 : i32
    %c0_i32_771 = arith.constant 0 : i32
    %c0_i32_772 = arith.constant 0 : i32
    %886 = tpu.memref_slice %arg5[%c0_i32_771, %c0_i32_772] : memref<512x128xf32, #tpu.memory_space<any>> -> memref<1x128xf32, #tpu.memory_space<any>>
    %c0_i32_773 = arith.constant 0 : i32
    %c0_i32_774 = arith.constant 0 : i32
    %887 = tpu.memref_slice %arg7[%c1_i32_769, %c0_i32_773, %c0_i32_774] : memref<4x1x128xf32, #tpu.memory_space<vmem>> -> memref<1x1x128xf32, #tpu.memory_space<vmem>>
    %888 = tpu.memref_squeeze %887 : memref<1x1x128xf32, #tpu.memory_space<vmem>> -> memref<1x128xf32, #tpu.memory_space<vmem>>
    %889 = tpu.memref_slice %arg8[%c1_i32_770] : memref<4x!tpu.dma_semaphore, #tpu.memory_space<semaphore_mem>> -> memref<1x!tpu.dma_semaphore, #tpu.memory_space<semaphore_mem>>
    %890 = tpu.memref_squeeze %889 : memref<1x!tpu.dma_semaphore, #tpu.memory_space<semaphore_mem>> -> memref<!tpu.dma_semaphore, #tpu.memory_space<semaphore_mem>>
    tpu.wait_dma2 semaphore(%890 : memref<!tpu.dma_semaphore, #tpu.memory_space<semaphore_mem>>) src(%886 : memref<1x128xf32, #tpu.memory_space<any>>) dst(%888 : memref<1x128xf32, #tpu.memory_space<vmem>>)
    %c56_i32 = arith.constant 56 : i32
    %891 = arith.addi %0, %c56_i32 : i32
    %892 = arith.index_cast %891 : i32 to index
    %893 = memref.load %arg1[%892] : memref<64xi32, #tpu.memory_space<smem>>
    %c0_i32_775 = arith.constant 0 : i32
    %c0_i32_776 = arith.constant 0 : i32
    %c0_i32_777 = arith.constant 0 : i32
    %894 = tpu.memref_slice %arg5[%893, %c0_i32_777] : memref<512x128xf32, #tpu.memory_space<any>> -> memref<1x128xf32, #tpu.memory_space<any>>
    %c0_i32_778 = arith.constant 0 : i32
    %c0_i32_779 = arith.constant 0 : i32
    %895 = tpu.memref_slice %arg7[%c0_i32_775, %c0_i32_778, %c0_i32_779] : memref<4x1x128xf32, #tpu.memory_space<vmem>> -> memref<1x1x128xf32, #tpu.memory_space<vmem>>
    %896 = tpu.memref_squeeze %895 : memref<1x1x128xf32, #tpu.memory_space<vmem>> -> memref<1x128xf32, #tpu.memory_space<vmem>>
    %897 = tpu.memref_slice %arg8[%c0_i32_776] : memref<4x!tpu.dma_semaphore, #tpu.memory_space<semaphore_mem>> -> memref<1x!tpu.dma_semaphore, #tpu.memory_space<semaphore_mem>>
    %898 = tpu.memref_squeeze %897 : memref<1x!tpu.dma_semaphore, #tpu.memory_space<semaphore_mem>> -> memref<!tpu.dma_semaphore, #tpu.memory_space<semaphore_mem>>
    tpu.enqueue_dma source(%894 : memref<1x128xf32, #tpu.memory_space<any>>) target(%896 : memref<1x128xf32, #tpu.memory_space<vmem>>) target_semaphore(%898 : memref<!tpu.dma_semaphore, #tpu.memory_space<semaphore_mem>>)
    %c1_780 = arith.constant 1 : index
    %c0_781 = arith.constant 0 : index
    %c0_782 = arith.constant 0 : index
    %899 = vector.load %arg7[%c1_780, %c0_781, %c0_782] : memref<4x1x128xf32, #tpu.memory_space<vmem>>, vector<1x1x128xf32>
    %900 = vector.shape_cast %899 : vector<1x1x128xf32> to vector<1x128xf32>
    %901 = arith.addf %885, %900 : vector<1x128xf32>
    %c2_i32_783 = arith.constant 2 : i32
    %c2_i32_784 = arith.constant 2 : i32
    %c0_i32_785 = arith.constant 0 : i32
    %c0_i32_786 = arith.constant 0 : i32
    %902 = tpu.memref_slice %arg5[%c0_i32_785, %c0_i32_786] : memref<512x128xf32, #tpu.memory_space<any>> -> memref<1x128xf32, #tpu.memory_space<any>>
    %c0_i32_787 = arith.constant 0 : i32
    %c0_i32_788 = arith.constant 0 : i32
    %903 = tpu.memref_slice %arg7[%c2_i32_783, %c0_i32_787, %c0_i32_788] : memref<4x1x128xf32, #tpu.memory_space<vmem>> -> memref<1x1x128xf32, #tpu.memory_space<vmem>>
    %904 = tpu.memref_squeeze %903 : memref<1x1x128xf32, #tpu.memory_space<vmem>> -> memref<1x128xf32, #tpu.memory_space<vmem>>
    %905 = tpu.memref_slice %arg8[%c2_i32_784] : memref<4x!tpu.dma_semaphore, #tpu.memory_space<semaphore_mem>> -> memref<1x!tpu.dma_semaphore, #tpu.memory_space<semaphore_mem>>
    %906 = tpu.memref_squeeze %905 : memref<1x!tpu.dma_semaphore, #tpu.memory_space<semaphore_mem>> -> memref<!tpu.dma_semaphore, #tpu.memory_space<semaphore_mem>>
    tpu.wait_dma2 semaphore(%906 : memref<!tpu.dma_semaphore, #tpu.memory_space<semaphore_mem>>) src(%902 : memref<1x128xf32, #tpu.memory_space<any>>) dst(%904 : memref<1x128xf32, #tpu.memory_space<vmem>>)
    %c57_i32 = arith.constant 57 : i32
    %907 = arith.addi %0, %c57_i32 : i32
    %908 = arith.index_cast %907 : i32 to index
    %909 = memref.load %arg1[%908] : memref<64xi32, #tpu.memory_space<smem>>
    %c1_i32_789 = arith.constant 1 : i32
    %c1_i32_790 = arith.constant 1 : i32
    %c0_i32_791 = arith.constant 0 : i32
    %910 = tpu.memref_slice %arg5[%909, %c0_i32_791] : memref<512x128xf32, #tpu.memory_space<any>> -> memref<1x128xf32, #tpu.memory_space<any>>
    %c0_i32_792 = arith.constant 0 : i32
    %c0_i32_793 = arith.constant 0 : i32
    %911 = tpu.memref_slice %arg7[%c1_i32_789, %c0_i32_792, %c0_i32_793] : memref<4x1x128xf32, #tpu.memory_space<vmem>> -> memref<1x1x128xf32, #tpu.memory_space<vmem>>
    %912 = tpu.memref_squeeze %911 : memref<1x1x128xf32, #tpu.memory_space<vmem>> -> memref<1x128xf32, #tpu.memory_space<vmem>>
    %913 = tpu.memref_slice %arg8[%c1_i32_790] : memref<4x!tpu.dma_semaphore, #tpu.memory_space<semaphore_mem>> -> memref<1x!tpu.dma_semaphore, #tpu.memory_space<semaphore_mem>>
    %914 = tpu.memref_squeeze %913 : memref<1x!tpu.dma_semaphore, #tpu.memory_space<semaphore_mem>> -> memref<!tpu.dma_semaphore, #tpu.memory_space<semaphore_mem>>
    tpu.enqueue_dma source(%910 : memref<1x128xf32, #tpu.memory_space<any>>) target(%912 : memref<1x128xf32, #tpu.memory_space<vmem>>) target_semaphore(%914 : memref<!tpu.dma_semaphore, #tpu.memory_space<semaphore_mem>>)
    %c2_794 = arith.constant 2 : index
    %c0_795 = arith.constant 0 : index
    %c0_796 = arith.constant 0 : index
    %915 = vector.load %arg7[%c2_794, %c0_795, %c0_796] : memref<4x1x128xf32, #tpu.memory_space<vmem>>, vector<1x1x128xf32>
    %916 = vector.shape_cast %915 : vector<1x1x128xf32> to vector<1x128xf32>
    %917 = arith.addf %901, %916 : vector<1x128xf32>
    %c3_i32_797 = arith.constant 3 : i32
    %c3_i32_798 = arith.constant 3 : i32
    %c0_i32_799 = arith.constant 0 : i32
    %c0_i32_800 = arith.constant 0 : i32
    %918 = tpu.memref_slice %arg5[%c0_i32_799, %c0_i32_800] : memref<512x128xf32, #tpu.memory_space<any>> -> memref<1x128xf32, #tpu.memory_space<any>>
    %c0_i32_801 = arith.constant 0 : i32
    %c0_i32_802 = arith.constant 0 : i32
    %919 = tpu.memref_slice %arg7[%c3_i32_797, %c0_i32_801, %c0_i32_802] : memref<4x1x128xf32, #tpu.memory_space<vmem>> -> memref<1x1x128xf32, #tpu.memory_space<vmem>>
    %920 = tpu.memref_squeeze %919 : memref<1x1x128xf32, #tpu.memory_space<vmem>> -> memref<1x128xf32, #tpu.memory_space<vmem>>
    %921 = tpu.memref_slice %arg8[%c3_i32_798] : memref<4x!tpu.dma_semaphore, #tpu.memory_space<semaphore_mem>> -> memref<1x!tpu.dma_semaphore, #tpu.memory_space<semaphore_mem>>
    %922 = tpu.memref_squeeze %921 : memref<1x!tpu.dma_semaphore, #tpu.memory_space<semaphore_mem>> -> memref<!tpu.dma_semaphore, #tpu.memory_space<semaphore_mem>>
    tpu.wait_dma2 semaphore(%922 : memref<!tpu.dma_semaphore, #tpu.memory_space<semaphore_mem>>) src(%918 : memref<1x128xf32, #tpu.memory_space<any>>) dst(%920 : memref<1x128xf32, #tpu.memory_space<vmem>>)
    %c58_i32 = arith.constant 58 : i32
    %923 = arith.addi %0, %c58_i32 : i32
    %924 = arith.index_cast %923 : i32 to index
    %925 = memref.load %arg1[%924] : memref<64xi32, #tpu.memory_space<smem>>
    %c2_i32_803 = arith.constant 2 : i32
    %c2_i32_804 = arith.constant 2 : i32
    %c0_i32_805 = arith.constant 0 : i32
    %926 = tpu.memref_slice %arg5[%925, %c0_i32_805] : memref<512x128xf32, #tpu.memory_space<any>> -> memref<1x128xf32, #tpu.memory_space<any>>
    %c0_i32_806 = arith.constant 0 : i32
    %c0_i32_807 = arith.constant 0 : i32
    %927 = tpu.memref_slice %arg7[%c2_i32_803, %c0_i32_806, %c0_i32_807] : memref<4x1x128xf32, #tpu.memory_space<vmem>> -> memref<1x1x128xf32, #tpu.memory_space<vmem>>
    %928 = tpu.memref_squeeze %927 : memref<1x1x128xf32, #tpu.memory_space<vmem>> -> memref<1x128xf32, #tpu.memory_space<vmem>>
    %929 = tpu.memref_slice %arg8[%c2_i32_804] : memref<4x!tpu.dma_semaphore, #tpu.memory_space<semaphore_mem>> -> memref<1x!tpu.dma_semaphore, #tpu.memory_space<semaphore_mem>>
    %930 = tpu.memref_squeeze %929 : memref<1x!tpu.dma_semaphore, #tpu.memory_space<semaphore_mem>> -> memref<!tpu.dma_semaphore, #tpu.memory_space<semaphore_mem>>
    tpu.enqueue_dma source(%926 : memref<1x128xf32, #tpu.memory_space<any>>) target(%928 : memref<1x128xf32, #tpu.memory_space<vmem>>) target_semaphore(%930 : memref<!tpu.dma_semaphore, #tpu.memory_space<semaphore_mem>>)
    %c3_808 = arith.constant 3 : index
    %c0_809 = arith.constant 0 : index
    %c0_810 = arith.constant 0 : index
    %931 = vector.load %arg7[%c3_808, %c0_809, %c0_810] : memref<4x1x128xf32, #tpu.memory_space<vmem>>, vector<1x1x128xf32>
    %932 = vector.shape_cast %931 : vector<1x1x128xf32> to vector<1x128xf32>
    %933 = arith.addf %917, %932 : vector<1x128xf32>
    %c6 = arith.constant 6 : index
    %c0_811 = arith.constant 0 : index
    %934 = vector.load %arg9[%c6, %c0_811] : memref<8x128xf32, #tpu.memory_space<vmem>>, vector<1x128xf32>
    tpu.vector_store %arg9[%c6, %c0_811], %933 {strides = array<i32>} : memref<8x128xf32, #tpu.memory_space<vmem>>, vector<1x128xf32>,
    %cst_812 = arith.constant 0.000000e+00 : f32
    %935 = vector.broadcast %cst_812 : f32 to vector<1x128xf32>
    %c0_i32_813 = arith.constant 0 : i32
    %c0_i32_814 = arith.constant 0 : i32
    %c0_i32_815 = arith.constant 0 : i32
    %c0_i32_816 = arith.constant 0 : i32
    %936 = tpu.memref_slice %arg5[%c0_i32_815, %c0_i32_816] : memref<512x128xf32, #tpu.memory_space<any>> -> memref<1x128xf32, #tpu.memory_space<any>>
    %c0_i32_817 = arith.constant 0 : i32
    %c0_i32_818 = arith.constant 0 : i32
    %937 = tpu.memref_slice %arg7[%c0_i32_813, %c0_i32_817, %c0_i32_818] : memref<4x1x128xf32, #tpu.memory_space<vmem>> -> memref<1x1x128xf32, #tpu.memory_space<vmem>>
    %938 = tpu.memref_squeeze %937 : memref<1x1x128xf32, #tpu.memory_space<vmem>> -> memref<1x128xf32, #tpu.memory_space<vmem>>
    %939 = tpu.memref_slice %arg8[%c0_i32_814] : memref<4x!tpu.dma_semaphore, #tpu.memory_space<semaphore_mem>> -> memref<1x!tpu.dma_semaphore, #tpu.memory_space<semaphore_mem>>
    %940 = tpu.memref_squeeze %939 : memref<1x!tpu.dma_semaphore, #tpu.memory_space<semaphore_mem>> -> memref<!tpu.dma_semaphore, #tpu.memory_space<semaphore_mem>>
    tpu.wait_dma2 semaphore(%940 : memref<!tpu.dma_semaphore, #tpu.memory_space<semaphore_mem>>) src(%936 : memref<1x128xf32, #tpu.memory_space<any>>) dst(%938 : memref<1x128xf32, #tpu.memory_space<vmem>>)
    %c59_i32 = arith.constant 59 : i32
    %941 = arith.addi %0, %c59_i32 : i32
    %942 = arith.index_cast %941 : i32 to index
    %943 = memref.load %arg1[%942] : memref<64xi32, #tpu.memory_space<smem>>
    %c3_i32_819 = arith.constant 3 : i32
    %c3_i32_820 = arith.constant 3 : i32
    %c0_i32_821 = arith.constant 0 : i32
    %944 = tpu.memref_slice %arg5[%943, %c0_i32_821] : memref<512x128xf32, #tpu.memory_space<any>> -> memref<1x128xf32, #tpu.memory_space<any>>
    %c0_i32_822 = arith.constant 0 : i32
    %c0_i32_823 = arith.constant 0 : i32
    %945 = tpu.memref_slice %arg7[%c3_i32_819, %c0_i32_822, %c0_i32_823] : memref<4x1x128xf32, #tpu.memory_space<vmem>> -> memref<1x1x128xf32, #tpu.memory_space<vmem>>
    %946 = tpu.memref_squeeze %945 : memref<1x1x128xf32, #tpu.memory_space<vmem>> -> memref<1x128xf32, #tpu.memory_space<vmem>>
    %947 = tpu.memref_slice %arg8[%c3_i32_820] : memref<4x!tpu.dma_semaphore, #tpu.memory_space<semaphore_mem>> -> memref<1x!tpu.dma_semaphore, #tpu.memory_space<semaphore_mem>>
    %948 = tpu.memref_squeeze %947 : memref<1x!tpu.dma_semaphore, #tpu.memory_space<semaphore_mem>> -> memref<!tpu.dma_semaphore, #tpu.memory_space<semaphore_mem>>
    tpu.enqueue_dma source(%944 : memref<1x128xf32, #tpu.memory_space<any>>) target(%946 : memref<1x128xf32, #tpu.memory_space<vmem>>) target_semaphore(%948 : memref<!tpu.dma_semaphore, #tpu.memory_space<semaphore_mem>>)
    %c0_824 = arith.constant 0 : index
    %c0_825 = arith.constant 0 : index
    %c0_826 = arith.constant 0 : index
    %949 = vector.load %arg7[%c0_824, %c0_825, %c0_826] : memref<4x1x128xf32, #tpu.memory_space<vmem>>, vector<1x1x128xf32>
    %950 = vector.shape_cast %949 : vector<1x1x128xf32> to vector<1x128xf32>
    %951 = arith.addf %935, %950 : vector<1x128xf32>
    %c1_i32_827 = arith.constant 1 : i32
    %c1_i32_828 = arith.constant 1 : i32
    %c0_i32_829 = arith.constant 0 : i32
    %c0_i32_830 = arith.constant 0 : i32
    %952 = tpu.memref_slice %arg5[%c0_i32_829, %c0_i32_830] : memref<512x128xf32, #tpu.memory_space<any>> -> memref<1x128xf32, #tpu.memory_space<any>>
    %c0_i32_831 = arith.constant 0 : i32
    %c0_i32_832 = arith.constant 0 : i32
    %953 = tpu.memref_slice %arg7[%c1_i32_827, %c0_i32_831, %c0_i32_832] : memref<4x1x128xf32, #tpu.memory_space<vmem>> -> memref<1x1x128xf32, #tpu.memory_space<vmem>>
    %954 = tpu.memref_squeeze %953 : memref<1x1x128xf32, #tpu.memory_space<vmem>> -> memref<1x128xf32, #tpu.memory_space<vmem>>
    %955 = tpu.memref_slice %arg8[%c1_i32_828] : memref<4x!tpu.dma_semaphore, #tpu.memory_space<semaphore_mem>> -> memref<1x!tpu.dma_semaphore, #tpu.memory_space<semaphore_mem>>
    %956 = tpu.memref_squeeze %955 : memref<1x!tpu.dma_semaphore, #tpu.memory_space<semaphore_mem>> -> memref<!tpu.dma_semaphore, #tpu.memory_space<semaphore_mem>>
    tpu.wait_dma2 semaphore(%956 : memref<!tpu.dma_semaphore, #tpu.memory_space<semaphore_mem>>) src(%952 : memref<1x128xf32, #tpu.memory_space<any>>) dst(%954 : memref<1x128xf32, #tpu.memory_space<vmem>>)
    %c60_i32 = arith.constant 60 : i32
    %957 = arith.addi %0, %c60_i32 : i32
    %958 = arith.index_cast %957 : i32 to index
    %959 = memref.load %arg1[%958] : memref<64xi32, #tpu.memory_space<smem>>
    %c0_i32_833 = arith.constant 0 : i32
    %c0_i32_834 = arith.constant 0 : i32
    %c0_i32_835 = arith.constant 0 : i32
    %960 = tpu.memref_slice %arg5[%959, %c0_i32_835] : memref<512x128xf32, #tpu.memory_space<any>> -> memref<1x128xf32, #tpu.memory_space<any>>
    %c0_i32_836 = arith.constant 0 : i32
    %c0_i32_837 = arith.constant 0 : i32
    %961 = tpu.memref_slice %arg7[%c0_i32_833, %c0_i32_836, %c0_i32_837] : memref<4x1x128xf32, #tpu.memory_space<vmem>> -> memref<1x1x128xf32, #tpu.memory_space<vmem>>
    %962 = tpu.memref_squeeze %961 : memref<1x1x128xf32, #tpu.memory_space<vmem>> -> memref<1x128xf32, #tpu.memory_space<vmem>>
    %963 = tpu.memref_slice %arg8[%c0_i32_834] : memref<4x!tpu.dma_semaphore, #tpu.memory_space<semaphore_mem>> -> memref<1x!tpu.dma_semaphore, #tpu.memory_space<semaphore_mem>>
    %964 = tpu.memref_squeeze %963 : memref<1x!tpu.dma_semaphore, #tpu.memory_space<semaphore_mem>> -> memref<!tpu.dma_semaphore, #tpu.memory_space<semaphore_mem>>
    tpu.enqueue_dma source(%960 : memref<1x128xf32, #tpu.memory_space<any>>) target(%962 : memref<1x128xf32, #tpu.memory_space<vmem>>) target_semaphore(%964 : memref<!tpu.dma_semaphore, #tpu.memory_space<semaphore_mem>>)
    %c1_838 = arith.constant 1 : index
    %c0_839 = arith.constant 0 : index
    %c0_840 = arith.constant 0 : index
    %965 = vector.load %arg7[%c1_838, %c0_839, %c0_840] : memref<4x1x128xf32, #tpu.memory_space<vmem>>, vector<1x1x128xf32>
    %966 = vector.shape_cast %965 : vector<1x1x128xf32> to vector<1x128xf32>
    %967 = arith.addf %951, %966 : vector<1x128xf32>
    %c2_i32_841 = arith.constant 2 : i32
    %c2_i32_842 = arith.constant 2 : i32
    %c0_i32_843 = arith.constant 0 : i32
    %c0_i32_844 = arith.constant 0 : i32
    %968 = tpu.memref_slice %arg5[%c0_i32_843, %c0_i32_844] : memref<512x128xf32, #tpu.memory_space<any>> -> memref<1x128xf32, #tpu.memory_space<any>>
    %c0_i32_845 = arith.constant 0 : i32
    %c0_i32_846 = arith.constant 0 : i32
    %969 = tpu.memref_slice %arg7[%c2_i32_841, %c0_i32_845, %c0_i32_846] : memref<4x1x128xf32, #tpu.memory_space<vmem>> -> memref<1x1x128xf32, #tpu.memory_space<vmem>>
    %970 = tpu.memref_squeeze %969 : memref<1x1x128xf32, #tpu.memory_space<vmem>> -> memref<1x128xf32, #tpu.memory_space<vmem>>
    %971 = tpu.memref_slice %arg8[%c2_i32_842] : memref<4x!tpu.dma_semaphore, #tpu.memory_space<semaphore_mem>> -> memref<1x!tpu.dma_semaphore, #tpu.memory_space<semaphore_mem>>
    %972 = tpu.memref_squeeze %971 : memref<1x!tpu.dma_semaphore, #tpu.memory_space<semaphore_mem>> -> memref<!tpu.dma_semaphore, #tpu.memory_space<semaphore_mem>>
    tpu.wait_dma2 semaphore(%972 : memref<!tpu.dma_semaphore, #tpu.memory_space<semaphore_mem>>) src(%968 : memref<1x128xf32, #tpu.memory_space<any>>) dst(%970 : memref<1x128xf32, #tpu.memory_space<vmem>>)
    %c61_i32 = arith.constant 61 : i32
    %973 = arith.addi %0, %c61_i32 : i32
    %974 = arith.index_cast %973 : i32 to index
    %975 = memref.load %arg1[%974] : memref<64xi32, #tpu.memory_space<smem>>
    %c1_i32_847 = arith.constant 1 : i32
    %c1_i32_848 = arith.constant 1 : i32
    %c0_i32_849 = arith.constant 0 : i32
    %976 = tpu.memref_slice %arg5[%975, %c0_i32_849] : memref<512x128xf32, #tpu.memory_space<any>> -> memref<1x128xf32, #tpu.memory_space<any>>
    %c0_i32_850 = arith.constant 0 : i32
    %c0_i32_851 = arith.constant 0 : i32
    %977 = tpu.memref_slice %arg7[%c1_i32_847, %c0_i32_850, %c0_i32_851] : memref<4x1x128xf32, #tpu.memory_space<vmem>> -> memref<1x1x128xf32, #tpu.memory_space<vmem>>
    %978 = tpu.memref_squeeze %977 : memref<1x1x128xf32, #tpu.memory_space<vmem>> -> memref<1x128xf32, #tpu.memory_space<vmem>>
    %979 = tpu.memref_slice %arg8[%c1_i32_848] : memref<4x!tpu.dma_semaphore, #tpu.memory_space<semaphore_mem>> -> memref<1x!tpu.dma_semaphore, #tpu.memory_space<semaphore_mem>>
    %980 = tpu.memref_squeeze %979 : memref<1x!tpu.dma_semaphore, #tpu.memory_space<semaphore_mem>> -> memref<!tpu.dma_semaphore, #tpu.memory_space<semaphore_mem>>
    tpu.enqueue_dma source(%976 : memref<1x128xf32, #tpu.memory_space<any>>) target(%978 : memref<1x128xf32, #tpu.memory_space<vmem>>) target_semaphore(%980 : memref<!tpu.dma_semaphore, #tpu.memory_space<semaphore_mem>>)
    %c2_852 = arith.constant 2 : index
    %c0_853 = arith.constant 0 : index
    %c0_854 = arith.constant 0 : index
    %981 = vector.load %arg7[%c2_852, %c0_853, %c0_854] : memref<4x1x128xf32, #tpu.memory_space<vmem>>, vector<1x1x128xf32>
    %982 = vector.shape_cast %981 : vector<1x1x128xf32> to vector<1x128xf32>
    %983 = arith.addf %967, %982 : vector<1x128xf32>
    %c3_i32_855 = arith.constant 3 : i32
    %c3_i32_856 = arith.constant 3 : i32
    %c0_i32_857 = arith.constant 0 : i32
    %c0_i32_858 = arith.constant 0 : i32
    %984 = tpu.memref_slice %arg5[%c0_i32_857, %c0_i32_858] : memref<512x128xf32, #tpu.memory_space<any>> -> memref<1x128xf32, #tpu.memory_space<any>>
    %c0_i32_859 = arith.constant 0 : i32
    %c0_i32_860 = arith.constant 0 : i32
    %985 = tpu.memref_slice %arg7[%c3_i32_855, %c0_i32_859, %c0_i32_860] : memref<4x1x128xf32, #tpu.memory_space<vmem>> -> memref<1x1x128xf32, #tpu.memory_space<vmem>>
    %986 = tpu.memref_squeeze %985 : memref<1x1x128xf32, #tpu.memory_space<vmem>> -> memref<1x128xf32, #tpu.memory_space<vmem>>
    %987 = tpu.memref_slice %arg8[%c3_i32_856] : memref<4x!tpu.dma_semaphore, #tpu.memory_space<semaphore_mem>> -> memref<1x!tpu.dma_semaphore, #tpu.memory_space<semaphore_mem>>
    %988 = tpu.memref_squeeze %987 : memref<1x!tpu.dma_semaphore, #tpu.memory_space<semaphore_mem>> -> memref<!tpu.dma_semaphore, #tpu.memory_space<semaphore_mem>>
    tpu.wait_dma2 semaphore(%988 : memref<!tpu.dma_semaphore, #tpu.memory_space<semaphore_mem>>) src(%984 : memref<1x128xf32, #tpu.memory_space<any>>) dst(%986 : memref<1x128xf32, #tpu.memory_space<vmem>>)
    %c62_i32 = arith.constant 62 : i32
    %989 = arith.addi %0, %c62_i32 : i32
    %990 = arith.index_cast %989 : i32 to index
    %991 = memref.load %arg1[%990] : memref<64xi32, #tpu.memory_space<smem>>
    %c2_i32_861 = arith.constant 2 : i32
    %c2_i32_862 = arith.constant 2 : i32
    %c0_i32_863 = arith.constant 0 : i32
    %992 = tpu.memref_slice %arg5[%991, %c0_i32_863] : memref<512x128xf32, #tpu.memory_space<any>> -> memref<1x128xf32, #tpu.memory_space<any>>
    %c0_i32_864 = arith.constant 0 : i32
    %c0_i32_865 = arith.constant 0 : i32
    %993 = tpu.memref_slice %arg7[%c2_i32_861, %c0_i32_864, %c0_i32_865] : memref<4x1x128xf32, #tpu.memory_space<vmem>> -> memref<1x1x128xf32, #tpu.memory_space<vmem>>
    %994 = tpu.memref_squeeze %993 : memref<1x1x128xf32, #tpu.memory_space<vmem>> -> memref<1x128xf32, #tpu.memory_space<vmem>>
    %995 = tpu.memref_slice %arg8[%c2_i32_862] : memref<4x!tpu.dma_semaphore, #tpu.memory_space<semaphore_mem>> -> memref<1x!tpu.dma_semaphore, #tpu.memory_space<semaphore_mem>>
    %996 = tpu.memref_squeeze %995 : memref<1x!tpu.dma_semaphore, #tpu.memory_space<semaphore_mem>> -> memref<!tpu.dma_semaphore, #tpu.memory_space<semaphore_mem>>
    tpu.enqueue_dma source(%992 : memref<1x128xf32, #tpu.memory_space<any>>) target(%994 : memref<1x128xf32, #tpu.memory_space<vmem>>) target_semaphore(%996 : memref<!tpu.dma_semaphore, #tpu.memory_space<semaphore_mem>>)
    %c3_866 = arith.constant 3 : index
    %c0_867 = arith.constant 0 : index
    %c0_868 = arith.constant 0 : index
    %997 = vector.load %arg7[%c3_866, %c0_867, %c0_868] : memref<4x1x128xf32, #tpu.memory_space<vmem>>, vector<1x1x128xf32>
    %998 = vector.shape_cast %997 : vector<1x1x128xf32> to vector<1x128xf32>
    %999 = arith.addf %983, %998 : vector<1x128xf32>
    %c0_i32_869 = arith.constant 0 : i32
    %c0_i32_870 = arith.constant 0 : i32
    %c0_i32_871 = arith.constant 0 : i32
    %c0_i32_872 = arith.constant 0 : i32
    %1000 = tpu.memref_slice %arg5[%c0_i32_871, %c0_i32_872] : memref<512x128xf32, #tpu.memory_space<any>> -> memref<1x128xf32, #tpu.memory_space<any>>
    %c0_i32_873 = arith.constant 0 : i32
    %c0_i32_874 = arith.constant 0 : i32
    %1001 = tpu.memref_slice %arg7[%c0_i32_869, %c0_i32_873, %c0_i32_874] : memref<4x1x128xf32, #tpu.memory_space<vmem>> -> memref<1x1x128xf32, #tpu.memory_space<vmem>>
    %1002 = tpu.memref_squeeze %1001 : memref<1x1x128xf32, #tpu.memory_space<vmem>> -> memref<1x128xf32, #tpu.memory_space<vmem>>
    %1003 = tpu.memref_slice %arg8[%c0_i32_870] : memref<4x!tpu.dma_semaphore, #tpu.memory_space<semaphore_mem>> -> memref<1x!tpu.dma_semaphore, #tpu.memory_space<semaphore_mem>>
    %1004 = tpu.memref_squeeze %1003 : memref<1x!tpu.dma_semaphore, #tpu.memory_space<semaphore_mem>> -> memref<!tpu.dma_semaphore, #tpu.memory_space<semaphore_mem>>
    tpu.wait_dma2 semaphore(%1004 : memref<!tpu.dma_semaphore, #tpu.memory_space<semaphore_mem>>) src(%1000 : memref<1x128xf32, #tpu.memory_space<any>>) dst(%1002 : memref<1x128xf32, #tpu.memory_space<vmem>>)
    %c63_i32 = arith.constant 63 : i32
    %1005 = arith.addi %0, %c63_i32 : i32
    %1006 = arith.index_cast %1005 : i32 to index
    %1007 = memref.load %arg1[%1006] : memref<64xi32, #tpu.memory_space<smem>>
    %c3_i32_875 = arith.constant 3 : i32
    %c3_i32_876 = arith.constant 3 : i32
    %c0_i32_877 = arith.constant 0 : i32
    %1008 = tpu.memref_slice %arg5[%1007, %c0_i32_877] : memref<512x128xf32, #tpu.memory_space<any>> -> memref<1x128xf32, #tpu.memory_space<any>>
    %c0_i32_878 = arith.constant 0 : i32
    %c0_i32_879 = arith.constant 0 : i32
    %1009 = tpu.memref_slice %arg7[%c3_i32_875, %c0_i32_878, %c0_i32_879] : memref<4x1x128xf32, #tpu.memory_space<vmem>> -> memref<1x1x128xf32, #tpu.memory_space<vmem>>
    %1010 = tpu.memref_squeeze %1009 : memref<1x1x128xf32, #tpu.memory_space<vmem>> -> memref<1x128xf32, #tpu.memory_space<vmem>>
    %1011 = tpu.memref_slice %arg8[%c3_i32_876] : memref<4x!tpu.dma_semaphore, #tpu.memory_space<semaphore_mem>> -> memref<1x!tpu.dma_semaphore, #tpu.memory_space<semaphore_mem>>
    %1012 = tpu.memref_squeeze %1011 : memref<1x!tpu.dma_semaphore, #tpu.memory_space<semaphore_mem>> -> memref<!tpu.dma_semaphore, #tpu.memory_space<semaphore_mem>>
    tpu.enqueue_dma source(%1008 : memref<1x128xf32, #tpu.memory_space<any>>) target(%1010 : memref<1x128xf32, #tpu.memory_space<vmem>>) target_semaphore(%1012 : memref<!tpu.dma_semaphore, #tpu.memory_space<semaphore_mem>>)
    %c0_880 = arith.constant 0 : index
    %c0_881 = arith.constant 0 : index
    %c0_882 = arith.constant 0 : index
    %1013 = vector.load %arg7[%c0_880, %c0_881, %c0_882] : memref<4x1x128xf32, #tpu.memory_space<vmem>>, vector<1x1x128xf32>
    %1014 = vector.shape_cast %1013 : vector<1x1x128xf32> to vector<1x128xf32>
    %1015 = arith.addf %999, %1014 : vector<1x128xf32>
    %c1_i32_883 = arith.constant 1 : i32
    %c1_i32_884 = arith.constant 1 : i32
    %c0_i32_885 = arith.constant 0 : i32
    %c0_i32_886 = arith.constant 0 : i32
    %1016 = tpu.memref_slice %arg5[%c0_i32_885, %c0_i32_886] : memref<512x128xf32, #tpu.memory_space<any>> -> memref<1x128xf32, #tpu.memory_space<any>>
    %c0_i32_887 = arith.constant 0 : i32
    %c0_i32_888 = arith.constant 0 : i32
    %1017 = tpu.memref_slice %arg7[%c1_i32_883, %c0_i32_887, %c0_i32_888] : memref<4x1x128xf32, #tpu.memory_space<vmem>> -> memref<1x1x128xf32, #tpu.memory_space<vmem>>
    %1018 = tpu.memref_squeeze %1017 : memref<1x1x128xf32, #tpu.memory_space<vmem>> -> memref<1x128xf32, #tpu.memory_space<vmem>>
    %1019 = tpu.memref_slice %arg8[%c1_i32_884] : memref<4x!tpu.dma_semaphore, #tpu.memory_space<semaphore_mem>> -> memref<1x!tpu.dma_semaphore, #tpu.memory_space<semaphore_mem>>
    %1020 = tpu.memref_squeeze %1019 : memref<1x!tpu.dma_semaphore, #tpu.memory_space<semaphore_mem>> -> memref<!tpu.dma_semaphore, #tpu.memory_space<semaphore_mem>>
    tpu.wait_dma2 semaphore(%1020 : memref<!tpu.dma_semaphore, #tpu.memory_space<semaphore_mem>>) src(%1016 : memref<1x128xf32, #tpu.memory_space<any>>) dst(%1018 : memref<1x128xf32, #tpu.memory_space<vmem>>)
    %c1_889 = arith.constant 1 : index
    %c0_890 = arith.constant 0 : index
    %c0_891 = arith.constant 0 : index
    %1021 = vector.load %arg7[%c1_889, %c0_890, %c0_891] : memref<4x1x128xf32, #tpu.memory_space<vmem>>, vector<1x1x128xf32>
    %1022 = vector.shape_cast %1021 : vector<1x1x128xf32> to vector<1x128xf32>
    %1023 = arith.addf %1015, %1022 : vector<1x128xf32>
    %c2_i32_892 = arith.constant 2 : i32
    %c2_i32_893 = arith.constant 2 : i32
    %c0_i32_894 = arith.constant 0 : i32
    %c0_i32_895 = arith.constant 0 : i32
    %1024 = tpu.memref_slice %arg5[%c0_i32_894, %c0_i32_895] : memref<512x128xf32, #tpu.memory_space<any>> -> memref<1x128xf32, #tpu.memory_space<any>>
    %c0_i32_896 = arith.constant 0 : i32
    %c0_i32_897 = arith.constant 0 : i32
    %1025 = tpu.memref_slice %arg7[%c2_i32_892, %c0_i32_896, %c0_i32_897] : memref<4x1x128xf32, #tpu.memory_space<vmem>> -> memref<1x1x128xf32, #tpu.memory_space<vmem>>
    %1026 = tpu.memref_squeeze %1025 : memref<1x1x128xf32, #tpu.memory_space<vmem>> -> memref<1x128xf32, #tpu.memory_space<vmem>>
    %1027 = tpu.memref_slice %arg8[%c2_i32_893] : memref<4x!tpu.dma_semaphore, #tpu.memory_space<semaphore_mem>> -> memref<1x!tpu.dma_semaphore, #tpu.memory_space<semaphore_mem>>
    %1028 = tpu.memref_squeeze %1027 : memref<1x!tpu.dma_semaphore, #tpu.memory_space<semaphore_mem>> -> memref<!tpu.dma_semaphore, #tpu.memory_space<semaphore_mem>>
    tpu.wait_dma2 semaphore(%1028 : memref<!tpu.dma_semaphore, #tpu.memory_space<semaphore_mem>>) src(%1024 : memref<1x128xf32, #tpu.memory_space<any>>) dst(%1026 : memref<1x128xf32, #tpu.memory_space<vmem>>)
    %c2_898 = arith.constant 2 : index
    %c0_899 = arith.constant 0 : index
    %c0_900 = arith.constant 0 : index
    %1029 = vector.load %arg7[%c2_898, %c0_899, %c0_900] : memref<4x1x128xf32, #tpu.memory_space<vmem>>, vector<1x1x128xf32>
    %1030 = vector.shape_cast %1029 : vector<1x1x128xf32> to vector<1x128xf32>
    %1031 = arith.addf %1023, %1030 : vector<1x128xf32>
    %c3_i32_901 = arith.constant 3 : i32
    %c3_i32_902 = arith.constant 3 : i32
    %c0_i32_903 = arith.constant 0 : i32
    %c0_i32_904 = arith.constant 0 : i32
    %1032 = tpu.memref_slice %arg5[%c0_i32_903, %c0_i32_904] : memref<512x128xf32, #tpu.memory_space<any>> -> memref<1x128xf32, #tpu.memory_space<any>>
    %c0_i32_905 = arith.constant 0 : i32
    %c0_i32_906 = arith.constant 0 : i32
    %1033 = tpu.memref_slice %arg7[%c3_i32_901, %c0_i32_905, %c0_i32_906] : memref<4x1x128xf32, #tpu.memory_space<vmem>> -> memref<1x1x128xf32, #tpu.memory_space<vmem>>
    %1034 = tpu.memref_squeeze %1033 : memref<1x1x128xf32, #tpu.memory_space<vmem>> -> memref<1x128xf32, #tpu.memory_space<vmem>>
    %1035 = tpu.memref_slice %arg8[%c3_i32_902] : memref<4x!tpu.dma_semaphore, #tpu.memory_space<semaphore_mem>> -> memref<1x!tpu.dma_semaphore, #tpu.memory_space<semaphore_mem>>
    %1036 = tpu.memref_squeeze %1035 : memref<1x!tpu.dma_semaphore, #tpu.memory_space<semaphore_mem>> -> memref<!tpu.dma_semaphore, #tpu.memory_space<semaphore_mem>>
    tpu.wait_dma2 semaphore(%1036 : memref<!tpu.dma_semaphore, #tpu.memory_space<semaphore_mem>>) src(%1032 : memref<1x128xf32, #tpu.memory_space<any>>) dst(%1034 : memref<1x128xf32, #tpu.memory_space<vmem>>)
    %c3_907 = arith.constant 3 : index
    %c0_908 = arith.constant 0 : index
    %c0_909 = arith.constant 0 : index
    %1037 = vector.load %arg7[%c3_907, %c0_908, %c0_909] : memref<4x1x128xf32, #tpu.memory_space<vmem>>, vector<1x1x128xf32>
    %1038 = vector.shape_cast %1037 : vector<1x1x128xf32> to vector<1x128xf32>
    %1039 = arith.addf %1031, %1038 : vector<1x128xf32>
    %c7 = arith.constant 7 : index
    %c0_910 = arith.constant 0 : index
    %1040 = vector.load %arg9[%c7, %c0_910] : memref<8x128xf32, #tpu.memory_space<vmem>>, vector<1x128xf32>
    tpu.vector_store %arg9[%c7, %c0_910], %1039 {strides = array<i32>} : memref<8x128xf32, #tpu.memory_space<vmem>>, vector<1x128xf32>,
    %c0_911 = arith.constant 0 : index
    %c0_912 = arith.constant 0 : index
    %1041 = vector.load %arg9[%c0_911, %c0_912] : memref<8x128xf32, #tpu.memory_space<vmem>>, vector<8x128xf32>
    %c0_913 = arith.constant 0 : index
    %c0_914 = arith.constant 0 : index
    %1042 = vector.load %arg4[%c0_913, %c0_914] : memref<1x128xf32, #tpu.memory_space<vmem>>, vector<1x128xf32>
    %1043 = vector.broadcast %1042 : vector<1x128xf32> to vector<8x128xf32>
    %1044 = arith.mulf %1041, %1043 : vector<8x128xf32>
    %cst_915 = arith.constant dense<0.000000e+00> : vector<8xf32>
    %1045 = vector.multi_reduction <add>, %1044, %cst_915 [1] : vector<8x128xf32> to vector<8xf32>
    %1046 = vector.shape_cast %1045 : vector<8xf32> to vector<8x1xf32>
    %c0_916 = arith.constant 0 : index
    %1047 = memref.load %arg2[%c0_916] : memref<1xf32, #tpu.memory_space<smem>>
    %cst_917 = arith.constant 1.000000e+00 : f32
    %1048 = arith.divf %cst_917, %1047 : f32
    %1049 = vector.broadcast %1048 : f32 to vector<8x1xf32>
    %1050 = arith.mulf %1046, %1049 : vector<8x1xf32>
    %c0_918 = arith.constant 0 : index
    %1051 = memref.load %arg3[%c0_918] : memref<1xf32, #tpu.memory_space<smem>>
    %1052 = vector.broadcast %1051 : f32 to vector<8x1xf32>
    %1053 = arith.addf %1050, %1052 : vector<8x1xf32>
    %1054 = arith.negf %1053 : vector<8x1xf32>
    %1055 = math.exp %1054 : vector<8x1xf32>
    %cst_919 = arith.constant 1.000000e+00 : f32
    %1056 = vector.broadcast %cst_919 : f32 to vector<8x1xf32>
    %1057 = arith.addf %1056, %1055 : vector<8x1xf32>
    %1058 = arith.divf %1056, %1057 : vector<8x1xf32>
    %c0_920 = arith.constant 0 : index
    %c0_921 = arith.constant 0 : index
    %1059 = vector.load %arg6[%c0_920, %c0_921] : memref<8x1xf32, #tpu.memory_space<vmem>>, vector<8x1xf32>
    tpu.vector_store %arg6[%c0_920, %c0_921], %1058 {strides = array<i32>} : memref<8x1xf32, #tpu.memory_space<vmem>>, vector<8x1xf32>,
    return
  }
  func.func @transform_0(%arg0: i32, %arg1: memref<64xi32, #tpu.memory_space<smem>>) -> i32 {
    %c0_i32 = arith.constant 0 : i32
    %c0_i32_0 = arith.constant 0 : i32
    return %c0_i32 : i32
  }
  func.func @transform_1(%arg0: i32, %arg1: memref<64xi32, #tpu.memory_space<smem>>) -> i32 {
    %c0_i32 = arith.constant 0 : i32
    %c0_i32_0 = arith.constant 0 : i32
    return %c0_i32 : i32
  }
  func.func @transform_2(%arg0: i32, %arg1: memref<64xi32, #tpu.memory_space<smem>>) -> (i32, i32) {
    %c0_i32 = arith.constant 0 : i32
    %c0_i32_0 = arith.constant 0 : i32
    %c0_i32_1 = arith.constant 0 : i32
    return %c0_i32, %c0_i32_0 : i32, i32
  }
  func.func @transform_4(%arg0: i32, %arg1: memref<64xi32, #tpu.memory_space<smem>>) -> (i32, i32) {
    %c0_i32 = arith.constant 0 : i32
    %c0_i32_0 = arith.constant 0 : i32
    return %arg0, %c0_i32 : i32, i32
  }
}

</mosaic_0001>

<llo_original>
// kernel: tpu_custom_call.1
$region0: #{tpu_custom_call.1}
  #allocation0 [shape = 'u32[]', space=smem, size = 0x4, offset = 0x4, fixed_abs, tag = 'smem constant byte address 0x4 - core index']
  #allocation1 [shape = 'u32[144,128]{1,0:T(1,128)}', space=vmem, size = 0x12000, scoped, tag = 'internal scratch']
  #allocation2 [shape = 'f32[4,1,128]{2,1,0:T(1,128)}', space=vmem, size = 0x800, scoped, tag = 'scratch operand']
  #allocation3 [shape = 's32[4]{0}', space=sflag, size = 0x10, scoped, tag = 'scratch operand']
  #allocation4 [shape = 'f32[8,128]{1,0:T(8,128)}', space=vmem, size = 0x1000, scoped, tag = 'scratch operand']
  #allocation5 [shape = 's32[1]{0}', space=sflag, size = 0x4, scoped, tag = 'scoped memory for tpu_custom_call.1']
  #allocation6 [shape = 'u8[512]{0}', space=smem, size = 0x200, scoped, tag = 'prefetched SMEM operand 0']
  #allocation7 [shape = 'f32[1]{0:T(128)S(6)}', space=smem, size = 0x200, scoped, tag = 'scoped memory for tpu_custom_call.1']
  #allocation8 [shape = 'f32[1]{0:T(128)S(6)}', space=smem, size = 0x200, scoped, tag = 'scoped memory for tpu_custom_call.1']
  #allocation9 [shape = 's32[]', space=sflag, size = 0x4, offset = 0, fixed_abs, tag = 'sflag constant byte address 0x0 - dummy sync flag']
  #allocation10 [shape = 's32[]', space=sflag, size = 0x4, offset = 0, fixed_abs, tag = 'sflag constant byte address 0x0 - dummy sync flag']
  #allocation11 [shape = 'u32[]', space=smem, size = 0x4, offset = 0x44, fixed_abs, tag = 'smem constant byte address 0x44 - assertion arg 0']
  #allocation12 [shape = 'u32[]', space=smem, size = 0x4, offset = 0x48, fixed_abs, tag = 'smem constant byte address 0x48 - assertion arg 1']
  #allocation13 [shape = 's32[]', space=sflag, size = 0x4, offset = 0, fixed_abs, tag = 'sflag constant byte address 0x0 - dummy sync flag']
  #allocation14 [shape = 's32[]', space=sflag, size = 0x4, offset = 0, fixed_abs, tag = 'sflag constant byte address 0x0 - dummy sync flag']
  #allocation15 [shape = 's32[]', space=sflag, size = 0x4, offset = 0, fixed_abs, tag = 'sflag constant byte address 0x0 - dummy sync flag']
  #allocation16 [shape = 's32[]', space=sflag, size = 0x4, offset = 0, fixed_abs, tag = 'sflag constant byte address 0x0 - dummy sync flag']
  #allocation17 [shape = 's32[]', space=sflag, size = 0x4, offset = 0, fixed_abs, tag = 'sflag constant byte address 0x0 - dummy sync flag']
  #allocation18 [shape = 's32[]', space=sflag, size = 0x4, offset = 0, fixed_abs, tag = 'sflag constant byte address 0x0 - dummy sync flag']
  #allocation19 [shape = 's32[]', space=sflag, size = 0x4, offset = 0, fixed_abs, tag = 'sflag constant byte address 0x0 - dummy sync flag']
  #allocation20 [shape = 's32[]', space=sflag, size = 0x4, offset = 0, fixed_abs, tag = 'sflag constant byte address 0x0 - dummy sync flag']
  #allocation21 [shape = 's32[]', space=sflag, size = 0x4, offset = 0, fixed_abs, tag = 'sflag constant byte address 0x0 - dummy sync flag']
  #allocation22 [shape = 's32[]', space=sflag, size = 0x4, offset = 0, fixed_abs, tag = 'sflag constant byte address 0x0 - dummy sync flag']
  #allocation23 [shape = 's32[]', space=sflag, size = 0x4, offset = 0, fixed_abs, tag = 'sflag constant byte address 0x0 - dummy sync flag']
  #allocation24 [shape = 's32[]', space=sflag, size = 0x4, offset = 0, fixed_abs, tag = 'sflag constant byte address 0x0 - dummy sync flag']
  #allocation25 [shape = 's32[]', space=sflag, size = 0x4, offset = 0, fixed_abs, tag = 'sflag constant byte address 0x0 - dummy sync flag']
  #allocation26 [shape = 's32[]', space=sflag, size = 0x4, offset = 0, fixed_abs, tag = 'sflag constant byte address 0x0 - dummy sync flag']
  #allocation27 [shape = 's32[]', space=sflag, size = 0x4, offset = 0, fixed_abs, tag = 'sflag constant byte address 0x0 - dummy sync flag']
  #allocation28 [shape = 's32[]', space=sflag, size = 0x4, offset = 0, fixed_abs, tag = 'sflag constant byte address 0x0 - dummy sync flag']
  #allocation29 [shape = 's32[]', space=sflag, size = 0x4, offset = 0, fixed_abs, tag = 'sflag constant byte address 0x0 - dummy sync flag']
  #allocation30 [shape = 's32[]', space=sflag, size = 0x4, offset = 0, fixed_abs, tag = 'sflag constant byte address 0x0 - dummy sync flag']
  #allocation31 [shape = 's32[]', space=sflag, size = 0x4, offset = 0, fixed_abs, tag = 'sflag constant byte address 0x0 - dummy sync flag']
  #allocation32 [shape = 's32[]', space=sflag, size = 0x4, offset = 0, fixed_abs, tag = 'sflag constant byte address 0x0 - dummy sync flag']
  #allocation33 [shape = 's32[]', space=sflag, size = 0x4, offset = 0, fixed_abs, tag = 'sflag constant byte address 0x0 - dummy sync flag']
  #allocation34 [shape = 's32[]', space=sflag, size = 0x4, offset = 0, fixed_abs, tag = 'sflag constant byte address 0x0 - dummy sync flag']
  #allocation35 [shape = 's32[]', space=sflag, size = 0x4, offset = 0, fixed_abs, tag = 'sflag constant byte address 0x0 - dummy sync flag']
  #allocation36 [shape = 's32[]', space=sflag, size = 0x4, offset = 0, fixed_abs, tag = 'sflag constant byte address 0x0 - dummy sync flag']
  #allocation37 [shape = 's32[]', space=sflag, size = 0x4, offset = 0, fixed_abs, tag = 'sflag constant byte address 0x0 - dummy sync flag']
  #allocation38 [shape = 's32[]', space=sflag, size = 0x4, offset = 0, fixed_abs, tag = 'sflag constant byte address 0x0 - dummy sync flag']
  #allocation39 [shape = 's32[]', space=sflag, size = 0x4, offset = 0, fixed_abs, tag = 'sflag constant byte address 0x0 - dummy sync flag']
  #allocation40 [shape = 's32[]', space=sflag, size = 0x4, offset = 0, fixed_abs, tag = 'sflag constant byte address 0x0 - dummy sync flag']
  #allocation41 [shape = 's32[]', space=sflag, size = 0x4, offset = 0, fixed_abs, tag = 'sflag constant byte address 0x0 - dummy sync flag']
  #allocation42 [shape = 's32[]', space=sflag, size = 0x4, offset = 0, fixed_abs, tag = 'sflag constant byte address 0x0 - dummy sync flag']
  #allocation43 [shape = 's32[]', space=sflag, size = 0x4, offset = 0, fixed_abs, tag = 'sflag constant byte address 0x0 - dummy sync flag']
  #allocation44 [shape = 's32[]', space=sflag, size = 0x4, offset = 0, fixed_abs, tag = 'sflag constant byte address 0x0 - dummy sync flag']
  #allocation45 [shape = 's32[]', space=sflag, size = 0x4, offset = 0, fixed_abs, tag = 'sflag constant byte address 0x0 - dummy sync flag']
  #allocation46 [shape = 's32[]', space=sflag, size = 0x4, offset = 0, fixed_abs, tag = 'sflag constant byte address 0x0 - dummy sync flag']
  #allocation47 [shape = 's32[]', space=sflag, size = 0x4, offset = 0, fixed_abs, tag = 'sflag constant byte address 0x0 - dummy sync flag']
  #allocation48 [shape = 's32[]', space=sflag, size = 0x4, offset = 0, fixed_abs, tag = 'sflag constant byte address 0x0 - dummy sync flag']
  #allocation49 [shape = 's32[]', space=sflag, size = 0x4, offset = 0, fixed_abs, tag = 'sflag constant byte address 0x0 - dummy sync flag']
  #allocation50 [shape = 's32[]', space=sflag, size = 0x4, offset = 0, fixed_abs, tag = 'sflag constant byte address 0x0 - dummy sync flag']
  #allocation51 [shape = 's32[]', space=sflag, size = 0x4, offset = 0, fixed_abs, tag = 'sflag constant byte address 0x0 - dummy sync flag']
  #allocation52 [shape = 's32[]', space=sflag, size = 0x4, offset = 0, fixed_abs, tag = 'sflag constant byte address 0x0 - dummy sync flag']
  #allocation53 [shape = 's32[]', space=sflag, size = 0x4, offset = 0, fixed_abs, tag = 'sflag constant byte address 0x0 - dummy sync flag']
  #allocation54 [shape = 's32[]', space=sflag, size = 0x4, offset = 0, fixed_abs, tag = 'sflag constant byte address 0x0 - dummy sync flag']
  #allocation55 [shape = 's32[]', space=sflag, size = 0x4, offset = 0, fixed_abs, tag = 'sflag constant byte address 0x0 - dummy sync flag']
  #allocation56 [shape = 's32[]', space=sflag, size = 0x4, offset = 0, fixed_abs, tag = 'sflag constant byte address 0x0 - dummy sync flag']
  #allocation57 [shape = 's32[]', space=sflag, size = 0x4, offset = 0, fixed_abs, tag = 'sflag constant byte address 0x0 - dummy sync flag']
  #allocation58 [shape = 's32[]', space=sflag, size = 0x4, offset = 0, fixed_abs, tag = 'sflag constant byte address 0x0 - dummy sync flag']
  #allocation59 [shape = 's32[]', space=sflag, size = 0x4, offset = 0, fixed_abs, tag = 'sflag constant byte address 0x0 - dummy sync flag']
  #allocation60 [shape = 's32[]', space=sflag, size = 0x4, offset = 0, fixed_abs, tag = 'sflag constant byte address 0x0 - dummy sync flag']
  #allocation61 [shape = 's32[]', space=sflag, size = 0x4, offset = 0, fixed_abs, tag = 'sflag constant byte address 0x0 - dummy sync flag']
  #allocation62 [shape = 's32[]', space=sflag, size = 0x4, offset = 0, fixed_abs, tag = 'sflag constant byte address 0x0 - dummy sync flag']
  #allocation63 [shape = 's32[]', space=sflag, size = 0x4, offset = 0, fixed_abs, tag = 'sflag constant byte address 0x0 - dummy sync flag']
  #allocation64 [shape = 's32[]', space=sflag, size = 0x4, offset = 0, fixed_abs, tag = 'sflag constant byte address 0x0 - dummy sync flag']
  #allocation65 [shape = 's32[]', space=sflag, size = 0x4, offset = 0, fixed_abs, tag = 'sflag constant byte address 0x0 - dummy sync flag']
  #allocation66 [shape = 's32[]', space=sflag, size = 0x4, offset = 0, fixed_abs, tag = 'sflag constant byte address 0x0 - dummy sync flag']
  #allocation67 [shape = 's32[]', space=sflag, size = 0x4, offset = 0, fixed_abs, tag = 'sflag constant byte address 0x0 - dummy sync flag']
  #allocation68 [shape = 's32[]', space=sflag, size = 0x4, offset = 0, fixed_abs, tag = 'sflag constant byte address 0x0 - dummy sync flag']
  #allocation69 [shape = 's32[]', space=sflag, size = 0x4, offset = 0, fixed_abs, tag = 'sflag constant byte address 0x0 - dummy sync flag']
  #allocation70 [shape = 's32[]', space=sflag, size = 0x4, offset = 0, fixed_abs, tag = 'sflag constant byte address 0x0 - dummy sync flag']
  #allocation71 [shape = 's32[]', space=sflag, size = 0x4, offset = 0, fixed_abs, tag = 'sflag constant byte address 0x0 - dummy sync flag']
  #allocation72 [shape = 's32[]', space=sflag, size = 0x4, offset = 0, fixed_abs, tag = 'sflag constant byte address 0x0 - dummy sync flag']
  #allocation73 [shape = 's32[]', space=sflag, size = 0x4, offset = 0, fixed_abs, tag = 'sflag constant byte address 0x0 - dummy sync flag']
  #allocation74 [shape = 's32[]', space=sflag, size = 0x4, offset = 0, fixed_abs, tag = 'sflag constant byte address 0x0 - dummy sync flag']
  #allocation75 [shape = 's32[]', space=sflag, size = 0x4, offset = 0, fixed_abs, tag = 'sflag constant byte address 0x0 - dummy sync flag']
  #allocation76 [shape = 's32[]', space=sflag, size = 0x4, offset = 0, fixed_abs, tag = 'sflag constant byte address 0x0 - dummy sync flag']
  #allocation77 [shape = 's32[]', space=sflag, size = 0x4, offset = 0, fixed_abs, tag = 'sflag constant byte address 0x0 - dummy sync flag']
  #allocation78 [shape = 's32[]', space=sflag, size = 0x4, offset = 0, fixed_abs, tag = 'sflag constant byte address 0x0 - dummy sync flag']
  #allocation79 [shape = 's32[]', space=sflag, size = 0x4, offset = 0, fixed_abs, tag = 'sflag constant byte address 0x0 - dummy sync flag']
  #allocation80 [shape = 's32[]', space=sflag, size = 0x4, offset = 0, fixed_abs, tag = 'sflag constant byte address 0x0 - dummy sync flag']
  #allocation81 [shape = 's32[]', space=sflag, size = 0x4, offset = 0, fixed_abs, tag = 'sflag constant byte address 0x0 - dummy sync flag']
  #allocation82 [shape = 's32[]', space=sflag, size = 0x4, offset = 0, fixed_abs, tag = 'sflag constant byte address 0x0 - dummy sync flag']
  #allocation83 [shape = 's32[]', space=sflag, size = 0x4, offset = 0, fixed_abs, tag = 'sflag constant byte address 0x0 - dummy sync flag']
  #allocation84 [shape = 's32[]', space=sflag, size = 0x4, offset = 0, fixed_abs, tag = 'sflag constant byte address 0x0 - dummy sync flag']
  #allocation85 [shape = 's32[]', space=sflag, size = 0x4, offset = 0, fixed_abs, tag = 'sflag constant byte address 0x0 - dummy sync flag']
  #allocation86 [shape = 's32[]', space=sflag, size = 0x4, offset = 0, fixed_abs, tag = 'sflag constant byte address 0x0 - dummy sync flag']
  #allocation87 [shape = 's32[]', space=sflag, size = 0x4, offset = 0, fixed_abs, tag = 'sflag constant byte address 0x0 - dummy sync flag']
  #allocation88 [shape = 's32[]', space=sflag, size = 0x4, offset = 0, fixed_abs, tag = 'sflag constant byte address 0x0 - dummy sync flag']
  #allocation89 [shape = 's32[]', space=sflag, size = 0x4, offset = 0, fixed_abs, tag = 'sflag constant byte address 0x0 - dummy sync flag']
  #allocation90 [shape = 's32[]', space=sflag, size = 0x4, offset = 0, fixed_abs, tag = 'sflag constant byte address 0x0 - dummy sync flag']
  #allocation91 [shape = 's32[]', space=sflag, size = 0x4, offset = 0, fixed_abs, tag = 'sflag constant byte address 0x0 - dummy sync flag']
  #allocation92 [shape = 's32[]', space=sflag, size = 0x4, offset = 0, fixed_abs, tag = 'sflag constant byte address 0x0 - dummy sync flag']
  #allocation93 [shape = 's32[]', space=sflag, size = 0x4, offset = 0, fixed_abs, tag = 'sflag constant byte address 0x0 - dummy sync flag']
  #allocation94 [shape = 's32[]', space=sflag, size = 0x4, offset = 0, fixed_abs, tag = 'sflag constant byte address 0x0 - dummy sync flag']
  #allocation95 [shape = 's32[]', space=sflag, size = 0x4, offset = 0, fixed_abs, tag = 'sflag constant byte address 0x0 - dummy sync flag']
  #allocation96 [shape = 's32[]', space=sflag, size = 0x4, offset = 0, fixed_abs, tag = 'sflag constant byte address 0x0 - dummy sync flag']
  #allocation97 [shape = 's32[]', space=sflag, size = 0x4, offset = 0, fixed_abs, tag = 'sflag constant byte address 0x0 - dummy sync flag']
  #allocation98 [shape = 's32[]', space=sflag, size = 0x4, offset = 0, fixed_abs, tag = 'sflag constant byte address 0x0 - dummy sync flag']
  #allocation99 [shape = 's32[]', space=sflag, size = 0x4, offset = 0, fixed_abs, tag = 'sflag constant byte address 0x0 - dummy sync flag']
  #allocation100 [shape = 's32[]', space=sflag, size = 0x4, offset = 0, fixed_abs, tag = 'sflag constant byte address 0x0 - dummy sync flag']
  #allocation101 [shape = 's32[]', space=sflag, size = 0x4, offset = 0, fixed_abs, tag = 'sflag constant byte address 0x0 - dummy sync flag']
  #allocation102 [shape = 's32[]', space=sflag, size = 0x4, offset = 0, fixed_abs, tag = 'sflag constant byte address 0x0 - dummy sync flag']
  #allocation103 [shape = 's32[]', space=sflag, size = 0x4, offset = 0, fixed_abs, tag = 'sflag constant byte address 0x0 - dummy sync flag']
  #allocation104 [shape = 's32[]', space=sflag, size = 0x4, offset = 0, fixed_abs, tag = 'sflag constant byte address 0x0 - dummy sync flag']
  #allocation105 [shape = 's32[]', space=sflag, size = 0x4, offset = 0, fixed_abs, tag = 'sflag constant byte address 0x0 - dummy sync flag']
  #allocation106 [shape = 's32[]', space=sflag, size = 0x4, offset = 0, fixed_abs, tag = 'sflag constant byte address 0x0 - dummy sync flag']
  #allocation107 [shape = 's32[]', space=sflag, size = 0x4, offset = 0, fixed_abs, tag = 'sflag constant byte address 0x0 - dummy sync flag']
  #allocation108 [shape = 's32[]', space=sflag, size = 0x4, offset = 0, fixed_abs, tag = 'sflag constant byte address 0x0 - dummy sync flag']
  #allocation109 [shape = 's32[]', space=sflag, size = 0x4, offset = 0, fixed_abs, tag = 'sflag constant byte address 0x0 - dummy sync flag']
  #allocation110 [shape = 's32[]', space=sflag, size = 0x4, offset = 0, fixed_abs, tag = 'sflag constant byte address 0x0 - dummy sync flag']
  #allocation111 [shape = 's32[]', space=sflag, size = 0x4, offset = 0, fixed_abs, tag = 'sflag constant byte address 0x0 - dummy sync flag']
  #allocation112 [shape = 's32[]', space=sflag, size = 0x4, offset = 0, fixed_abs, tag = 'sflag constant byte address 0x0 - dummy sync flag']
  #allocation113 [shape = 's32[]', space=sflag, size = 0x4, offset = 0, fixed_abs, tag = 'sflag constant byte address 0x0 - dummy sync flag']
  #allocation114 [shape = 's32[]', space=sflag, size = 0x4, offset = 0, fixed_abs, tag = 'sflag constant byte address 0x0 - dummy sync flag']
  #allocation115 [shape = 's32[]', space=sflag, size = 0x4, offset = 0, fixed_abs, tag = 'sflag constant byte address 0x0 - dummy sync flag']
  #allocation116 [shape = 's32[]', space=sflag, size = 0x4, offset = 0, fixed_abs, tag = 'sflag constant byte address 0x0 - dummy sync flag']
  #allocation117 [shape = 's32[]', space=sflag, size = 0x4, offset = 0, fixed_abs, tag = 'sflag constant byte address 0x0 - dummy sync flag']
  #allocation118 [shape = 's32[]', space=sflag, size = 0x4, offset = 0, fixed_abs, tag = 'sflag constant byte address 0x0 - dummy sync flag']
  #allocation119 [shape = 's32[]', space=sflag, size = 0x4, offset = 0, fixed_abs, tag = 'sflag constant byte address 0x0 - dummy sync flag']
  #allocation120 [shape = 's32[]', space=sflag, size = 0x4, offset = 0, fixed_abs, tag = 'sflag constant byte address 0x0 - dummy sync flag']
  #allocation121 [shape = 's32[]', space=sflag, size = 0x4, offset = 0, fixed_abs, tag = 'sflag constant byte address 0x0 - dummy sync flag']
  #allocation122 [shape = 's32[]', space=sflag, size = 0x4, offset = 0, fixed_abs, tag = 'sflag constant byte address 0x0 - dummy sync flag']
  #allocation123 [shape = 's32[]', space=sflag, size = 0x4, offset = 0, fixed_abs, tag = 'sflag constant byte address 0x0 - dummy sync flag']
  #allocation124 [shape = 's32[]', space=sflag, size = 0x4, offset = 0, fixed_abs, tag = 'sflag constant byte address 0x0 - dummy sync flag']
  #allocation125 [shape = 's32[]', space=sflag, size = 0x4, offset = 0, fixed_abs, tag = 'sflag constant byte address 0x0 - dummy sync flag']
  #allocation126 [shape = 's32[]', space=sflag, size = 0x4, offset = 0, fixed_abs, tag = 'sflag constant byte address 0x0 - dummy sync flag']
  #allocation127 [shape = 's32[]', space=sflag, size = 0x4, offset = 0, fixed_abs, tag = 'sflag constant byte address 0x0 - dummy sync flag']
  #allocation128 [shape = 's32[]', space=sflag, size = 0x4, offset = 0, fixed_abs, tag = 'sflag constant byte address 0x0 - dummy sync flag']
  #allocation129 [shape = 's32[]', space=sflag, size = 0x4, offset = 0, fixed_abs, tag = 'sflag constant byte address 0x0 - dummy sync flag']
  #allocation130 [shape = 's32[]', space=sflag, size = 0x4, offset = 0, fixed_abs, tag = 'sflag constant byte address 0x0 - dummy sync flag']
  #allocation131 [shape = 's32[]', space=sflag, size = 0x4, offset = 0, fixed_abs, tag = 'sflag constant byte address 0x0 - dummy sync flag']
  #allocation132 [shape = 's32[]', space=sflag, size = 0x4, offset = 0, fixed_abs, tag = 'sflag constant byte address 0x0 - dummy sync flag']
  #allocation133 [shape = 's32[]', space=sflag, size = 0x4, offset = 0, fixed_abs, tag = 'sflag constant byte address 0x0 - dummy sync flag']
  #allocation134 [shape = 's32[]', space=sflag, size = 0x4, offset = 0, fixed_abs, tag = 'sflag constant byte address 0x0 - dummy sync flag']
  #allocation135 [shape = 's32[]', space=sflag, size = 0x4, offset = 0, fixed_abs, tag = 'sflag constant byte address 0x0 - dummy sync flag']
  #allocation136 [shape = 's32[]', space=sflag, size = 0x4, offset = 0, fixed_abs, tag = 'sflag constant byte address 0x0 - dummy sync flag']
  #allocation137 [shape = 's32[]', space=sflag, size = 0x4, offset = 0, fixed_abs, tag = 'sflag constant byte address 0x0 - dummy sync flag']
  #allocation138 [shape = 's32[]', space=sflag, size = 0x4, offset = 0, fixed_abs, tag = 'sflag constant byte address 0x0 - dummy sync flag']
  %s0 = inlined_call_operand.vmem [shape: s32[64], index: 0, kind: input, shape index: {}]
  %s1 = inlined_call_operand.<no memory space> [shape: f32[1], index: 1, kind: input, shape index: {}]
  %s2 = inlined_call_operand.<no memory space> [shape: f32[1], index: 2, kind: input, shape index: {}]
  %s3 = inlined_call_operand.vmem [shape: f32[1,128], index: 3, kind: input, shape index: {}]
  %s4 = inlined_call_operand.hbm [shape: f32[512,128], index: 4, kind: input, shape index: {}]
  %s5 = inlined_call_operand.vmem [shape: f32[8,1], index: 5, kind: output, shape index: {}]
  %s6 = sld [smem:[#allocation0]]
  $region278: #{tpu_custom_call.1} parent=0
    _
  %s8 = ssub.s32 1, %s6
  %s9 = scalar_select 0, %s8, %s6
  %s10 = sshll.u32 %s0, 4
  %s11 = int_to_ptr.vmem [resolvable:$true] %s10
  %13 = dma.vmem_to_smem %s11, 16, [#allocation6], [#allocation5]
  %14 = sst [smem:[#allocation7]] %s1
  %15 = sst [smem:[#allocation8]] %s2
  %16 = dma.done [#allocation5], 16
  %17 = sfence
  // Predicated region
  $region2: #{tpu_custom_call.1} parent=0 // pred_check
    _
  $region3: #{tpu_custom_call.1} parent=0 // pred_check_branch
    %19 = sbr.rel (0) target = $region5
  $region4: #{tpu_custom_call.1} parent=0 // pred_region
    _
  $region5: #{tpu_custom_call.1} parent=0 // pred_fallthru
    _
  // Predicated region
  $region6: #{tpu_custom_call.1} parent=0 // pred_check
    _
  $region7: #{tpu_custom_call.1} parent=0 // pred_check_branch
    %21 = sbr.rel (0) target = $region9
  $region8: #{tpu_custom_call.1} parent=0 // pred_region
    _
  $region9: #{tpu_custom_call.1} parent=0 // pred_fallthru
    _
  // Predicated region
  $region10: #{tpu_custom_call.1} parent=0 // pred_check
    _
  $region11: #{tpu_custom_call.1} parent=0 // pred_check_branch
    %23 = sbr.rel (0) target = $region13
  $region12: #{tpu_custom_call.1} parent=0 // pred_region
    _
  $region13: #{tpu_custom_call.1} parent=0 // pred_fallthru
    _
  %s24 = smul.u32 0, 64
  %s25 = sld [smem:[#allocation6 + %s24]]
  %s26 = smul.addr %s25, 16
  %s27 = scalar_lea.hbm %s4, %s26
  // Predicated region
  $region14: #{tpu_custom_call.1} parent=0 // pred_check
    _
  $region15: #{tpu_custom_call.1} parent=0 // pred_check_branch
    %29 = sbr.rel target = $region17
  $region16: #{tpu_custom_call.1} parent=0 // pred_region
    %30 = sst [smem:[#allocation11]] [#allocation10]
    %31 = sst [smem:[#allocation12]] [#allocation9]
  $region17: #{tpu_custom_call.1} parent=0 // pred_fallthru
    _
  %33 = shalt.err (0)
  %s35 = sshll.u32 [#allocation2], 4
  %s36 = int_to_ptr.vmem [resolvable:$true] %s35
  %38 = dma.hbm_to_vmem [thread:$0]  %s27, 16, %s36, [#allocation3]
  %s39 = sadd.s32 %s24, 1
  %s40 = sld [smem:[#allocation6 + %s39]]
  %s41 = smul.addr %s40, 16
  %s42 = scalar_lea.hbm %s4, %s41
  %s43 = scalar_lea.vmem [#allocation2], 1
  %s44 = scalar_lea.sflag [#allocation3], 1
  // Predicated region
  $region18: #{tpu_custom_call.1} parent=0 // pred_check
    _
  $region19: #{tpu_custom_call.1} parent=0 // pred_check_branch
    %46 = sbr.rel target = $region21
  $region20: #{tpu_custom_call.1} parent=0 // pred_region
    %47 = sst [smem:[#allocation11]] [#allocation14]
    %48 = sst [smem:[#allocation12]] [#allocation13]
  $region21: #{tpu_custom_call.1} parent=0 // pred_fallthru
    _
  %50 = shalt.err (0)
  %s52 = sshll.u32 %s43, 4
  %s53 = int_to_ptr.vmem [resolvable:$true] %s52
  %55 = dma.hbm_to_vmem [thread:$0]  %s42, 16, %s53, %s44
  %s56 = sadd.s32 %s24, 2
  %s57 = sld [smem:[#allocation6 + %s56]]
  %s58 = smul.addr %s57, 16
  %s59 = scalar_lea.hbm %s4, %s58
  %s60 = scalar_lea.vmem [#allocation2], 2
  %s61 = scalar_lea.sflag [#allocation3], 2
  // Predicated region
  $region22: #{tpu_custom_call.1} parent=0 // pred_check
    _
  $region23: #{tpu_custom_call.1} parent=0 // pred_check_branch
    %63 = sbr.rel target = $region25
  $region24: #{tpu_custom_call.1} parent=0 // pred_region
    %64 = sst [smem:[#allocation11]] [#allocation16]
    %65 = sst [smem:[#allocation12]] [#allocation15]
  $region25: #{tpu_custom_call.1} parent=0 // pred_fallthru
    _
  %67 = shalt.err (0)
  %s69 = sshll.u32 %s60, 4
  %s70 = int_to_ptr.vmem [resolvable:$true] %s69
  %72 = dma.hbm_to_vmem [thread:$0]  %s59, 16, %s70, %s61
  %s73 = smul.u32 1, 1
  %s74 = sshll.u32 %s73, 4
  %75 = dma.done [#allocation3], %s74
  %s76 = sadd.s32 %s24, 3
  %s77 = sld [smem:[#allocation6 + %s76]]
  %s78 = smul.addr %s77, 16
  %s79 = scalar_lea.hbm %s4, %s78
  %s80 = scalar_lea.vmem [#allocation2], 3
  %s81 = scalar_lea.sflag [#allocation3], 3
  // Predicated region
  $region26: #{tpu_custom_call.1} parent=0 // pred_check
    _
  $region27: #{tpu_custom_call.1} parent=0 // pred_check_branch
    %83 = sbr.rel target = $region29
  $region28: #{tpu_custom_call.1} parent=0 // pred_region
    %84 = sst [smem:[#allocation11]] [#allocation18]
    %85 = sst [smem:[#allocation12]] [#allocation17]
  $region29: #{tpu_custom_call.1} parent=0 // pred_fallthru
    _
  %87 = shalt.err (0)
  %s89 = sshll.u32 %s80, 4
  %s90 = int_to_ptr.vmem [resolvable:$true] %s89
  %92 = dma.hbm_to_vmem [thread:$0]  %s79, 16, %s90, %s81
  %v93 = vld [vmem:[#allocation2] sm:$0x1]
  %v94 = vadd.f32 %v93, 0.0
  %s95 = sshll.u32 %s73, 4
  %96 = dma.done %s44, %s95
  %s97 = sadd.s32 %s24, 4
  %s98 = sld [smem:[#allocation6 + %s97]]
  %s99 = smul.addr %s98, 16
  %s100 = scalar_lea.hbm %s4, %s99
  // Predicated region
  $region30: #{tpu_custom_call.1} parent=0 // pred_check
    _
  $region31: #{tpu_custom_call.1} parent=0 // pred_check_branch
    %102 = sbr.rel target = $region33
  $region32: #{tpu_custom_call.1} parent=0 // pred_region
    %103 = sst [smem:[#allocation11]] [#allocation20]
    %104 = sst [smem:[#allocation12]] [#allocation19]
  $region33: #{tpu_custom_call.1} parent=0 // pred_fallthru
    _
  %106 = shalt.err (0)
  %s108 = sshll.u32 [#allocation2], 4
  %s109 = int_to_ptr.vmem [resolvable:$true] %s108
  %111 = dma.hbm_to_vmem [thread:$0]  %s100, 16, %s109, [#allocation3]
  %v112 = vld [vmem:[%s43] sm:$0x1]
  %v113 = vadd.f32 %v94, %v112
  %s114 = sshll.u32 %s73, 4
  %115 = dma.done %s61, %s114
  %s116 = sadd.s32 %s24, 5
  %s117 = sld [smem:[#allocation6 + %s116]]
  %s118 = smul.addr %s117, 16
  %s119 = scalar_lea.hbm %s4, %s118
  // Predicated region
  $region34: #{tpu_custom_call.1} parent=0 // pred_check
    _
  $region35: #{tpu_custom_call.1} parent=0 // pred_check_branch
    %121 = sbr.rel target = $region37
  $region36: #{tpu_custom_call.1} parent=0 // pred_region
    %122 = sst [smem:[#allocation11]] [#allocation22]
    %123 = sst [smem:[#allocation12]] [#allocation21]
  $region37: #{tpu_custom_call.1} parent=0 // pred_fallthru
    _
  %125 = shalt.err (0)
  %s127 = sshll.u32 %s43, 4
  %s128 = int_to_ptr.vmem [resolvable:$true] %s127
  %130 = dma.hbm_to_vmem [thread:$0]  %s119, 16, %s128, %s44
  %v131 = vld [vmem:[%s60] sm:$0x1]
  %v132 = vadd.f32 %v113, %v131
  %s133 = sshll.u32 %s73, 4
  %134 = dma.done %s81, %s133
  %s135 = sadd.s32 %s24, 6
  %s136 = sld [smem:[#allocation6 + %s135]]
  %s137 = smul.addr %s136, 16
  %s138 = scalar_lea.hbm %s4, %s137
  // Predicated region
  $region38: #{tpu_custom_call.1} parent=0 // pred_check
    _
  $region39: #{tpu_custom_call.1} parent=0 // pred_check_branch
    %140 = sbr.rel target = $region41
  $region40: #{tpu_custom_call.1} parent=0 // pred_region
    %141 = sst [smem:[#allocation11]] [#allocation24]
    %142 = sst [smem:[#allocation12]] [#allocation23]
  $region41: #{tpu_custom_call.1} parent=0 // pred_fallthru
    _
  %144 = shalt.err (0)
  %s146 = sshll.u32 %s60, 4
  %s147 = int_to_ptr.vmem [resolvable:$true] %s146
  %149 = dma.hbm_to_vmem [thread:$0]  %s138, 16, %s147, %s61
  %v150 = vld [vmem:[%s80] sm:$0x1]
  %v151 = vadd.f32 %v132, %v150
  %s152 = sshll.u32 %s73, 4
  %153 = dma.done [#allocation3], %s152
  %s154 = sadd.s32 %s24, 7
  %s155 = sld [smem:[#allocation6 + %s154]]
  %s156 = smul.addr %s155, 16
  %s157 = scalar_lea.hbm %s4, %s156
  // Predicated region
  $region42: #{tpu_custom_call.1} parent=0 // pred_check
    _
  $region43: #{tpu_custom_call.1} parent=0 // pred_check_branch
    %159 = sbr.rel target = $region45
  $region44: #{tpu_custom_call.1} parent=0 // pred_region
    %160 = sst [smem:[#allocation11]] [#allocation26]
    %161 = sst [smem:[#allocation12]] [#allocation25]
  $region45: #{tpu_custom_call.1} parent=0 // pred_fallthru
    _
  %163 = shalt.err (0)
  %s165 = sshll.u32 %s80, 4
  %s166 = int_to_ptr.vmem [resolvable:$true] %s165
  %168 = dma.hbm_to_vmem [thread:$0]  %s157, 16, %s166, %s81
  %v169 = vld [vmem:[#allocation2] sm:$0x1]
  %v170 = vadd.f32 %v151, %v169
  %s171 = sshll.u32 %s73, 4
  %172 = dma.done %s44, %s171
  %s173 = sadd.s32 %s24, 8
  %s174 = sld [smem:[#allocation6 + %s173]]
  %s175 = smul.addr %s174, 16
  %s176 = scalar_lea.hbm %s4, %s175
  // Predicated region
  $region46: #{tpu_custom_call.1} parent=0 // pred_check
    _
  $region47: #{tpu_custom_call.1} parent=0 // pred_check_branch
    %178 = sbr.rel target = $region49
  $region48: #{tpu_custom_call.1} parent=0 // pred_region
    %179 = sst [smem:[#allocation11]] [#allocation28]
    %180 = sst [smem:[#allocation12]] [#allocation27]
  $region49: #{tpu_custom_call.1} parent=0 // pred_fallthru
    _
  %182 = shalt.err (0)
  %s184 = sshll.u32 [#allocation2], 4
  %s185 = int_to_ptr.vmem [resolvable:$true] %s184
  %187 = dma.hbm_to_vmem [thread:$0]  %s176, 16, %s185, [#allocation3]
  %v188 = vld [vmem:[%s43] sm:$0x1]
  %v189 = vadd.f32 %v170, %v188
  %s190 = sshll.u32 %s73, 4
  %191 = dma.done %s61, %s190
  %s192 = sadd.s32 %s24, 9
  %s193 = sld [smem:[#allocation6 + %s192]]
  %s194 = smul.addr %s193, 16
  %s195 = scalar_lea.hbm %s4, %s194
  // Predicated region
  $region50: #{tpu_custom_call.1} parent=0 // pred_check
    _
  $region51: #{tpu_custom_call.1} parent=0 // pred_check_branch
    %197 = sbr.rel target = $region53
  $region52: #{tpu_custom_call.1} parent=0 // pred_region
    %198 = sst [smem:[#allocation11]] [#allocation30]
    %199 = sst [smem:[#allocation12]] [#allocation29]
  $region53: #{tpu_custom_call.1} parent=0 // pred_fallthru
    _
  %201 = shalt.err (0)
  %s203 = sshll.u32 %s43, 4
  %s204 = int_to_ptr.vmem [resolvable:$true] %s203
  %206 = dma.hbm_to_vmem [thread:$0]  %s195, 16, %s204, %s44
  %v207 = vld [vmem:[%s60] sm:$0x1]
  %v208 = vadd.f32 %v189, %v207
  %s209 = sshll.u32 %s73, 4
  %210 = dma.done %s81, %s209
  %s211 = sadd.s32 %s24, 10
  %s212 = sld [smem:[#allocation6 + %s211]]
  %s213 = smul.addr %s212, 16
  %s214 = scalar_lea.hbm %s4, %s213
  // Predicated region
  $region54: #{tpu_custom_call.1} parent=0 // pred_check
    _
  $region55: #{tpu_custom_call.1} parent=0 // pred_check_branch
    %216 = sbr.rel target = $region57
  $region56: #{tpu_custom_call.1} parent=0 // pred_region
    %217 = sst [smem:[#allocation11]] [#allocation32]
    %218 = sst [smem:[#allocation12]] [#allocation31]
  $region57: #{tpu_custom_call.1} parent=0 // pred_fallthru
    _
  %220 = shalt.err (0)
  %s222 = sshll.u32 %s60, 4
  %s223 = int_to_ptr.vmem [resolvable:$true] %s222
  %225 = dma.hbm_to_vmem [thread:$0]  %s214, 16, %s223, %s61
  %v226 = vld [vmem:[%s80] sm:$0x1]
  %v227 = vadd.f32 %v208, %v226
  %228 = vst [vmem:[#allocation4] sm:$0x1] %v227
  %s229 = sshll.u32 %s73, 4
  %230 = dma.done [#allocation3], %s229
  %s231 = sadd.s32 %s24, 11
  %s232 = sld [smem:[#allocation6 + %s231]]
  %s233 = smul.addr %s232, 16
  %s234 = scalar_lea.hbm %s4, %s233
  // Predicated region
  $region58: #{tpu_custom_call.1} parent=0 // pred_check
    _
  $region59: #{tpu_custom_call.1} parent=0 // pred_check_branch
    %236 = sbr.rel target = $region61
  $region60: #{tpu_custom_call.1} parent=0 // pred_region
    %237 = sst [smem:[#allocation11]] [#allocation34]
    %238 = sst [smem:[#allocation12]] [#allocation33]
  $region61: #{tpu_custom_call.1} parent=0 // pred_fallthru
    _
  %240 = shalt.err (0)
  %s242 = sshll.u32 %s80, 4
  %s243 = int_to_ptr.vmem [resolvable:$true] %s242
  %245 = dma.hbm_to_vmem [thread:$0]  %s234, 16, %s243, %s81
  %v246 = vld [vmem:[#allocation2] sm:$0x1]
  %v247 = vadd.f32 %v246, 0.0
  %s248 = sshll.u32 %s73, 4
  %249 = dma.done %s44, %s248
  %s250 = sadd.s32 %s24, 12
  %s251 = sld [smem:[#allocation6 + %s250]]
  %s252 = smul.addr %s251, 16
  %s253 = scalar_lea.hbm %s4, %s252
  // Predicated region
  $region62: #{tpu_custom_call.1} parent=0 // pred_check
    _
  $region63: #{tpu_custom_call.1} parent=0 // pred_check_branch
    %255 = sbr.rel target = $region65
  $region64: #{tpu_custom_call.1} parent=0 // pred_region
    %256 = sst [smem:[#allocation11]] [#allocation36]
    %257 = sst [smem:[#allocation12]] [#allocation35]
  $region65: #{tpu_custom_call.1} parent=0 // pred_fallthru
    _
  %259 = shalt.err (0)
  %s261 = sshll.u32 [#allocation2], 4
  %s262 = int_to_ptr.vmem [resolvable:$true] %s261
  %264 = dma.hbm_to_vmem [thread:$0]  %s253, 16, %s262, [#allocation3]
  %v265 = vld [vmem:[%s43] sm:$0x1]
  %v266 = vadd.f32 %v247, %v265
  %s267 = sshll.u32 %s73, 4
  %268 = dma.done %s61, %s267
  %s269 = sadd.s32 %s24, 13
  %s270 = sld [smem:[#allocation6 + %s269]]
  %s271 = smul.addr %s270, 16
  %s272 = scalar_lea.hbm %s4, %s271
  // Predicated region
  $region66: #{tpu_custom_call.1} parent=0 // pred_check
    _
  $region67: #{tpu_custom_call.1} parent=0 // pred_check_branch
    %274 = sbr.rel target = $region69
  $region68: #{tpu_custom_call.1} parent=0 // pred_region
    %275 = sst [smem:[#allocation11]] [#allocation38]
    %276 = sst [smem:[#allocation12]] [#allocation37]
  $region69: #{tpu_custom_call.1} parent=0 // pred_fallthru
    _
  %278 = shalt.err (0)
  %s280 = sshll.u32 %s43, 4
  %s281 = int_to_ptr.vmem [resolvable:$true] %s280
  %283 = dma.hbm_to_vmem [thread:$0]  %s272, 16, %s281, %s44
  %v284 = vld [vmem:[%s60] sm:$0x1]
  %v285 = vadd.f32 %v266, %v284
  %s286 = sshll.u32 %s73, 4
  %287 = dma.done %s81, %s286
  %s288 = sadd.s32 %s24, 14
  %s289 = sld [smem:[#allocation6 + %s288]]
  %s290 = smul.addr %s289, 16
  %s291 = scalar_lea.hbm %s4, %s290
  // Predicated region
  $region70: #{tpu_custom_call.1} parent=0 // pred_check
    _
  $region71: #{tpu_custom_call.1} parent=0 // pred_check_branch
    %293 = sbr.rel target = $region73
  $region72: #{tpu_custom_call.1} parent=0 // pred_region
    %294 = sst [smem:[#allocation11]] [#allocation40]
    %295 = sst [smem:[#allocation12]] [#allocation39]
  $region73: #{tpu_custom_call.1} parent=0 // pred_fallthru
    _
  %297 = shalt.err (0)
  %s299 = sshll.u32 %s60, 4
  %s300 = int_to_ptr.vmem [resolvable:$true] %s299
  %302 = dma.hbm_to_vmem [thread:$0]  %s291, 16, %s300, %s61
  %v303 = vld [vmem:[%s80] sm:$0x1]
  %v304 = vadd.f32 %v285, %v303
  %s305 = sshll.u32 %s73, 4
  %306 = dma.done [#allocation3], %s305
  %s307 = sadd.s32 %s24, 15
  %s308 = sld [smem:[#allocation6 + %s307]]
  %s309 = smul.addr %s308, 16
  %s310 = scalar_lea.hbm %s4, %s309
  // Predicated region
  $region74: #{tpu_custom_call.1} parent=0 // pred_check
    _
  $region75: #{tpu_custom_call.1} parent=0 // pred_check_branch
    %312 = sbr.rel target = $region77
  $region76: #{tpu_custom_call.1} parent=0 // pred_region
    %313 = sst [smem:[#allocation11]] [#allocation42]
    %314 = sst [smem:[#allocation12]] [#allocation41]
  $region77: #{tpu_custom_call.1} parent=0 // pred_fallthru
    _
  %316 = shalt.err (0)
  %s318 = sshll.u32 %s80, 4
  %s319 = int_to_ptr.vmem [resolvable:$true] %s318
  %321 = dma.hbm_to_vmem [thread:$0]  %s310, 16, %s319, %s81
  %v322 = vld [vmem:[#allocation2] sm:$0x1]
  %v323 = vadd.f32 %v304, %v322
  %s324 = sshll.u32 %s73, 4
  %325 = dma.done %s44, %s324
  %s326 = sadd.s32 %s24, 16
  %s327 = sld [smem:[#allocation6 + %s326]]
  %s328 = smul.addr %s327, 16
  %s329 = scalar_lea.hbm %s4, %s328
  // Predicated region
  $region78: #{tpu_custom_call.1} parent=0 // pred_check
    _
  $region79: #{tpu_custom_call.1} parent=0 // pred_check_branch
    %331 = sbr.rel target = $region81
  $region80: #{tpu_custom_call.1} parent=0 // pred_region
    %332 = sst [smem:[#allocation11]] [#allocation44]
    %333 = sst [smem:[#allocation12]] [#allocation43]
  $region81: #{tpu_custom_call.1} parent=0 // pred_fallthru
    _
  %335 = shalt.err (0)
  %s337 = sshll.u32 [#allocation2], 4
  %s338 = int_to_ptr.vmem [resolvable:$true] %s337
  %340 = dma.hbm_to_vmem [thread:$0]  %s329, 16, %s338, [#allocation3]
  %v341 = vld [vmem:[%s43] sm:$0x1]
  %v342 = vadd.f32 %v323, %v341
  %s343 = sshll.u32 %s73, 4
  %344 = dma.done %s61, %s343
  %s345 = sadd.s32 %s24, 17
  %s346 = sld [smem:[#allocation6 + %s345]]
  %s347 = smul.addr %s346, 16
  %s348 = scalar_lea.hbm %s4, %s347
  // Predicated region
  $region82: #{tpu_custom_call.1} parent=0 // pred_check
    _
  $region83: #{tpu_custom_call.1} parent=0 // pred_check_branch
    %350 = sbr.rel target = $region85
  $region84: #{tpu_custom_call.1} parent=0 // pred_region
    %351 = sst [smem:[#allocation11]] [#allocation46]
    %352 = sst [smem:[#allocation12]] [#allocation45]
  $region85: #{tpu_custom_call.1} parent=0 // pred_fallthru
    _
  %354 = shalt.err (0)
  %s356 = sshll.u32 %s43, 4
  %s357 = int_to_ptr.vmem [resolvable:$true] %s356
  %359 = dma.hbm_to_vmem [thread:$0]  %s348, 16, %s357, %s44
  %v360 = vld [vmem:[%s60] sm:$0x1]
  %v361 = vadd.f32 %v342, %v360
  %s362 = sshll.u32 %s73, 4
  %363 = dma.done %s81, %s362
  %s364 = sadd.s32 %s24, 18
  %s365 = sld [smem:[#allocation6 + %s364]]
  %s366 = smul.addr %s365, 16
  %s367 = scalar_lea.hbm %s4, %s366
  // Predicated region
  $region86: #{tpu_custom_call.1} parent=0 // pred_check
    _
  $region87: #{tpu_custom_call.1} parent=0 // pred_check_branch
    %369 = sbr.rel target = $region89
  $region88: #{tpu_custom_call.1} parent=0 // pred_region
    %370 = sst [smem:[#allocation11]] [#allocation48]
    %371 = sst [smem:[#allocation12]] [#allocation47]
  $region89: #{tpu_custom_call.1} parent=0 // pred_fallthru
    _
  %373 = shalt.err (0)
  %s375 = sshll.u32 %s60, 4
  %s376 = int_to_ptr.vmem [resolvable:$true] %s375
  %378 = dma.hbm_to_vmem [thread:$0]  %s367, 16, %s376, %s61
  %v379 = vld [vmem:[%s80] sm:$0x1]
  %v380 = vadd.f32 %v361, %v379
  %381 = vst [vmem:[#allocation4 + $0x1] sm:$0x1] %v380
  %s382 = sshll.u32 %s73, 4
  %383 = dma.done [#allocation3], %s382
  %s384 = sadd.s32 %s24, 19
  %s385 = sld [smem:[#allocation6 + %s384]]
  %s386 = smul.addr %s385, 16
  %s387 = scalar_lea.hbm %s4, %s386
  // Predicated region
  $region90: #{tpu_custom_call.1} parent=0 // pred_check
    _
  $region91: #{tpu_custom_call.1} parent=0 // pred_check_branch
    %389 = sbr.rel target = $region93
  $region92: #{tpu_custom_call.1} parent=0 // pred_region
    %390 = sst [smem:[#allocation11]] [#allocation50]
    %391 = sst [smem:[#allocation12]] [#allocation49]
  $region93: #{tpu_custom_call.1} parent=0 // pred_fallthru
    _
  %393 = shalt.err (0)
  %s395 = sshll.u32 %s80, 4
  %s396 = int_to_ptr.vmem [resolvable:$true] %s395
  %398 = dma.hbm_to_vmem [thread:$0]  %s387, 16, %s396, %s81
  %v399 = vld [vmem:[#allocation2] sm:$0x1]
  %v400 = vadd.f32 %v399, 0.0
  %s401 = sshll.u32 %s73, 4
  %402 = dma.done %s44, %s401
  %s403 = sadd.s32 %s24, 20
  %s404 = sld [smem:[#allocation6 + %s403]]
  %s405 = smul.addr %s404, 16
  %s406 = scalar_lea.hbm %s4, %s405
  // Predicated region
  $region94: #{tpu_custom_call.1} parent=0 // pred_check
    _
  $region95: #{tpu_custom_call.1} parent=0 // pred_check_branch
    %408 = sbr.rel target = $region97
  $region96: #{tpu_custom_call.1} parent=0 // pred_region
    %409 = sst [smem:[#allocation11]] [#allocation52]
    %410 = sst [smem:[#allocation12]] [#allocation51]
  $region97: #{tpu_custom_call.1} parent=0 // pred_fallthru
    _
  %412 = shalt.err (0)
  %s414 = sshll.u32 [#allocation2], 4
  %s415 = int_to_ptr.vmem [resolvable:$true] %s414
  %417 = dma.hbm_to_vmem [thread:$0]  %s406, 16, %s415, [#allocation3]
  %v418 = vld [vmem:[%s43] sm:$0x1]
  %v419 = vadd.f32 %v400, %v418
  %s420 = sshll.u32 %s73, 4
  %421 = dma.done %s61, %s420
  %s422 = sadd.s32 %s24, 21
  %s423 = sld [smem:[#allocation6 + %s422]]
  %s424 = smul.addr %s423, 16
  %s425 = scalar_lea.hbm %s4, %s424
  // Predicated region
  $region98: #{tpu_custom_call.1} parent=0 // pred_check
    _
  $region99: #{tpu_custom_call.1} parent=0 // pred_check_branch
    %427 = sbr.rel target = $region101
  $region100: #{tpu_custom_call.1} parent=0 // pred_region
    %428 = sst [smem:[#allocation11]] [#allocation54]
    %429 = sst [smem:[#allocation12]] [#allocation53]
  $region101: #{tpu_custom_call.1} parent=0 // pred_fallthru
    _
  %431 = shalt.err (0)
  %s433 = sshll.u32 %s43, 4
  %s434 = int_to_ptr.vmem [resolvable:$true] %s433
  %436 = dma.hbm_to_vmem [thread:$0]  %s425, 16, %s434, %s44
  %v437 = vld [vmem:[%s60] sm:$0x1]
  %v438 = vadd.f32 %v419, %v437
  %s439 = sshll.u32 %s73, 4
  %440 = dma.done %s81, %s439
  %s441 = sadd.s32 %s24, 22
  %s442 = sld [smem:[#allocation6 + %s441]]
  %s443 = smul.addr %s442, 16
  %s444 = scalar_lea.hbm %s4, %s443
  // Predicated region
  $region102: #{tpu_custom_call.1} parent=0 // pred_check
    _
  $region103: #{tpu_custom_call.1} parent=0 // pred_check_branch
    %446 = sbr.rel target = $region105
  $region104: #{tpu_custom_call.1} parent=0 // pred_region
    %447 = sst [smem:[#allocation11]] [#allocation56]
    %448 = sst [smem:[#allocation12]] [#allocation55]
  $region105: #{tpu_custom_call.1} parent=0 // pred_fallthru
    _
  %450 = shalt.err (0)
  %s452 = sshll.u32 %s60, 4
  %s453 = int_to_ptr.vmem [resolvable:$true] %s452
  %455 = dma.hbm_to_vmem [thread:$0]  %s444, 16, %s453, %s61
  %v456 = vld [vmem:[%s80] sm:$0x1]
  %v457 = vadd.f32 %v438, %v456
  %s458 = sshll.u32 %s73, 4
  %459 = dma.done [#allocation3], %s458
  %s460 = sadd.s32 %s24, 23
  %s461 = sld [smem:[#allocation6 + %s460]]
  %s462 = smul.addr %s461, 16
  %s463 = scalar_lea.hbm %s4, %s462
  // Predicated region
  $region106: #{tpu_custom_call.1} parent=0 // pred_check
    _
  $region107: #{tpu_custom_call.1} parent=0 // pred_check_branch
    %465 = sbr.rel target = $region109
  $region108: #{tpu_custom_call.1} parent=0 // pred_region
    %466 = sst [smem:[#allocation11]] [#allocation58]
    %467 = sst [smem:[#allocation12]] [#allocation57]
  $region109: #{tpu_custom_call.1} parent=0 // pred_fallthru
    _
  %469 = shalt.err (0)
  %s471 = sshll.u32 %s80, 4
  %s472 = int_to_ptr.vmem [resolvable:$true] %s471
  %474 = dma.hbm_to_vmem [thread:$0]  %s463, 16, %s472, %s81
  %v475 = vld [vmem:[#allocation2] sm:$0x1]
  %v476 = vadd.f32 %v457, %v475
  %s477 = sshll.u32 %s73, 4
  %478 = dma.done %s44, %s477
  %s479 = sadd.s32 %s24, 24
  %s480 = sld [smem:[#allocation6 + %s479]]
  %s481 = smul.addr %s480, 16
  %s482 = scalar_lea.hbm %s4, %s481
  // Predicated region
  $region110: #{tpu_custom_call.1} parent=0 // pred_check
    _
  $region111: #{tpu_custom_call.1} parent=0 // pred_check_branch
    %484 = sbr.rel target = $region113
  $region112: #{tpu_custom_call.1} parent=0 // pred_region
    %485 = sst [smem:[#allocation11]] [#allocation60]
    %486 = sst [smem:[#allocation12]] [#allocation59]
  $region113: #{tpu_custom_call.1} parent=0 // pred_fallthru
    _
  %488 = shalt.err (0)
  %s490 = sshll.u32 [#allocation2], 4
  %s491 = int_to_ptr.vmem [resolvable:$true] %s490
  %493 = dma.hbm_to_vmem [thread:$0]  %s482, 16, %s491, [#allocation3]
  %v494 = vld [vmem:[%s43] sm:$0x1]
  %v495 = vadd.f32 %v476, %v494
  %s496 = sshll.u32 %s73, 4
  %497 = dma.done %s61, %s496
  %s498 = sadd.s32 %s24, 25
  %s499 = sld [smem:[#allocation6 + %s498]]
  %s500 = smul.addr %s499, 16
  %s501 = scalar_lea.hbm %s4, %s500
  // Predicated region
  $region114: #{tpu_custom_call.1} parent=0 // pred_check
    _
  $region115: #{tpu_custom_call.1} parent=0 // pred_check_branch
    %503 = sbr.rel target = $region117
  $region116: #{tpu_custom_call.1} parent=0 // pred_region
    %504 = sst [smem:[#allocation11]] [#allocation62]
    %505 = sst [smem:[#allocation12]] [#allocation61]
  $region117: #{tpu_custom_call.1} parent=0 // pred_fallthru
    _
  %507 = shalt.err (0)
  %s509 = sshll.u32 %s43, 4
  %s510 = int_to_ptr.vmem [resolvable:$true] %s509
  %512 = dma.hbm_to_vmem [thread:$0]  %s501, 16, %s510, %s44
  %v513 = vld [vmem:[%s60] sm:$0x1]
  %v514 = vadd.f32 %v495, %v513
  %s515 = sshll.u32 %s73, 4
  %516 = dma.done %s81, %s515
  %s517 = sadd.s32 %s24, 26
  %s518 = sld [smem:[#allocation6 + %s517]]
  %s519 = smul.addr %s518, 16
  %s520 = scalar_lea.hbm %s4, %s519
  // Predicated region
  $region118: #{tpu_custom_call.1} parent=0 // pred_check
    _
  $region119: #{tpu_custom_call.1} parent=0 // pred_check_branch
    %522 = sbr.rel target = $region121
  $region120: #{tpu_custom_call.1} parent=0 // pred_region
    %523 = sst [smem:[#allocation11]] [#allocation64]
    %524 = sst [smem:[#allocation12]] [#allocation63]
  $region121: #{tpu_custom_call.1} parent=0 // pred_fallthru
    _
  %526 = shalt.err (0)
  %s528 = sshll.u32 %s60, 4
  %s529 = int_to_ptr.vmem [resolvable:$true] %s528
  %531 = dma.hbm_to_vmem [thread:$0]  %s520, 16, %s529, %s61
  %v532 = vld [vmem:[%s80] sm:$0x1]
  %v533 = vadd.f32 %v514, %v532
  %534 = vst [vmem:[#allocation4 + $0x2] sm:$0x1] %v533
  %s535 = sshll.u32 %s73, 4
  %536 = dma.done [#allocation3], %s535
  %s537 = sadd.s32 %s24, 27
  %s538 = sld [smem:[#allocation6 + %s537]]
  %s539 = smul.addr %s538, 16
  %s540 = scalar_lea.hbm %s4, %s539
  // Predicated region
  $region122: #{tpu_custom_call.1} parent=0 // pred_check
    _
  $region123: #{tpu_custom_call.1} parent=0 // pred_check_branch
    %542 = sbr.rel target = $region125
  $region124: #{tpu_custom_call.1} parent=0 // pred_region
    %543 = sst [smem:[#allocation11]] [#allocation66]
    %544 = sst [smem:[#allocation12]] [#allocation65]
  $region125: #{tpu_custom_call.1} parent=0 // pred_fallthru
    _
  %546 = shalt.err (0)
  %s548 = sshll.u32 %s80, 4
  %s549 = int_to_ptr.vmem [resolvable:$true] %s548
  %551 = dma.hbm_to_vmem [thread:$0]  %s540, 16, %s549, %s81
  %v552 = vld [vmem:[#allocation2] sm:$0x1]
  %v553 = vadd.f32 %v552, 0.0
  %s554 = sshll.u32 %s73, 4
  %555 = dma.done %s44, %s554
  %s556 = sadd.s32 %s24, 28
  %s557 = sld [smem:[#allocation6 + %s556]]
  %s558 = smul.addr %s557, 16
  %s559 = scalar_lea.hbm %s4, %s558
  // Predicated region
  $region126: #{tpu_custom_call.1} parent=0 // pred_check
    _
  $region127: #{tpu_custom_call.1} parent=0 // pred_check_branch
    %561 = sbr.rel target = $region129
  $region128: #{tpu_custom_call.1} parent=0 // pred_region
    %562 = sst [smem:[#allocation11]] [#allocation68]
    %563 = sst [smem:[#allocation12]] [#allocation67]
  $region129: #{tpu_custom_call.1} parent=0 // pred_fallthru
    _
  %565 = shalt.err (0)
  %s567 = sshll.u32 [#allocation2], 4
  %s568 = int_to_ptr.vmem [resolvable:$true] %s567
  %570 = dma.hbm_to_vmem [thread:$0]  %s559, 16, %s568, [#allocation3]
  %v571 = vld [vmem:[%s43] sm:$0x1]
  %v572 = vadd.f32 %v553, %v571
  %s573 = sshll.u32 %s73, 4
  %574 = dma.done %s61, %s573
  %s575 = sadd.s32 %s24, 29
  %s576 = sld [smem:[#allocation6 + %s575]]
  %s577 = smul.addr %s576, 16
  %s578 = scalar_lea.hbm %s4, %s577
  // Predicated region
  $region130: #{tpu_custom_call.1} parent=0 // pred_check
    _
  $region131: #{tpu_custom_call.1} parent=0 // pred_check_branch
    %580 = sbr.rel target = $region133
  $region132: #{tpu_custom_call.1} parent=0 // pred_region
    %581 = sst [smem:[#allocation11]] [#allocation70]
    %582 = sst [smem:[#allocation12]] [#allocation69]
  $region133: #{tpu_custom_call.1} parent=0 // pred_fallthru
    _
  %584 = shalt.err (0)
  %s586 = sshll.u32 %s43, 4
  %s587 = int_to_ptr.vmem [resolvable:$true] %s586
  %589 = dma.hbm_to_vmem [thread:$0]  %s578, 16, %s587, %s44
  %v590 = vld [vmem:[%s60] sm:$0x1]
  %v591 = vadd.f32 %v572, %v590
  %s592 = sshll.u32 %s73, 4
  %593 = dma.done %s81, %s592
  %s594 = sadd.s32 %s24, 30
  %s595 = sld [smem:[#allocation6 + %s594]]
  %s596 = smul.addr %s595, 16
  %s597 = scalar_lea.hbm %s4, %s596
  // Predicated region
  $region134: #{tpu_custom_call.1} parent=0 // pred_check
    _
  $region135: #{tpu_custom_call.1} parent=0 // pred_check_branch
    %599 = sbr.rel target = $region137
  $region136: #{tpu_custom_call.1} parent=0 // pred_region
    %600 = sst [smem:[#allocation11]] [#allocation72]
    %601 = sst [smem:[#allocation12]] [#allocation71]
  $region137: #{tpu_custom_call.1} parent=0 // pred_fallthru
    _
  %603 = shalt.err (0)
  %s605 = sshll.u32 %s60, 4
  %s606 = int_to_ptr.vmem [resolvable:$true] %s605
  %608 = dma.hbm_to_vmem [thread:$0]  %s597, 16, %s606, %s61
  %v609 = vld [vmem:[%s80] sm:$0x1]
  %v610 = vadd.f32 %v591, %v609
  %s611 = sshll.u32 %s73, 4
  %612 = dma.done [#allocation3], %s611
  %s613 = sadd.s32 %s24, 31
  %s614 = sld [smem:[#allocation6 + %s613]]
  %s615 = smul.addr %s614, 16
  %s616 = scalar_lea.hbm %s4, %s615
  // Predicated region
  $region138: #{tpu_custom_call.1} parent=0 // pred_check
    _
  $region139: #{tpu_custom_call.1} parent=0 // pred_check_branch
    %618 = sbr.rel target = $region141
  $region140: #{tpu_custom_call.1} parent=0 // pred_region
    %619 = sst [smem:[#allocation11]] [#allocation74]
    %620 = sst [smem:[#allocation12]] [#allocation73]
  $region141: #{tpu_custom_call.1} parent=0 // pred_fallthru
    _
  %622 = shalt.err (0)
  %s624 = sshll.u32 %s80, 4
  %s625 = int_to_ptr.vmem [resolvable:$true] %s624
  %627 = dma.hbm_to_vmem [thread:$0]  %s616, 16, %s625, %s81
  %v628 = vld [vmem:[#allocation2] sm:$0x1]
  %v629 = vadd.f32 %v610, %v628
  %s630 = sshll.u32 %s73, 4
  %631 = dma.done %s44, %s630
  %s632 = sadd.s32 %s24, 32
  %s633 = sld [smem:[#allocation6 + %s632]]
  %s634 = smul.addr %s633, 16
  %s635 = scalar_lea.hbm %s4, %s634
  // Predicated region
  $region142: #{tpu_custom_call.1} parent=0 // pred_check
    _
  $region143: #{tpu_custom_call.1} parent=0 // pred_check_branch
    %637 = sbr.rel target = $region145
  $region144: #{tpu_custom_call.1} parent=0 // pred_region
    %638 = sst [smem:[#allocation11]] [#allocation76]
    %639 = sst [smem:[#allocation12]] [#allocation75]
  $region145: #{tpu_custom_call.1} parent=0 // pred_fallthru
    _
  %641 = shalt.err (0)
  %s643 = sshll.u32 [#allocation2], 4
  %s644 = int_to_ptr.vmem [resolvable:$true] %s643
  %646 = dma.hbm_to_vmem [thread:$0]  %s635, 16, %s644, [#allocation3]
  %v647 = vld [vmem:[%s43] sm:$0x1]
  %v648 = vadd.f32 %v629, %v647
  %s649 = sshll.u32 %s73, 4
  %650 = dma.done %s61, %s649
  %s651 = sadd.s32 %s24, 33
  %s652 = sld [smem:[#allocation6 + %s651]]
  %s653 = smul.addr %s652, 16
  %s654 = scalar_lea.hbm %s4, %s653
  // Predicated region
  $region146: #{tpu_custom_call.1} parent=0 // pred_check
    _
  $region147: #{tpu_custom_call.1} parent=0 // pred_check_branch
    %656 = sbr.rel target = $region149
  $region148: #{tpu_custom_call.1} parent=0 // pred_region
    %657 = sst [smem:[#allocation11]] [#allocation78]
    %658 = sst [smem:[#allocation12]] [#allocation77]
  $region149: #{tpu_custom_call.1} parent=0 // pred_fallthru
    _
  %660 = shalt.err (0)
  %s662 = sshll.u32 %s43, 4
  %s663 = int_to_ptr.vmem [resolvable:$true] %s662
  %665 = dma.hbm_to_vmem [thread:$0]  %s654, 16, %s663, %s44
  %v666 = vld [vmem:[%s60] sm:$0x1]
  %v667 = vadd.f32 %v648, %v666
  %s668 = sshll.u32 %s73, 4
  %669 = dma.done %s81, %s668
  %s670 = sadd.s32 %s24, 34
  %s671 = sld [smem:[#allocation6 + %s670]]
  %s672 = smul.addr %s671, 16
  %s673 = scalar_lea.hbm %s4, %s672
  // Predicated region
  $region150: #{tpu_custom_call.1} parent=0 // pred_check
    _
  $region151: #{tpu_custom_call.1} parent=0 // pred_check_branch
    %675 = sbr.rel target = $region153
  $region152: #{tpu_custom_call.1} parent=0 // pred_region
    %676 = sst [smem:[#allocation11]] [#allocation80]
    %677 = sst [smem:[#allocation12]] [#allocation79]
  $region153: #{tpu_custom_call.1} parent=0 // pred_fallthru
    _
  %679 = shalt.err (0)
  %s681 = sshll.u32 %s60, 4
  %s682 = int_to_ptr.vmem [resolvable:$true] %s681
  %684 = dma.hbm_to_vmem [thread:$0]  %s673, 16, %s682, %s61
  %v685 = vld [vmem:[%s80] sm:$0x1]
  %v686 = vadd.f32 %v667, %v685
  %687 = vst [vmem:[#allocation4 + $0x3] sm:$0x1] %v686
  %s688 = sshll.u32 %s73, 4
  %689 = dma.done [#allocation3], %s688
  %s690 = sadd.s32 %s24, 35
  %s691 = sld [smem:[#allocation6 + %s690]]
  %s692 = smul.addr %s691, 16
  %s693 = scalar_lea.hbm %s4, %s692
  // Predicated region
  $region154: #{tpu_custom_call.1} parent=0 // pred_check
    _
  $region155: #{tpu_custom_call.1} parent=0 // pred_check_branch
    %695 = sbr.rel target = $region157
  $region156: #{tpu_custom_call.1} parent=0 // pred_region
    %696 = sst [smem:[#allocation11]] [#allocation82]
    %697 = sst [smem:[#allocation12]] [#allocation81]
  $region157: #{tpu_custom_call.1} parent=0 // pred_fallthru
    _
  %699 = shalt.err (0)
  %s701 = sshll.u32 %s80, 4
  %s702 = int_to_ptr.vmem [resolvable:$true] %s701
  %704 = dma.hbm_to_vmem [thread:$0]  %s693, 16, %s702, %s81
  %v705 = vld [vmem:[#allocation2] sm:$0x1]
  %v706 = vadd.f32 %v705, 0.0
  %s707 = sshll.u32 %s73, 4
  %708 = dma.done %s44, %s707
  %s709 = sadd.s32 %s24, 36
  %s710 = sld [smem:[#allocation6 + %s709]]
  %s711 = smul.addr %s710, 16
  %s712 = scalar_lea.hbm %s4, %s711
  // Predicated region
  $region158: #{tpu_custom_call.1} parent=0 // pred_check
    _
  $region159: #{tpu_custom_call.1} parent=0 // pred_check_branch
    %714 = sbr.rel target = $region161
  $region160: #{tpu_custom_call.1} parent=0 // pred_region
    %715 = sst [smem:[#allocation11]] [#allocation84]
    %716 = sst [smem:[#allocation12]] [#allocation83]
  $region161: #{tpu_custom_call.1} parent=0 // pred_fallthru
    _
  %718 = shalt.err (0)
  %s720 = sshll.u32 [#allocation2], 4
  %s721 = int_to_ptr.vmem [resolvable:$true] %s720
  %723 = dma.hbm_to_vmem [thread:$0]  %s712, 16, %s721, [#allocation3]
  %v724 = vld [vmem:[%s43] sm:$0x1]
  %v725 = vadd.f32 %v706, %v724
  %s726 = sshll.u32 %s73, 4
  %727 = dma.done %s61, %s726
  %s728 = sadd.s32 %s24, 37
  %s729 = sld [smem:[#allocation6 + %s728]]
  %s730 = smul.addr %s729, 16
  %s731 = scalar_lea.hbm %s4, %s730
  // Predicated region
  $region162: #{tpu_custom_call.1} parent=0 // pred_check
    _
  $region163: #{tpu_custom_call.1} parent=0 // pred_check_branch
    %733 = sbr.rel target = $region165
  $region164: #{tpu_custom_call.1} parent=0 // pred_region
    %734 = sst [smem:[#allocation11]] [#allocation86]
    %735 = sst [smem:[#allocation12]] [#allocation85]
  $region165: #{tpu_custom_call.1} parent=0 // pred_fallthru
    _
  %737 = shalt.err (0)
  %s739 = sshll.u32 %s43, 4
  %s740 = int_to_ptr.vmem [resolvable:$true] %s739
  %742 = dma.hbm_to_vmem [thread:$0]  %s731, 16, %s740, %s44
  %v743 = vld [vmem:[%s60] sm:$0x1]
  %v744 = vadd.f32 %v725, %v743
  %s745 = sshll.u32 %s73, 4
  %746 = dma.done %s81, %s745
  %s747 = sadd.s32 %s24, 38
  %s748 = sld [smem:[#allocation6 + %s747]]
  %s749 = smul.addr %s748, 16
  %s750 = scalar_lea.hbm %s4, %s749
  // Predicated region
  $region166: #{tpu_custom_call.1} parent=0 // pred_check
    _
  $region167: #{tpu_custom_call.1} parent=0 // pred_check_branch
    %752 = sbr.rel target = $region169
  $region168: #{tpu_custom_call.1} parent=0 // pred_region
    %753 = sst [smem:[#allocation11]] [#allocation88]
    %754 = sst [smem:[#allocation12]] [#allocation87]
  $region169: #{tpu_custom_call.1} parent=0 // pred_fallthru
    _
  %756 = shalt.err (0)
  %s758 = sshll.u32 %s60, 4
  %s759 = int_to_ptr.vmem [resolvable:$true] %s758
  %761 = dma.hbm_to_vmem [thread:$0]  %s750, 16, %s759, %s61
  %v762 = vld [vmem:[%s80] sm:$0x1]
  %v763 = vadd.f32 %v744, %v762
  %s764 = sshll.u32 %s73, 4
  %765 = dma.done [#allocation3], %s764
  %s766 = sadd.s32 %s24, 39
  %s767 = sld [smem:[#allocation6 + %s766]]
  %s768 = smul.addr %s767, 16
  %s769 = scalar_lea.hbm %s4, %s768
  // Predicated region
  $region170: #{tpu_custom_call.1} parent=0 // pred_check
    _
  $region171: #{tpu_custom_call.1} parent=0 // pred_check_branch
    %771 = sbr.rel target = $region173
  $region172: #{tpu_custom_call.1} parent=0 // pred_region
    %772 = sst [smem:[#allocation11]] [#allocation90]
    %773 = sst [smem:[#allocation12]] [#allocation89]
  $region173: #{tpu_custom_call.1} parent=0 // pred_fallthru
    _
  %775 = shalt.err (0)
  %s777 = sshll.u32 %s80, 4
  %s778 = int_to_ptr.vmem [resolvable:$true] %s777
  %780 = dma.hbm_to_vmem [thread:$0]  %s769, 16, %s778, %s81
  %v781 = vld [vmem:[#allocation2] sm:$0x1]
  %v782 = vadd.f32 %v763, %v781
  %s783 = sshll.u32 %s73, 4
  %784 = dma.done %s44, %s783
  %s785 = sadd.s32 %s24, 40
  %s786 = sld [smem:[#allocation6 + %s785]]
  %s787 = smul.addr %s786, 16
  %s788 = scalar_lea.hbm %s4, %s787
  // Predicated region
  $region174: #{tpu_custom_call.1} parent=0 // pred_check
    _
  $region175: #{tpu_custom_call.1} parent=0 // pred_check_branch
    %790 = sbr.rel target = $region177
  $region176: #{tpu_custom_call.1} parent=0 // pred_region
    %791 = sst [smem:[#allocation11]] [#allocation92]
    %792 = sst [smem:[#allocation12]] [#allocation91]
  $region177: #{tpu_custom_call.1} parent=0 // pred_fallthru
    _
  %794 = shalt.err (0)
  %s796 = sshll.u32 [#allocation2], 4
  %s797 = int_to_ptr.vmem [resolvable:$true] %s796
  %799 = dma.hbm_to_vmem [thread:$0]  %s788, 16, %s797, [#allocation3]
  %v800 = vld [vmem:[%s43] sm:$0x1]
  %v801 = vadd.f32 %v782, %v800
  %s802 = sshll.u32 %s73, 4
  %803 = dma.done %s61, %s802
  %s804 = sadd.s32 %s24, 41
  %s805 = sld [smem:[#allocation6 + %s804]]
  %s806 = smul.addr %s805, 16
  %s807 = scalar_lea.hbm %s4, %s806
  // Predicated region
  $region178: #{tpu_custom_call.1} parent=0 // pred_check
    _
  $region179: #{tpu_custom_call.1} parent=0 // pred_check_branch
    %809 = sbr.rel target = $region181
  $region180: #{tpu_custom_call.1} parent=0 // pred_region
    %810 = sst [smem:[#allocation11]] [#allocation94]
    %811 = sst [smem:[#allocation12]] [#allocation93]
  $region181: #{tpu_custom_call.1} parent=0 // pred_fallthru
    _
  %813 = shalt.err (0)
  %s815 = sshll.u32 %s43, 4
  %s816 = int_to_ptr.vmem [resolvable:$true] %s815
  %818 = dma.hbm_to_vmem [thread:$0]  %s807, 16, %s816, %s44
  %v819 = vld [vmem:[%s60] sm:$0x1]
  %v820 = vadd.f32 %v801, %v819
  %s821 = sshll.u32 %s73, 4
  %822 = dma.done %s81, %s821
  %s823 = sadd.s32 %s24, 42
  %s824 = sld [smem:[#allocation6 + %s823]]
  %s825 = smul.addr %s824, 16
  %s826 = scalar_lea.hbm %s4, %s825
  // Predicated region
  $region182: #{tpu_custom_call.1} parent=0 // pred_check
    _
  $region183: #{tpu_custom_call.1} parent=0 // pred_check_branch
    %828 = sbr.rel target = $region185
  $region184: #{tpu_custom_call.1} parent=0 // pred_region
    %829 = sst [smem:[#allocation11]] [#allocation96]
    %830 = sst [smem:[#allocation12]] [#allocation95]
  $region185: #{tpu_custom_call.1} parent=0 // pred_fallthru
    _
  %832 = shalt.err (0)
  %s834 = sshll.u32 %s60, 4
  %s835 = int_to_ptr.vmem [resolvable:$true] %s834
  %837 = dma.hbm_to_vmem [thread:$0]  %s826, 16, %s835, %s61
  %v838 = vld [vmem:[%s80] sm:$0x1]
  %v839 = vadd.f32 %v820, %v838
  %840 = vst [vmem:[#allocation4 + $0x4] sm:$0x1] %v839
  %s841 = sshll.u32 %s73, 4
  %842 = dma.done [#allocation3], %s841
  %s843 = sadd.s32 %s24, 43
  %s844 = sld [smem:[#allocation6 + %s843]]
  %s845 = smul.addr %s844, 16
  %s846 = scalar_lea.hbm %s4, %s845
  // Predicated region
  $region186: #{tpu_custom_call.1} parent=0 // pred_check
    _
  $region187: #{tpu_custom_call.1} parent=0 // pred_check_branch
    %848 = sbr.rel target = $region189
  $region188: #{tpu_custom_call.1} parent=0 // pred_region
    %849 = sst [smem:[#allocation11]] [#allocation98]
    %850 = sst [smem:[#allocation12]] [#allocation97]
  $region189: #{tpu_custom_call.1} parent=0 // pred_fallthru
    _
  %852 = shalt.err (0)
  %s854 = sshll.u32 %s80, 4
  %s855 = int_to_ptr.vmem [resolvable:$true] %s854
  %857 = dma.hbm_to_vmem [thread:$0]  %s846, 16, %s855, %s81
  %v858 = vld [vmem:[#allocation2] sm:$0x1]
  %v859 = vadd.f32 %v858, 0.0
  %s860 = sshll.u32 %s73, 4
  %861 = dma.done %s44, %s860
  %s862 = sadd.s32 %s24, 44
  %s863 = sld [smem:[#allocation6 + %s862]]
  %s864 = smul.addr %s863, 16
  %s865 = scalar_lea.hbm %s4, %s864
  // Predicated region
  $region190: #{tpu_custom_call.1} parent=0 // pred_check
    _
  $region191: #{tpu_custom_call.1} parent=0 // pred_check_branch
    %867 = sbr.rel target = $region193
  $region192: #{tpu_custom_call.1} parent=0 // pred_region
    %868 = sst [smem:[#allocation11]] [#allocation100]
    %869 = sst [smem:[#allocation12]] [#allocation99]
  $region193: #{tpu_custom_call.1} parent=0 // pred_fallthru
    _
  %871 = shalt.err (0)
  %s873 = sshll.u32 [#allocation2], 4
  %s874 = int_to_ptr.vmem [resolvable:$true] %s873
  %876 = dma.hbm_to_vmem [thread:$0]  %s865, 16, %s874, [#allocation3]
  %v877 = vld [vmem:[%s43] sm:$0x1]
  %v878 = vadd.f32 %v859, %v877
  %s879 = sshll.u32 %s73, 4
  %880 = dma.done %s61, %s879
  %s881 = sadd.s32 %s24, 45
  %s882 = sld [smem:[#allocation6 + %s881]]
  %s883 = smul.addr %s882, 16
  %s884 = scalar_lea.hbm %s4, %s883
  // Predicated region
  $region194: #{tpu_custom_call.1} parent=0 // pred_check
    _
  $region195: #{tpu_custom_call.1} parent=0 // pred_check_branch
    %886 = sbr.rel target = $region197
  $region196: #{tpu_custom_call.1} parent=0 // pred_region
    %887 = sst [smem:[#allocation11]] [#allocation102]
    %888 = sst [smem:[#allocation12]] [#allocation101]
  $region197: #{tpu_custom_call.1} parent=0 // pred_fallthru
    _
  %890 = shalt.err (0)
  %s892 = sshll.u32 %s43, 4
  %s893 = int_to_ptr.vmem [resolvable:$true] %s892
  %895 = dma.hbm_to_vmem [thread:$0]  %s884, 16, %s893, %s44
  %v896 = vld [vmem:[%s60] sm:$0x1]
  %v897 = vadd.f32 %v878, %v896
  %s898 = sshll.u32 %s73, 4
  %899 = dma.done %s81, %s898
  %s900 = sadd.s32 %s24, 46
  %s901 = sld [smem:[#allocation6 + %s900]]
  %s902 = smul.addr %s901, 16
  %s903 = scalar_lea.hbm %s4, %s902
  // Predicated region
  $region198: #{tpu_custom_call.1} parent=0 // pred_check
    _
  $region199: #{tpu_custom_call.1} parent=0 // pred_check_branch
    %905 = sbr.rel target = $region201
  $region200: #{tpu_custom_call.1} parent=0 // pred_region
    %906 = sst [smem:[#allocation11]] [#allocation104]
    %907 = sst [smem:[#allocation12]] [#allocation103]
  $region201: #{tpu_custom_call.1} parent=0 // pred_fallthru
    _
  %909 = shalt.err (0)
  %s911 = sshll.u32 %s60, 4
  %s912 = int_to_ptr.vmem [resolvable:$true] %s911
  %914 = dma.hbm_to_vmem [thread:$0]  %s903, 16, %s912, %s61
  %v915 = vld [vmem:[%s80] sm:$0x1]
  %v916 = vadd.f32 %v897, %v915
  %s917 = sshll.u32 %s73, 4
  %918 = dma.done [#allocation3], %s917
  %s919 = sadd.s32 %s24, 47
  %s920 = sld [smem:[#allocation6 + %s919]]
  %s921 = smul.addr %s920, 16
  %s922 = scalar_lea.hbm %s4, %s921
  // Predicated region
  $region202: #{tpu_custom_call.1} parent=0 // pred_check
    _
  $region203: #{tpu_custom_call.1} parent=0 // pred_check_branch
    %924 = sbr.rel target = $region205
  $region204: #{tpu_custom_call.1} parent=0 // pred_region
    %925 = sst [smem:[#allocation11]] [#allocation106]
    %926 = sst [smem:[#allocation12]] [#allocation105]
  $region205: #{tpu_custom_call.1} parent=0 // pred_fallthru
    _
  %928 = shalt.err (0)
  %s930 = sshll.u32 %s80, 4
  %s931 = int_to_ptr.vmem [resolvable:$true] %s930
  %933 = dma.hbm_to_vmem [thread:$0]  %s922, 16, %s931, %s81
  %v934 = vld [vmem:[#allocation2] sm:$0x1]
  %v935 = vadd.f32 %v916, %v934
  %s936 = sshll.u32 %s73, 4
  %937 = dma.done %s44, %s936
  %s938 = sadd.s32 %s24, 48
  %s939 = sld [smem:[#allocation6 + %s938]]
  %s940 = smul.addr %s939, 16
  %s941 = scalar_lea.hbm %s4, %s940
  // Predicated region
  $region206: #{tpu_custom_call.1} parent=0 // pred_check
    _
  $region207: #{tpu_custom_call.1} parent=0 // pred_check_branch
    %943 = sbr.rel target = $region209
  $region208: #{tpu_custom_call.1} parent=0 // pred_region
    %944 = sst [smem:[#allocation11]] [#allocation108]
    %945 = sst [smem:[#allocation12]] [#allocation107]
  $region209: #{tpu_custom_call.1} parent=0 // pred_fallthru
    _
  %947 = shalt.err (0)
  %s949 = sshll.u32 [#allocation2], 4
  %s950 = int_to_ptr.vmem [resolvable:$true] %s949
  %952 = dma.hbm_to_vmem [thread:$0]  %s941, 16, %s950, [#allocation3]
  %v953 = vld [vmem:[%s43] sm:$0x1]
  %v954 = vadd.f32 %v935, %v953
  %s955 = sshll.u32 %s73, 4
  %956 = dma.done %s61, %s955
  %s957 = sadd.s32 %s24, 49
  %s958 = sld [smem:[#allocation6 + %s957]]
  %s959 = smul.addr %s958, 16
  %s960 = scalar_lea.hbm %s4, %s959
  // Predicated region
  $region210: #{tpu_custom_call.1} parent=0 // pred_check
    _
  $region211: #{tpu_custom_call.1} parent=0 // pred_check_branch
    %962 = sbr.rel target = $region213
  $region212: #{tpu_custom_call.1} parent=0 // pred_region
    %963 = sst [smem:[#allocation11]] [#allocation110]
    %964 = sst [smem:[#allocation12]] [#allocation109]
  $region213: #{tpu_custom_call.1} parent=0 // pred_fallthru
    _
  %966 = shalt.err (0)
  %s968 = sshll.u32 %s43, 4
  %s969 = int_to_ptr.vmem [resolvable:$true] %s968
  %971 = dma.hbm_to_vmem [thread:$0]  %s960, 16, %s969, %s44
  %v972 = vld [vmem:[%s60] sm:$0x1]
  %v973 = vadd.f32 %v954, %v972
  %s974 = sshll.u32 %s73, 4
  %975 = dma.done %s81, %s974
  %s976 = sadd.s32 %s24, 50
  %s977 = sld [smem:[#allocation6 + %s976]]
  %s978 = smul.addr %s977, 16
  %s979 = scalar_lea.hbm %s4, %s978
  // Predicated region
  $region214: #{tpu_custom_call.1} parent=0 // pred_check
    _
  $region215: #{tpu_custom_call.1} parent=0 // pred_check_branch
    %981 = sbr.rel target = $region217
  $region216: #{tpu_custom_call.1} parent=0 // pred_region
    %982 = sst [smem:[#allocation11]] [#allocation112]
    %983 = sst [smem:[#allocation12]] [#allocation111]
  $region217: #{tpu_custom_call.1} parent=0 // pred_fallthru
    _
  %985 = shalt.err (0)
  %s987 = sshll.u32 %s60, 4
  %s988 = int_to_ptr.vmem [resolvable:$true] %s987
  %990 = dma.hbm_to_vmem [thread:$0]  %s979, 16, %s988, %s61
  %v991 = vld [vmem:[%s80] sm:$0x1]
  %v992 = vadd.f32 %v973, %v991
  %993 = vst [vmem:[#allocation4 + $0x5] sm:$0x1] %v992
  %s994 = sshll.u32 %s73, 4
  %995 = dma.done [#allocation3], %s994
  %s996 = sadd.s32 %s24, 51
  %s997 = sld [smem:[#allocation6 + %s996]]
  %s998 = smul.addr %s997, 16
  %s999 = scalar_lea.hbm %s4, %s998
  // Predicated region
  $region218: #{tpu_custom_call.1} parent=0 // pred_check
    _
  $region219: #{tpu_custom_call.1} parent=0 // pred_check_branch
    %1001 = sbr.rel target = $region221
  $region220: #{tpu_custom_call.1} parent=0 // pred_region
    %1002 = sst [smem:[#allocation11]] [#allocation114]
    %1003 = sst [smem:[#allocation12]] [#allocation113]
  $region221: #{tpu_custom_call.1} parent=0 // pred_fallthru
    _
  %1005 = shalt.err (0)
  %s1007 = sshll.u32 %s80, 4
  %s1008 = int_to_ptr.vmem [resolvable:$true] %s1007
  %1010 = dma.hbm_to_vmem [thread:$0]  %s999, 16, %s1008, %s81
  %v1011 = vld [vmem:[#allocation2] sm:$0x1]
  %v1012 = vadd.f32 %v1011, 0.0
  %s1013 = sshll.u32 %s73, 4
  %1014 = dma.done %s44, %s1013
  %s1015 = sadd.s32 %s24, 52
  %s1016 = sld [smem:[#allocation6 + %s1015]]
  %s1017 = smul.addr %s1016, 16
  %s1018 = scalar_lea.hbm %s4, %s1017
  // Predicated region
  $region222: #{tpu_custom_call.1} parent=0 // pred_check
    _
  $region223: #{tpu_custom_call.1} parent=0 // pred_check_branch
    %1020 = sbr.rel target = $region225
  $region224: #{tpu_custom_call.1} parent=0 // pred_region
    %1021 = sst [smem:[#allocation11]] [#allocation116]
    %1022 = sst [smem:[#allocation12]] [#allocation115]
  $region225: #{tpu_custom_call.1} parent=0 // pred_fallthru
    _
  %1024 = shalt.err (0)
  %s1026 = sshll.u32 [#allocation2], 4
  %s1027 = int_to_ptr.vmem [resolvable:$true] %s1026
  %1029 = dma.hbm_to_vmem [thread:$0]  %s1018, 16, %s1027, [#allocation3]
  %v1030 = vld [vmem:[%s43] sm:$0x1]
  %v1031 = vadd.f32 %v1012, %v1030
  %s1032 = sshll.u32 %s73, 4
  %1033 = dma.done %s61, %s1032
  %s1034 = sadd.s32 %s24, 53
  %s1035 = sld [smem:[#allocation6 + %s1034]]
  %s1036 = smul.addr %s1035, 16
  %s1037 = scalar_lea.hbm %s4, %s1036
  // Predicated region
  $region226: #{tpu_custom_call.1} parent=0 // pred_check
    _
  $region227: #{tpu_custom_call.1} parent=0 // pred_check_branch
    %1039 = sbr.rel target = $region229
  $region228: #{tpu_custom_call.1} parent=0 // pred_region
    %1040 = sst [smem:[#allocation11]] [#allocation118]
    %1041 = sst [smem:[#allocation12]] [#allocation117]
  $region229: #{tpu_custom_call.1} parent=0 // pred_fallthru
    _
  %1043 = shalt.err (0)
  %s1045 = sshll.u32 %s43, 4
  %s1046 = int_to_ptr.vmem [resolvable:$true] %s1045
  %1048 = dma.hbm_to_vmem [thread:$0]  %s1037, 16, %s1046, %s44
  %v1049 = vld [vmem:[%s60] sm:$0x1]
  %v1050 = vadd.f32 %v1031, %v1049
  %s1051 = sshll.u32 %s73, 4
  %1052 = dma.done %s81, %s1051
  %s1053 = sadd.s32 %s24, 54
  %s1054 = sld [smem:[#allocation6 + %s1053]]
  %s1055 = smul.addr %s1054, 16
  %s1056 = scalar_lea.hbm %s4, %s1055
  // Predicated region
  $region230: #{tpu_custom_call.1} parent=0 // pred_check
    _
  $region231: #{tpu_custom_call.1} parent=0 // pred_check_branch
    %1058 = sbr.rel target = $region233
  $region232: #{tpu_custom_call.1} parent=0 // pred_region
    %1059 = sst [smem:[#allocation11]] [#allocation120]
    %1060 = sst [smem:[#allocation12]] [#allocation119]
  $region233: #{tpu_custom_call.1} parent=0 // pred_fallthru
    _
  %1062 = shalt.err (0)
  %s1064 = sshll.u32 %s60, 4
  %s1065 = int_to_ptr.vmem [resolvable:$true] %s1064
  %1067 = dma.hbm_to_vmem [thread:$0]  %s1056, 16, %s1065, %s61
  %v1068 = vld [vmem:[%s80] sm:$0x1]
  %v1069 = vadd.f32 %v1050, %v1068
  %s1070 = sshll.u32 %s73, 4
  %1071 = dma.done [#allocation3], %s1070
  %s1072 = sadd.s32 %s24, 55
  %s1073 = sld [smem:[#allocation6 + %s1072]]
  %s1074 = smul.addr %s1073, 16
  %s1075 = scalar_lea.hbm %s4, %s1074
  // Predicated region
  $region234: #{tpu_custom_call.1} parent=0 // pred_check
    _
  $region235: #{tpu_custom_call.1} parent=0 // pred_check_branch
    %1077 = sbr.rel target = $region237
  $region236: #{tpu_custom_call.1} parent=0 // pred_region
    %1078 = sst [smem:[#allocation11]] [#allocation122]
    %1079 = sst [smem:[#allocation12]] [#allocation121]
  $region237: #{tpu_custom_call.1} parent=0 // pred_fallthru
    _
  %1081 = shalt.err (0)
  %s1083 = sshll.u32 %s80, 4
  %s1084 = int_to_ptr.vmem [resolvable:$true] %s1083
  %1086 = dma.hbm_to_vmem [thread:$0]  %s1075, 16, %s1084, %s81
  %v1087 = vld [vmem:[#allocation2] sm:$0x1]
  %v1088 = vadd.f32 %v1069, %v1087
  %s1089 = sshll.u32 %s73, 4
  %1090 = dma.done %s44, %s1089
  %s1091 = sadd.s32 %s24, 56
  %s1092 = sld [smem:[#allocation6 + %s1091]]
  %s1093 = smul.addr %s1092, 16
  %s1094 = scalar_lea.hbm %s4, %s1093
  // Predicated region
  $region238: #{tpu_custom_call.1} parent=0 // pred_check
    _
  $region239: #{tpu_custom_call.1} parent=0 // pred_check_branch
    %1096 = sbr.rel target = $region241
  $region240: #{tpu_custom_call.1} parent=0 // pred_region
    %1097 = sst [smem:[#allocation11]] [#allocation124]
    %1098 = sst [smem:[#allocation12]] [#allocation123]
  $region241: #{tpu_custom_call.1} parent=0 // pred_fallthru
    _
  %1100 = shalt.err (0)
  %s1102 = sshll.u32 [#allocation2], 4
  %s1103 = int_to_ptr.vmem [resolvable:$true] %s1102
  %1105 = dma.hbm_to_vmem [thread:$0]  %s1094, 16, %s1103, [#allocation3]
  %v1106 = vld [vmem:[%s43] sm:$0x1]
  %v1107 = vadd.f32 %v1088, %v1106
  %s1108 = sshll.u32 %s73, 4
  %1109 = dma.done %s61, %s1108
  %s1110 = sadd.s32 %s24, 57
  %s1111 = sld [smem:[#allocation6 + %s1110]]
  %s1112 = smul.addr %s1111, 16
  %s1113 = scalar_lea.hbm %s4, %s1112
  // Predicated region
  $region242: #{tpu_custom_call.1} parent=0 // pred_check
    _
  $region243: #{tpu_custom_call.1} parent=0 // pred_check_branch
    %1115 = sbr.rel target = $region245
  $region244: #{tpu_custom_call.1} parent=0 // pred_region
    %1116 = sst [smem:[#allocation11]] [#allocation126]
    %1117 = sst [smem:[#allocation12]] [#allocation125]
  $region245: #{tpu_custom_call.1} parent=0 // pred_fallthru
    _
  %1119 = shalt.err (0)
  %s1121 = sshll.u32 %s43, 4
  %s1122 = int_to_ptr.vmem [resolvable:$true] %s1121
  %1124 = dma.hbm_to_vmem [thread:$0]  %s1113, 16, %s1122, %s44
  %v1125 = vld [vmem:[%s60] sm:$0x1]
  %v1126 = vadd.f32 %v1107, %v1125
  %s1127 = sshll.u32 %s73, 4
  %1128 = dma.done %s81, %s1127
  %s1129 = sadd.s32 %s24, 58
  %s1130 = sld [smem:[#allocation6 + %s1129]]
  %s1131 = smul.addr %s1130, 16
  %s1132 = scalar_lea.hbm %s4, %s1131
  // Predicated region
  $region246: #{tpu_custom_call.1} parent=0 // pred_check
    _
  $region247: #{tpu_custom_call.1} parent=0 // pred_check_branch
    %1134 = sbr.rel target = $region249
  $region248: #{tpu_custom_call.1} parent=0 // pred_region
    %1135 = sst [smem:[#allocation11]] [#allocation128]
    %1136 = sst [smem:[#allocation12]] [#allocation127]
  $region249: #{tpu_custom_call.1} parent=0 // pred_fallthru
    _
  %1138 = shalt.err (0)
  %s1140 = sshll.u32 %s60, 4
  %s1141 = int_to_ptr.vmem [resolvable:$true] %s1140
  %1143 = dma.hbm_to_vmem [thread:$0]  %s1132, 16, %s1141, %s61
  %v1144 = vld [vmem:[%s80] sm:$0x1]
  %v1145 = vadd.f32 %v1126, %v1144
  %1146 = vst [vmem:[#allocation4 + $0x6] sm:$0x1] %v1145
  %s1147 = sshll.u32 %s73, 4
  %1148 = dma.done [#allocation3], %s1147
  %s1149 = sadd.s32 %s24, 59
  %s1150 = sld [smem:[#allocation6 + %s1149]]
  %s1151 = smul.addr %s1150, 16
  %s1152 = scalar_lea.hbm %s4, %s1151
  // Predicated region
  $region250: #{tpu_custom_call.1} parent=0 // pred_check
    _
  $region251: #{tpu_custom_call.1} parent=0 // pred_check_branch
    %1154 = sbr.rel target = $region253
  $region252: #{tpu_custom_call.1} parent=0 // pred_region
    %1155 = sst [smem:[#allocation11]] [#allocation130]
    %1156 = sst [smem:[#allocation12]] [#allocation129]
  $region253: #{tpu_custom_call.1} parent=0 // pred_fallthru
    _
  %1158 = shalt.err (0)
  %s1160 = sshll.u32 %s80, 4
  %s1161 = int_to_ptr.vmem [resolvable:$true] %s1160
  %1163 = dma.hbm_to_vmem [thread:$0]  %s1152, 16, %s1161, %s81
  %v1164 = vld [vmem:[#allocation2] sm:$0x1]
  %v1165 = vadd.f32 %v1164, 0.0
  %s1166 = sshll.u32 %s73, 4
  %1167 = dma.done %s44, %s1166
  %s1168 = sadd.s32 %s24, 60
  %s1169 = sld [smem:[#allocation6 + %s1168]]
  %s1170 = smul.addr %s1169, 16
  %s1171 = scalar_lea.hbm %s4, %s1170
  // Predicated region
  $region254: #{tpu_custom_call.1} parent=0 // pred_check
    _
  $region255: #{tpu_custom_call.1} parent=0 // pred_check_branch
    %1173 = sbr.rel target = $region257
  $region256: #{tpu_custom_call.1} parent=0 // pred_region
    %1174 = sst [smem:[#allocation11]] [#allocation132]
    %1175 = sst [smem:[#allocation12]] [#allocation131]
  $region257: #{tpu_custom_call.1} parent=0 // pred_fallthru
    _
  %1177 = shalt.err (0)
  %s1179 = sshll.u32 [#allocation2], 4
  %s1180 = int_to_ptr.vmem [resolvable:$true] %s1179
  %1182 = dma.hbm_to_vmem [thread:$0]  %s1171, 16, %s1180, [#allocation3]
  %v1183 = vld [vmem:[%s43] sm:$0x1]
  %v1184 = vadd.f32 %v1165, %v1183
  %s1185 = sshll.u32 %s73, 4
  %1186 = dma.done %s61, %s1185
  %s1187 = sadd.s32 %s24, 61
  %s1188 = sld [smem:[#allocation6 + %s1187]]
  %s1189 = smul.addr %s1188, 16
  %s1190 = scalar_lea.hbm %s4, %s1189
  // Predicated region
  $region258: #{tpu_custom_call.1} parent=0 // pred_check
    _
  $region259: #{tpu_custom_call.1} parent=0 // pred_check_branch
    %1192 = sbr.rel target = $region261
  $region260: #{tpu_custom_call.1} parent=0 // pred_region
    %1193 = sst [smem:[#allocation11]] [#allocation134]
    %1194 = sst [smem:[#allocation12]] [#allocation133]
  $region261: #{tpu_custom_call.1} parent=0 // pred_fallthru
    _
  %1196 = shalt.err (0)
  %s1198 = sshll.u32 %s43, 4
  %s1199 = int_to_ptr.vmem [resolvable:$true] %s1198
  %1201 = dma.hbm_to_vmem [thread:$0]  %s1190, 16, %s1199, %s44
  %v1202 = vld [vmem:[%s60] sm:$0x1]
  %v1203 = vadd.f32 %v1184, %v1202
  %s1204 = sshll.u32 %s73, 4
  %1205 = dma.done %s81, %s1204
  %s1206 = sadd.s32 %s24, 62
  %s1207 = sld [smem:[#allocation6 + %s1206]]
  %s1208 = smul.addr %s1207, 16
  %s1209 = scalar_lea.hbm %s4, %s1208
  // Predicated region
  $region262: #{tpu_custom_call.1} parent=0 // pred_check
    _
  $region263: #{tpu_custom_call.1} parent=0 // pred_check_branch
    %1211 = sbr.rel target = $region265
  $region264: #{tpu_custom_call.1} parent=0 // pred_region
    %1212 = sst [smem:[#allocation11]] [#allocation136]
    %1213 = sst [smem:[#allocation12]] [#allocation135]
  $region265: #{tpu_custom_call.1} parent=0 // pred_fallthru
    _
  %1215 = shalt.err (0)
  %s1217 = sshll.u32 %s60, 4
  %s1218 = int_to_ptr.vmem [resolvable:$true] %s1217
  %1220 = dma.hbm_to_vmem [thread:$0]  %s1209, 16, %s1218, %s61
  %v1221 = vld [vmem:[%s80] sm:$0x1]
  %v1222 = vadd.f32 %v1203, %v1221
  %s1223 = sshll.u32 %s73, 4
  %1224 = dma.done [#allocation3], %s1223
  %s1225 = sadd.s32 %s24, 63
  %s1226 = sld [smem:[#allocation6 + %s1225]]
  %s1227 = smul.addr %s1226, 16
  %s1228 = scalar_lea.hbm %s4, %s1227
  // Predicated region
  $region266: #{tpu_custom_call.1} parent=0 // pred_check
    _
  $region267: #{tpu_custom_call.1} parent=0 // pred_check_branch
    %1230 = sbr.rel target = $region269
  $region268: #{tpu_custom_call.1} parent=0 // pred_region
    %1231 = sst [smem:[#allocation11]] [#allocation138]
    %1232 = sst [smem:[#allocation12]] [#allocation137]
  $region269: #{tpu_custom_call.1} parent=0 // pred_fallthru
    _
  %1234 = shalt.err (0)
  %s1236 = sshll.u32 %s80, 4
  %s1237 = int_to_ptr.vmem [resolvable:$true] %s1236
  %1239 = dma.hbm_to_vmem [thread:$0]  %s1228, 16, %s1237, %s81
  %v1240 = vld [vmem:[#allocation2] sm:$0x1]
  %v1241 = vadd.f32 %v1222, %v1240
  %s1242 = sshll.u32 %s73, 4
  %1243 = dma.done %s44, %s1242
  %v1244 = vld [vmem:[%s43] sm:$0x1]
  %v1245 = vadd.f32 %v1241, %v1244
  %s1246 = sshll.u32 %s73, 4
  %1247 = dma.done %s61, %s1246
  %v1248 = vld [vmem:[%s60] sm:$0x1]
  %v1249 = vadd.f32 %v1245, %v1248
  %s1250 = sshll.u32 %s73, 4
  %1251 = dma.done %s81, %s1250
  %v1252 = vld [vmem:[%s80] sm:$0x1]
  %v1253 = vadd.f32 %v1249, %v1252
  %1254 = vst [vmem:[#allocation4 + $0x7] sm:$0x1] %v1253
  %v1255 = vld [vmem:[#allocation4] sm:$0xff]
  %v1256 = vld [vmem:[%s3] sm:$0x1]
  %v1258 = vlaneseq
  %v1259 = vshrl.u32 %v1258, 7
  %v1260 = vsub.s32 0, %v1259
  %v1261 = vrot.slane %v1256, %v1260
  %v1263 = vmul.f32 %v1255, %v1261
  %1264 = vadd.xlane.f32.xlu0 %v1263
  %v1265 = vpop.xlane.xlu0 %1264
  %s1266 = sld [smem:[#allocation7]]
  %v1267 = vstv %s1266
  %v1268 = vrcp.pop %v1267
  %s1269 = vtos %v1268
  %v1270 = vstv %s1269
  %v1271 = vmul.f32 %v1265, %v1270
  %s1272 = sld [smem:[#allocation8]]
  %v1273 = vstv %s1272
  %v1274 = vadd.f32 %v1271, %v1273
  %v1275 = vxor.u32 %v1274, 2147483648
  %v1276 = vmul.f32 %v1275, 1.442695
  %v1277 = vpow.pop %v1276
  %v1278 = vadd.f32 %v1277, 1.0
  %v1279 = vrcp.pop %v1278
  %v1280 = vmul.f32 1.0, %v1279
  %vm1281 = vcmask 7168
  %1282 = vst.msk [vmem:[%s5] sm:$0xff] %vm1281, %v1280
  // Predicated region
  $region270: #{tpu_custom_call.1} parent=0 // pred_check
    _
  $region271: #{tpu_custom_call.1} parent=0 // pred_check_branch
    %1284 = sbr.rel (0) target = $region273
  $region272: #{tpu_custom_call.1} parent=0 // pred_region
    _
  $region273: #{tpu_custom_call.1} parent=0 // pred_fallthru
    _
  // Predicated region
  $region274: #{tpu_custom_call.1} parent=0 // pred_check
    _
  $region275: #{tpu_custom_call.1} parent=0 // pred_check_branch
    %1286 = sbr.rel (0) target = $region277
  $region276: #{tpu_custom_call.1} parent=0 // pred_region
    _
  $region277: #{tpu_custom_call.1} parent=0 // pred_fallthru
    _
  %1287 = vsyncmov [#allocation3]
  %s1288 = vpop.sfrf %1287
  %p1289 = scmp.eq.s32.totalorder %s1288, 0
  %p1290 = pneg %p1289
  %1292 = shalt.err (%p1290)
  %s1293 = scalar_lea.sflag [#allocation3], 1
  %1294 = vsyncmov %s1293
  %s1295 = vpop.sfrf %1294
  %p1296 = scmp.eq.s32.totalorder %s1295, 0
  %p1297 = pneg %p1296
  %1299 = shalt.err (%p1297)
  %s1300 = scalar_lea.sflag [#allocation3], 2
  %1301 = vsyncmov %s1300
  %s1302 = vpop.sfrf %1301
  %p1303 = scmp.eq.s32.totalorder %s1302, 0
  %p1304 = pneg %p1303
  %1306 = shalt.err (%p1304)
  %s1307 = scalar_lea.sflag [#allocation3], 3
  %1308 = vsyncmov %s1307
  %s1309 = vpop.sfrf %1308
  %p1310 = scmp.eq.s32.totalorder %s1309, 0
  %p1311 = pneg %p1310
  %1313 = shalt.err (%p1311)

</llo_original>
